<compile_context>
chip_gen: v5e
topology: v5e:2x2
jax: 0.10.0
libtpu: 0.0.40
codegen_flags: <defaults>
</compile_context>

<pallas_src>
import jax
import jax.numpy as jnp
from jax.experimental import pallas as pl
from jax.experimental.pallas import tpu as pltpu

STATE_DIM = 32      # state_dim
N_OPTIONS = 4       # n_options
HIDDEN = 1024       # fixed by the module's create_mlp sizes
COEFF = 1.0
BATCH = 4


def make_transition_kernel(B, S, O, coeff):
    inv_bs = 1.0 / float(B * S)
    inv_bos = coeff / float(B * O * S)

    def kernel(states_ref, opts_ref, target_ref,
               w1_ref, b1_ref, w2_ref, b2_ref, w3_ref, b3_ref,
               out_ref):
        # ---- MLP: Linear->ReLU->Linear->ReLU->Linear (no output activation) ----
        # bf16 operands into the MXU, f32 accumulation, f32 bias/activation.
        x = states_ref[...].astype(jnp.bfloat16)                          # [B, S]
        h1 = jnp.maximum(
            jnp.dot(x, w1_ref[...], preferred_element_type=jnp.float32)
            + b1_ref[...], 0.0)                                           # [B, H] f32
        h2 = jnp.maximum(
            jnp.dot(h1.astype(jnp.bfloat16), w2_ref[...],
                    preferred_element_type=jnp.float32)
            + b2_ref[...], 0.0)                                           # [B, H] f32
        enc = (jnp.dot(h2.astype(jnp.bfloat16), w3_ref[...],
                       preferred_element_type=jnp.float32)
               + b3_ref[...])                                             # [B, O*S] f32

        target = target_ref[...]                                          # [B, S]

        # Fused reduction weights (hoisted out of the option loop):
        #   einsum('bos,bo->bs', loss, opts).mean() + coeff*loss.mean()
        # = sum_o sum_{b,s} loss[b,o,s] * (opts[b,o]/(B*S) + coeff/(B*O*S))
        w_all = opts_ref[...] * inv_bs + inv_bos                          # [B, O]

        # 'b (o s) -> b o s' handled by static lane slices (col o*S+s).
        acc = jnp.zeros((B, S), jnp.float32)
        for o in range(O):                                                # O=4, unrolled
            diff = enc[:, o * S:(o + 1) * S] - target                     # [B, S]
            ad = jnp.abs(diff)
            loss_o = jnp.where(ad < 1.0, 0.5 * diff * diff, ad - 0.5)     # smooth_l1, beta=1
            acc = acc + loss_o * w_all[:, o:o + 1]
        out_ref[0, 0] = jnp.sum(acc)

    return kernel


def transition_forward(states, options, next_states_enc, params, coeff=COEFF):
    """states: [B, S] f32, options: [B, O] f32, next_states_enc: [B, S] f32.
    params: (w1 bf16 [S,H], b1 f32 [1,H], w2 bf16 [H,H], b2 f32 [1,H],
             w3 bf16 [H,O*S], b3 f32 [1,O*S])."""
    w1, b1, w2, b2, w3, b3 = params
    B, S = states.shape
    O = options.shape[1]
    H = w1.shape[1]

    kernel = make_transition_kernel(B, S, O, coeff)
    vmem = pl.BlockSpec(memory_space=pltpu.MemorySpace.VMEM)

    flops = 2 * B * (S * H + H * H + H * O * S)
    bytes_accessed = (
        (w1.size + w2.size + w3.size) * 2          # bf16 weights (dominant)
        + (b1.size + b2.size + b3.size) * 4        # f32 biases
        + (states.size + options.size + next_states_enc.size) * 4
        + 4                                        # scalar output
    )

    out = pl.pallas_call(
        kernel,
        out_shape=jax.ShapeDtypeStruct((1, 1), jnp.float32),
        in_specs=[vmem] * 9,
        out_specs=pl.BlockSpec(memory_space=pltpu.MemorySpace.SMEM),
        cost_estimate=pl.CostEstimate(
            flops=flops, transcendentals=0, bytes_accessed=bytes_accessed),
    )(states, options, next_states_enc, w1, b1, w2, b2, w3, b3)
    return out[0, 0]


def init_params(key, state_dim=STATE_DIM, n_options=N_OPTIONS, hidden=HIDDEN):
    k1, k2, k3 = jax.random.split(key, 3)
    scale = 0.05
    w1 = (scale * jax.random.normal(k1, (state_dim, hidden), jnp.float32)).astype(jnp.bfloat16)
    b1 = jnp.zeros((1, hidden), jnp.float32)
    w2 = (scale * jax.random.normal(k2, (hidden, hidden), jnp.float32)).astype(jnp.bfloat16)
    b2 = jnp.zeros((1, hidden), jnp.float32)
    w3 = (scale * jax.random.normal(k3, (hidden, state_dim * n_options), jnp.float32)).astype(jnp.bfloat16)
    b3 = jnp.zeros((1, state_dim * n_options), jnp.float32)
    return (w1, b1, w2, b2, w3, b3)


def _smooth_l1(diff):
    ad = jnp.abs(diff)
    return jnp.where(ad < 1.0, 0.5 * diff * diff, ad - 0.5)


def reference_forward_bf16(states, options, next_states_enc, params, coeff=COEFF):
    """Matches kernel math: bf16 matmul operands, f32 accumulation."""
    w1, b1, w2, b2, w3, b3 = params

    def mm(x, w):
        return jax.lax.dot(x.astype(jnp.bfloat16), w,
                           preferred_element_type=jnp.float32)

    h1 = jax.nn.relu(mm(states, w1) + b1)
    h2 = jax.nn.relu(mm(h1, w2) + b2)
    enc = (mm(h2, w3) + b3).reshape(states.shape[0], N_OPTIONS, STATE_DIM)
    loss = _smooth_l1(enc - next_states_enc[:, None, :])
    term1 = jnp.mean(jnp.einsum('bos,bo->bs', loss, options))
    return term1 + coeff * jnp.mean(loss)


def reference_forward_f32(states, options, next_states_enc, params, coeff=COEFF):
    """Pure f32 reference (weights upcast) — module semantics check."""
    w1, b1, w2, b2, w3, b3 = [p.astype(jnp.float32) for p in params]
    h1 = jax.nn.relu(states @ w1 + b1)
    h2 = jax.nn.relu(h1 @ w2 + b2)
    enc = (h2 @ w3 + b3).reshape(states.shape[0], N_OPTIONS, STATE_DIM)
    loss = _smooth_l1(enc - next_states_enc[:, None, :])
    term1 = jnp.mean(jnp.einsum('bos,bo->bs', loss, options))
    return term1 + coeff * jnp.mean(loss)


if __name__ == "__main__":
    key = jax.random.PRNGKey(0)
    kp, ks, ko, kn = jax.random.split(key, 4)

    params = init_params(kp)
    states = jax.random.normal(ks, (BATCH, STATE_DIM), jnp.float32)
    # options: soft (e.g. one-hot-ish) weights over n_options
    options = jax.nn.softmax(jax.random.normal(ko, (BATCH, N_OPTIONS), jnp.float32), axis=-1)
    next_states_enc = jax.random.normal(kn, (BATCH, STATE_DIM), jnp.float32)

    out = transition_forward(states, options, next_states_enc, params)
    out = jax.block_until_ready(out)

    ref_bf16 = reference_forward_bf16(states, options, next_states_enc, params)
    ref_f32 = reference_forward_f32(states, options, next_states_enc, params)

    assert out.shape == () and out.dtype == jnp.float32
    # Tight check vs. a reference using the same bf16-operand / f32-accum math.
    assert jnp.allclose(out, ref_bf16, rtol=2e-3, atol=1e-4), (out, ref_bf16)
    # Loose check vs. the pure-f32 module semantics (bf16 weight rounding shift).
    assert jnp.allclose(out, ref_f32, rtol=5e-2, atol=1e-2), (out, ref_f32)

    print("KERNEL_OK")
</pallas_src>

<mosaic_0001>
module attributes {stable_mosaic.version = 11 : i64} {
  func.func @kernel(%arg0: memref<4x32xf32, #tpu.memory_space<vmem>>, %arg1: memref<4x4xf32, #tpu.memory_space<vmem>>, %arg2: memref<4x32xf32, #tpu.memory_space<vmem>>, %arg3: memref<32x1024xbf16, #tpu.memory_space<vmem>>, %arg4: memref<1x1024xf32, #tpu.memory_space<vmem>>, %arg5: memref<1024x1024xbf16, #tpu.memory_space<vmem>>, %arg6: memref<1x1024xf32, #tpu.memory_space<vmem>>, %arg7: memref<1024x128xbf16, #tpu.memory_space<vmem>>, %arg8: memref<1x128xf32, #tpu.memory_space<vmem>>, %arg9: memref<1x1xf32, #tpu.memory_space<smem>>) attributes {dimension_semantics = [], scalar_prefetch = 0 : i64, scratch_operands = 0 : i64, tpu.core_type = #tpu.core_type<tc>} {
    %c0 = arith.constant 0 : index
    %c0_0 = arith.constant 0 : index
    %0 = vector.load %arg0[%c0, %c0_0] : memref<4x32xf32, #tpu.memory_space<vmem>>, vector<4x32xf32>
    %1 = arith.truncf %0 : vector<4x32xf32> to vector<4x32xbf16>
    %c0_1 = arith.constant 0 : index
    %c0_2 = arith.constant 0 : index
    %2 = vector.load %arg3[%c0_1, %c0_2] : memref<32x1024xbf16, #tpu.memory_space<vmem>>, vector<32x1024xbf16>
    %cst = arith.constant dense<0.000000e+00> : vector<4x1024xf32>
    %3 = tpu.matmul %1, %2, %cst {dimension_numbers = #tpu.dot_dimension_numbers<[1], [0], [0], [1], [0, 0, 1, 1], [], []>} : vector<4x32xbf16>, vector<32x1024xbf16>, vector<4x1024xf32> -> vector<4x1024xf32>
    %c0_3 = arith.constant 0 : index
    %c0_4 = arith.constant 0 : index
    %4 = vector.load %arg4[%c0_3, %c0_4] : memref<1x1024xf32, #tpu.memory_space<vmem>>, vector<1x1024xf32>
    %5 = vector.broadcast %4 : vector<1x1024xf32> to vector<4x1024xf32>
    %6 = arith.addf %3, %5 : vector<4x1024xf32>
    %cst_5 = arith.constant 0.000000e+00 : f32
    %7 = vector.broadcast %cst_5 : f32 to vector<4x1024xf32>
    %8 = arith.maximumf %6, %7 : vector<4x1024xf32>
    %9 = arith.truncf %8 : vector<4x1024xf32> to vector<4x1024xbf16>
    %c0_6 = arith.constant 0 : index
    %c0_7 = arith.constant 0 : index
    %10 = vector.load %arg5[%c0_6, %c0_7] : memref<1024x1024xbf16, #tpu.memory_space<vmem>>, vector<1024x1024xbf16>
    %cst_8 = arith.constant dense<0.000000e+00> : vector<4x1024xf32>
    %11 = tpu.matmul %9, %10, %cst_8 {dimension_numbers = #tpu.dot_dimension_numbers<[1], [0], [0], [1], [0, 0, 1, 1], [], []>} : vector<4x1024xbf16>, vector<1024x1024xbf16>, vector<4x1024xf32> -> vector<4x1024xf32>
    %c0_9 = arith.constant 0 : index
    %c0_10 = arith.constant 0 : index
    %12 = vector.load %arg6[%c0_9, %c0_10] : memref<1x1024xf32, #tpu.memory_space<vmem>>, vector<1x1024xf32>
    %13 = vector.broadcast %12 : vector<1x1024xf32> to vector<4x1024xf32>
    %14 = arith.addf %11, %13 : vector<4x1024xf32>
    %cst_11 = arith.constant 0.000000e+00 : f32
    %15 = vector.broadcast %cst_11 : f32 to vector<4x1024xf32>
    %16 = arith.maximumf %14, %15 : vector<4x1024xf32>
    %17 = arith.truncf %16 : vector<4x1024xf32> to vector<4x1024xbf16>
    %c0_12 = arith.constant 0 : index
    %c0_13 = arith.constant 0 : index
    %18 = vector.load %arg7[%c0_12, %c0_13] : memref<1024x128xbf16, #tpu.memory_space<vmem>>, vector<1024x128xbf16>
    %cst_14 = arith.constant dense<0.000000e+00> : vector<4x128xf32>
    %19 = tpu.matmul %17, %18, %cst_14 {dimension_numbers = #tpu.dot_dimension_numbers<[1], [0], [0], [1], [0, 0, 1, 1], [], []>} : vector<4x1024xbf16>, vector<1024x128xbf16>, vector<4x128xf32> -> vector<4x128xf32>
    %c0_15 = arith.constant 0 : index
    %c0_16 = arith.constant 0 : index
    %20 = vector.load %arg8[%c0_15, %c0_16] : memref<1x128xf32, #tpu.memory_space<vmem>>, vector<1x128xf32>
    %21 = vector.broadcast %20 : vector<1x128xf32> to vector<4x128xf32>
    %22 = arith.addf %19, %21 : vector<4x128xf32>
    %c0_17 = arith.constant 0 : index
    %c0_18 = arith.constant 0 : index
    %23 = vector.load %arg2[%c0_17, %c0_18] : memref<4x32xf32, #tpu.memory_space<vmem>>, vector<4x32xf32>
    %c0_19 = arith.constant 0 : index
    %c0_20 = arith.constant 0 : index
    %24 = vector.load %arg1[%c0_19, %c0_20] : memref<4x4xf32, #tpu.memory_space<vmem>>, vector<4x4xf32>
    %cst_21 = arith.constant 7.812500e-03 : f32
    %25 = vector.broadcast %cst_21 : f32 to vector<4x4xf32>
    %26 = arith.mulf %24, %25 : vector<4x4xf32>
    %cst_22 = arith.constant 0.001953125 : f32
    %27 = vector.broadcast %cst_22 : f32 to vector<4x4xf32>
    %28 = arith.addf %26, %27 : vector<4x4xf32>
    %cst_23 = arith.constant 0.000000e+00 : f32
    %29 = vector.broadcast %cst_23 : f32 to vector<4x32xf32>
    %30 = vector.extract_strided_slice %22 {offsets = [0, 0], sizes = [4, 32], strides = [1, 1]} : vector<4x128xf32> to vector<4x32xf32>
    %31 = arith.subf %30, %23 : vector<4x32xf32>
    %32 = math.absf %31 : vector<4x32xf32>
    %cst_24 = arith.constant 1.000000e+00 : f32
    %33 = vector.broadcast %cst_24 : f32 to vector<4x32xf32>
    %34 = arith.cmpf olt, %32, %33 : vector<4x32xf32>
    %cst_25 = arith.constant 5.000000e-01 : f32
    %35 = vector.broadcast %cst_25 : f32 to vector<4x32xf32>
    %36 = arith.mulf %35, %31 : vector<4x32xf32>
    %37 = arith.mulf %36, %31 : vector<4x32xf32>
    %cst_26 = arith.constant 5.000000e-01 : f32
    %38 = vector.broadcast %cst_26 : f32 to vector<4x32xf32>
    %39 = arith.subf %32, %38 : vector<4x32xf32>
    %40 = arith.select %34, %37, %39 : vector<4x32xi1>, vector<4x32xf32>
    %41 = vector.extract_strided_slice %28 {offsets = [0, 0], sizes = [4, 1], strides = [1, 1]} : vector<4x4xf32> to vector<4x1xf32>
    %42 = vector.broadcast %41 : vector<4x1xf32> to vector<4x32xf32>
    %43 = arith.mulf %40, %42 : vector<4x32xf32>
    %44 = arith.addf %29, %43 : vector<4x32xf32>
    %45 = vector.extract_strided_slice %22 {offsets = [0, 32], sizes = [4, 32], strides = [1, 1]} : vector<4x128xf32> to vector<4x32xf32>
    %46 = arith.subf %45, %23 : vector<4x32xf32>
    %47 = math.absf %46 : vector<4x32xf32>
    %cst_27 = arith.constant 1.000000e+00 : f32
    %48 = vector.broadcast %cst_27 : f32 to vector<4x32xf32>
    %49 = arith.cmpf olt, %47, %48 : vector<4x32xf32>
    %cst_28 = arith.constant 5.000000e-01 : f32
    %50 = vector.broadcast %cst_28 : f32 to vector<4x32xf32>
    %51 = arith.mulf %50, %46 : vector<4x32xf32>
    %52 = arith.mulf %51, %46 : vector<4x32xf32>
    %cst_29 = arith.constant 5.000000e-01 : f32
    %53 = vector.broadcast %cst_29 : f32 to vector<4x32xf32>
    %54 = arith.subf %47, %53 : vector<4x32xf32>
    %55 = arith.select %49, %52, %54 : vector<4x32xi1>, vector<4x32xf32>
    %56 = vector.extract_strided_slice %28 {offsets = [0, 1], sizes = [4, 1], strides = [1, 1]} : vector<4x4xf32> to vector<4x1xf32>
    %57 = vector.broadcast %56 : vector<4x1xf32> to vector<4x32xf32>
    %58 = arith.mulf %55, %57 : vector<4x32xf32>
    %59 = arith.addf %44, %58 : vector<4x32xf32>
    %60 = vector.extract_strided_slice %22 {offsets = [0, 64], sizes = [4, 32], strides = [1, 1]} : vector<4x128xf32> to vector<4x32xf32>
    %61 = arith.subf %60, %23 : vector<4x32xf32>
    %62 = math.absf %61 : vector<4x32xf32>
    %cst_30 = arith.constant 1.000000e+00 : f32
    %63 = vector.broadcast %cst_30 : f32 to vector<4x32xf32>
    %64 = arith.cmpf olt, %62, %63 : vector<4x32xf32>
    %cst_31 = arith.constant 5.000000e-01 : f32
    %65 = vector.broadcast %cst_31 : f32 to vector<4x32xf32>
    %66 = arith.mulf %65, %61 : vector<4x32xf32>
    %67 = arith.mulf %66, %61 : vector<4x32xf32>
    %cst_32 = arith.constant 5.000000e-01 : f32
    %68 = vector.broadcast %cst_32 : f32 to vector<4x32xf32>
    %69 = arith.subf %62, %68 : vector<4x32xf32>
    %70 = arith.select %64, %67, %69 : vector<4x32xi1>, vector<4x32xf32>
    %71 = vector.extract_strided_slice %28 {offsets = [0, 2], sizes = [4, 1], strides = [1, 1]} : vector<4x4xf32> to vector<4x1xf32>
    %72 = vector.broadcast %71 : vector<4x1xf32> to vector<4x32xf32>
    %73 = arith.mulf %70, %72 : vector<4x32xf32>
    %74 = arith.addf %59, %73 : vector<4x32xf32>
    %75 = vector.extract_strided_slice %22 {offsets = [0, 96], sizes = [4, 32], strides = [1, 1]} : vector<4x128xf32> to vector<4x32xf32>
    %76 = arith.subf %75, %23 : vector<4x32xf32>
    %77 = math.absf %76 : vector<4x32xf32>
    %cst_33 = arith.constant 1.000000e+00 : f32
    %78 = vector.broadcast %cst_33 : f32 to vector<4x32xf32>
    %79 = arith.cmpf olt, %77, %78 : vector<4x32xf32>
    %cst_34 = arith.constant 5.000000e-01 : f32
    %80 = vector.broadcast %cst_34 : f32 to vector<4x32xf32>
    %81 = arith.mulf %80, %76 : vector<4x32xf32>
    %82 = arith.mulf %81, %76 : vector<4x32xf32>
    %cst_35 = arith.constant 5.000000e-01 : f32
    %83 = vector.broadcast %cst_35 : f32 to vector<4x32xf32>
    %84 = arith.subf %77, %83 : vector<4x32xf32>
    %85 = arith.select %79, %82, %84 : vector<4x32xi1>, vector<4x32xf32>
    %86 = vector.extract_strided_slice %28 {offsets = [0, 3], sizes = [4, 1], strides = [1, 1]} : vector<4x4xf32> to vector<4x1xf32>
    %87 = vector.broadcast %86 : vector<4x1xf32> to vector<4x32xf32>
    %88 = arith.mulf %85, %87 : vector<4x32xf32>
    %89 = arith.addf %74, %88 : vector<4x32xf32>
    %90 = vector.shape_cast %89 : vector<4x32xf32> to vector<1x4x32xf32>
    %cst_36 = arith.constant dense<0.000000e+00> : vector<1xf32>
    %91 = vector.multi_reduction <add>, %90, %cst_36 [1, 2] : vector<1x4x32xf32> to vector<1xf32>
    %92 = vector.shape_cast %91 : vector<1xf32> to vector<1x1x1xf32>
    %93 = vector.extract %92[0, 0, 0] : f32 from vector<1x1x1xf32>
    %c0_37 = arith.constant 0 : index
    %c0_38 = arith.constant 0 : index
    %94 = memref.load %arg9[%c0_37, %c0_38] : memref<1x1xf32, #tpu.memory_space<smem>>
    memref.store %93, %arg9[%c0_37, %c0_38] : memref<1x1xf32, #tpu.memory_space<smem>>
    return
  }
}

</mosaic_0001>

<llo_original>
// kernel: tpu_custom_call.1
$region0: #{tpu_custom_call.1}
  #allocation0 [shape = 'u32[]', space=smem, size = 0x4, offset = 0x4, fixed_abs, tag = 'smem constant byte address 0x4 - core index']
  #allocation1 [shape = 'u32[72,128]{1,0:T(1,128)}', space=vmem, size = 0x9000, scoped, tag = 'internal scratch']
  %s0 = inlined_call_operand.hbm [shape: f32[4,32], index: 0, kind: input, shape index: {}]
  %s1 = inlined_call_operand.hbm [shape: f32[4,4], index: 1, kind: input, shape index: {}]
  %s2 = inlined_call_operand.hbm [shape: f32[4,32], index: 2, kind: input, shape index: {}]
  %s3 = inlined_call_operand.hbm [shape: bf16[32,1024], index: 3, kind: input, shape index: {}]
  %s4 = inlined_call_operand.hbm [shape: f32[1,1024], index: 4, kind: input, shape index: {}]
  %s5 = inlined_call_operand.hbm [shape: bf16[1024,1024], index: 5, kind: input, shape index: {}]
  %s6 = inlined_call_operand.hbm [shape: f32[1,1024], index: 6, kind: input, shape index: {}]
  %s7 = inlined_call_operand.hbm [shape: bf16[1024,128], index: 7, kind: input, shape index: {}]
  %s8 = inlined_call_operand.hbm [shape: f32[1,128], index: 8, kind: input, shape index: {}]
  %s9 = inlined_call_operand.hbm [shape: f32[1,1], index: 9, kind: output, shape index: {}]
  %s10 = sld [smem:[#allocation0]]
  $region82: #{tpu_custom_call.1} parent=0
    _
  %s12 = ssub.s32 1, %s10
  %s13 = scalar_select 0, %s12, %s10
  $region1: #{tpu_custom_call.1} parent=0
    #allocation2 [shape = 'u8[2048]{0}', space=vmem, size = 0x800, scoped, tag = 'input window, operand 0, single buffered']
    #allocation3 [shape = 's32[1]{0}', space=sflag, size = 0x4, scoped, tag = 'scoped memory for tpu_custom_call.1']
    #allocation4 [shape = 's32[1]{0}', space=sflag, size = 0x4, scoped, tag = 'scoped memory for tpu_custom_call.1']
    #allocation5 [shape = 'u8[2048]{0}', space=vmem, size = 0x800, scoped, tag = 'input window, operand 1, single buffered']
    #allocation6 [shape = 's32[1]{0}', space=sflag, size = 0x4, scoped, tag = 'scoped memory for tpu_custom_call.1']
    #allocation7 [shape = 'u8[2048]{0}', space=vmem, size = 0x800, scoped, tag = 'input window, operand 2, single buffered']
    #allocation8 [shape = 'u8[65536]{0}', space=vmem, size = 0x10000, scoped, tag = 'input window, operand 3, single buffered']
    #allocation9 [shape = 's32[1]{0}', space=sflag, size = 0x4, scoped, tag = 'scoped memory for tpu_custom_call.1']
    #allocation10 [shape = 'u8[4096]{0}', space=vmem, size = 0x1000, scoped, tag = 'input window, operand 4, single buffered']
    #allocation11 [shape = 'u8[2097152]{0}', space=vmem, size = 0x200000, scoped, tag = 'input window, operand 5, single buffered']
    #allocation12 [shape = 's32[1]{0}', space=sflag, size = 0x4, scoped, tag = 'scoped memory for tpu_custom_call.1']
    #allocation13 [shape = 'u8[4096]{0}', space=vmem, size = 0x1000, scoped, tag = 'input window, operand 6, single buffered']
    #allocation14 [shape = 'u8[262144]{0}', space=vmem, size = 0x40000, scoped, tag = 'input window, operand 7, single buffered']
    #allocation15 [shape = 's32[1]{0}', space=sflag, size = 0x4, scoped, tag = 'scoped memory for tpu_custom_call.1']
    #allocation16 [shape = 'u8[512]{0}', space=vmem, size = 0x400, scoped, tag = 'input window, operand 8, single buffered']
    #allocation17 [shape = 'u8[512]{0}', space=smem, size = 0x200, scoped, tag = 'output window, operand 0, single buffered']
    %14 = vsyncpa [#allocation3], 0
    %15 = vsyncpa [#allocation6], 0
    %16 = vsyncpa [#allocation9], 0
    %17 = vsyncpa [#allocation12], 0
    %18 = vsyncpa [#allocation15], 0
    %19 = vsyncpa [#allocation4], 0
    // Predicated region
    $region2: #{tpu_custom_call.1} parent=1 // pred_check
      _
    $region3: #{tpu_custom_call.1} parent=1 // pred_check_branch
      %21 = sbr.rel (0) target = $region5
    $region4: #{tpu_custom_call.1} parent=1 // pred_region
      %23 = vsyncadd [#allocation3], 0
      %s25 = sshll.u32 %s0, 4
      %s26 = int_to_ptr.hbm [resolvable:$true] %s25
      %s27 = sshll.u32 [#allocation2], 4
      %s28 = int_to_ptr.vmem [resolvable:$true] %s27
      %30 = dma.hbm_to_vmem [thread:$0]  %s26, 64, %s28, [#allocation3]
    $region5: #{tpu_custom_call.1} parent=1 // pred_fallthru
      _
    // Predicated region
    $region6: #{tpu_custom_call.1} parent=1 // pred_check
      _
    $region7: #{tpu_custom_call.1} parent=1 // pred_check_branch
      %32 = sbr.rel (0) target = $region9
    $region8: #{tpu_custom_call.1} parent=1 // pred_region
      %34 = vsyncadd [#allocation6], 0
      %s36 = sshll.u32 %s1, 4
      %s37 = int_to_ptr.hbm [resolvable:$true] %s36
      %s38 = sshll.u32 [#allocation5], 4
      %s39 = int_to_ptr.vmem [resolvable:$true] %s38
      %41 = dma.hbm_to_vmem [thread:$0]  %s37, 64, %s39, [#allocation6]
    $region9: #{tpu_custom_call.1} parent=1 // pred_fallthru
      _
    // Predicated region
    $region10: #{tpu_custom_call.1} parent=1 // pred_check
      _
    $region11: #{tpu_custom_call.1} parent=1 // pred_check_branch
      %43 = sbr.rel (0) target = $region13
    $region12: #{tpu_custom_call.1} parent=1 // pred_region
      %45 = vsyncadd [#allocation6], 0
      %s47 = sshll.u32 %s2, 4
      %s48 = int_to_ptr.hbm [resolvable:$true] %s47
      %s49 = sshll.u32 [#allocation7], 4
      %s50 = int_to_ptr.vmem [resolvable:$true] %s49
      %52 = dma.hbm_to_vmem [thread:$0]  %s48, 64, %s50, [#allocation6]
    $region13: #{tpu_custom_call.1} parent=1 // pred_fallthru
      _
    // Predicated region
    $region14: #{tpu_custom_call.1} parent=1 // pred_check
      _
    $region15: #{tpu_custom_call.1} parent=1 // pred_check_branch
      %54 = sbr.rel (0) target = $region17
    $region16: #{tpu_custom_call.1} parent=1 // pred_region
      %56 = vsyncadd [#allocation9], 0
      %s57 = sshll.u32 %s3, 4
      %s58 = int_to_ptr.hbm [resolvable:$true] %s57
      %s59 = sshll.u32 [#allocation8], 4
      %s60 = int_to_ptr.vmem [resolvable:$true] %s59
      %65 = dma.hbm_to_vmem [thread:$0]  %s58, 2048, %s60, [#allocation9], 512, 512, 32
    $region17: #{tpu_custom_call.1} parent=1 // pred_fallthru
      _
    // Predicated region
    $region18: #{tpu_custom_call.1} parent=1 // pred_check
      _
    $region19: #{tpu_custom_call.1} parent=1 // pred_check_branch
      %67 = sbr.rel (0) target = $region21
    $region20: #{tpu_custom_call.1} parent=1 // pred_region
      %69 = vsyncadd [#allocation9], 0
      %s71 = sshll.u32 %s4, 4
      %s72 = int_to_ptr.hbm [resolvable:$true] %s71
      %s73 = sshll.u32 [#allocation10], 4
      %s74 = int_to_ptr.vmem [resolvable:$true] %s73
      %76 = dma.hbm_to_vmem [thread:$0]  %s72, 128, %s74, [#allocation9]
    $region21: #{tpu_custom_call.1} parent=1 // pred_fallthru
      _
    // Predicated region
    $region22: #{tpu_custom_call.1} parent=1 // pred_check
      _
    $region23: #{tpu_custom_call.1} parent=1 // pred_check_branch
      %78 = sbr.rel (0) target = $region25
    $region24: #{tpu_custom_call.1} parent=1 // pred_region
      %80 = vsyncadd [#allocation12], 0
      %s81 = sshll.u32 %s5, 4
      %s82 = int_to_ptr.hbm [resolvable:$true] %s81
      %s83 = sshll.u32 [#allocation11], 4
      %s84 = int_to_ptr.vmem [resolvable:$true] %s83
      %89 = dma.hbm_to_vmem [thread:$0]  %s82, 65536, %s84, [#allocation12], 512, 512, 32
    $region25: #{tpu_custom_call.1} parent=1 // pred_fallthru
      _
    // Predicated region
    $region26: #{tpu_custom_call.1} parent=1 // pred_check
      _
    $region27: #{tpu_custom_call.1} parent=1 // pred_check_branch
      %91 = sbr.rel (0) target = $region29
    $region28: #{tpu_custom_call.1} parent=1 // pred_region
      %93 = vsyncadd [#allocation12], 0
      %s95 = sshll.u32 %s6, 4
      %s96 = int_to_ptr.hbm [resolvable:$true] %s95
      %s97 = sshll.u32 [#allocation13], 4
      %s98 = int_to_ptr.vmem [resolvable:$true] %s97
      %100 = dma.hbm_to_vmem [thread:$0]  %s96, 128, %s98, [#allocation12]
    $region29: #{tpu_custom_call.1} parent=1 // pred_fallthru
      _
    // Predicated region
    $region30: #{tpu_custom_call.1} parent=1 // pred_check
      _
    $region31: #{tpu_custom_call.1} parent=1 // pred_check_branch
      %102 = sbr.rel (0) target = $region33
    $region32: #{tpu_custom_call.1} parent=1 // pred_region
      %104 = vsyncadd [#allocation15], 0
      %s105 = sshll.u32 %s7, 4
      %s106 = int_to_ptr.hbm [resolvable:$true] %s105
      %s107 = sshll.u32 [#allocation14], 4
      %s108 = int_to_ptr.vmem [resolvable:$true] %s107
      %113 = dma.hbm_to_vmem [thread:$0]  %s106, 8192, %s108, [#allocation15], 64, 64, 4
    $region33: #{tpu_custom_call.1} parent=1 // pred_fallthru
      _
    // Predicated region
    $region34: #{tpu_custom_call.1} parent=1 // pred_check
      _
    $region35: #{tpu_custom_call.1} parent=1 // pred_check_branch
      %115 = sbr.rel (0) target = $region37
    $region36: #{tpu_custom_call.1} parent=1 // pred_region
      %117 = vsyncadd [#allocation15], 0
      %s119 = sshll.u32 %s8, 4
      %s120 = int_to_ptr.hbm [resolvable:$true] %s119
      %s121 = sshll.u32 [#allocation16], 4
      %s122 = int_to_ptr.vmem [resolvable:$true] %s121
      %124 = dma.hbm_to_vmem [thread:$0]  %s120, 16, %s122, [#allocation15]
    $region37: #{tpu_custom_call.1} parent=1 // pred_fallthru
      _
    // Predicated region
    $region38: #{tpu_custom_call.1} parent=1 // pred_check
      _
    $region39: #{tpu_custom_call.1} parent=1 // pred_check_branch
      %126 = sbr.rel (0) target = $region41
    $region40: #{tpu_custom_call.1} parent=1 // pred_region
      %128 = dma.done [#allocation3], 64
    $region41: #{tpu_custom_call.1} parent=1 // pred_fallthru
      _
    // Predicated region
    $region42: #{tpu_custom_call.1} parent=1 // pred_check
      _
    $region43: #{tpu_custom_call.1} parent=1 // pred_check_branch
      %130 = sbr.rel (0) target = $region45
    $region44: #{tpu_custom_call.1} parent=1 // pred_region
      %132 = dma.done [#allocation6], 64
    $region45: #{tpu_custom_call.1} parent=1 // pred_fallthru
      _
    // Predicated region
    $region46: #{tpu_custom_call.1} parent=1 // pred_check
      _
    $region47: #{tpu_custom_call.1} parent=1 // pred_check_branch
      %134 = sbr.rel (0) target = $region49
    $region48: #{tpu_custom_call.1} parent=1 // pred_region
      %136 = dma.done [#allocation6], 64
    $region49: #{tpu_custom_call.1} parent=1 // pred_fallthru
      _
    // Predicated region
    $region50: #{tpu_custom_call.1} parent=1 // pred_check
      _
    $region51: #{tpu_custom_call.1} parent=1 // pred_check_branch
      %138 = sbr.rel (0) target = $region53
    $region52: #{tpu_custom_call.1} parent=1 // pred_region
      %140 = dma.done [#allocation9], 2048
    $region53: #{tpu_custom_call.1} parent=1 // pred_fallthru
      _
    // Predicated region
    $region54: #{tpu_custom_call.1} parent=1 // pred_check
      _
    $region55: #{tpu_custom_call.1} parent=1 // pred_check_branch
      %142 = sbr.rel (0) target = $region57
    $region56: #{tpu_custom_call.1} parent=1 // pred_region
      %144 = dma.done [#allocation9], 128
    $region57: #{tpu_custom_call.1} parent=1 // pred_fallthru
      _
    // Predicated region
    $region58: #{tpu_custom_call.1} parent=1 // pred_check
      _
    $region59: #{tpu_custom_call.1} parent=1 // pred_check_branch
      %146 = sbr.rel (0) target = $region61
    $region60: #{tpu_custom_call.1} parent=1 // pred_region
      %148 = dma.done [#allocation12], 65536
    $region61: #{tpu_custom_call.1} parent=1 // pred_fallthru
      _
    // Predicated region
    $region62: #{tpu_custom_call.1} parent=1 // pred_check
      _
    $region63: #{tpu_custom_call.1} parent=1 // pred_check_branch
      %150 = sbr.rel (0) target = $region65
    $region64: #{tpu_custom_call.1} parent=1 // pred_region
      %152 = dma.done [#allocation12], 128
    $region65: #{tpu_custom_call.1} parent=1 // pred_fallthru
      _
    // Predicated region
    $region66: #{tpu_custom_call.1} parent=1 // pred_check
      _
    $region67: #{tpu_custom_call.1} parent=1 // pred_check_branch
      %154 = sbr.rel (0) target = $region69
    $region68: #{tpu_custom_call.1} parent=1 // pred_region
      %156 = dma.done [#allocation15], 8192
    $region69: #{tpu_custom_call.1} parent=1 // pred_fallthru
      _
    // Predicated region
    $region70: #{tpu_custom_call.1} parent=1 // pred_check
      _
    $region71: #{tpu_custom_call.1} parent=1 // pred_check_branch
      %158 = sbr.rel (0) target = $region73
    $region72: #{tpu_custom_call.1} parent=1 // pred_region
      %160 = dma.done [#allocation15], 16
    $region73: #{tpu_custom_call.1} parent=1 // pred_fallthru
      _
    %v162 = vld [vmem:[#allocation2] sm:$0xf]
    %v163 = vpack.c.bf16 %v162, %v162
    %v164 = vld [vmem:[#allocation8] sm:$0xff]
    %v165 = vld [vmem:[#allocation8 + $0x8] sm:$0xff]
    %v166 = vld [vmem:[#allocation8 + $0x10] sm:$0xff]
    %v167 = vld [vmem:[#allocation8 + $0x18] sm:$0xff]
    %v168 = vld [vmem:[#allocation8 + $0x20] sm:$0xff]
    %v169 = vld [vmem:[#allocation8 + $0x28] sm:$0xff]
    %v170 = vld [vmem:[#allocation8 + $0x30] sm:$0xff]
    %v171 = vld [vmem:[#allocation8 + $0x38] sm:$0xff]
    %v172 = vld [vmem:[#allocation8 + $0x40] sm:$0xff]
    %v173 = vld [vmem:[#allocation8 + $0x48] sm:$0xff]
    %v174 = vld [vmem:[#allocation8 + $0x50] sm:$0xff]
    %v175 = vld [vmem:[#allocation8 + $0x58] sm:$0xff]
    %v176 = vld [vmem:[#allocation8 + $0x60] sm:$0xff]
    %v177 = vld [vmem:[#allocation8 + $0x68] sm:$0xff]
    %v178 = vld [vmem:[#allocation8 + $0x70] sm:$0xff]
    %v179 = vld [vmem:[#allocation8 + $0x78] sm:$0xff]
    %v180 = vld [vmem:[#allocation10] sm:$0xff]
    %v182 = vperm.slane %v180, 0
    %v183 = vperm.slane %v180, 1
    %v184 = vperm.slane %v180, 2
    %v185 = vperm.slane %v180, 3
    %v186 = vperm.slane %v180, 4
    %v187 = vperm.slane %v180, 5
    %v188 = vperm.slane %v180, 6
    %v189 = vperm.slane %v180, 7
    %v214 = vunpack.c.l.b16 %v164
    %v215 = vunpack.c.h.b16 %v164
    %v216 = vunpack.c.l.b16 %v165
    %v217 = vunpack.c.h.b16 %v165
    %v218 = vunpack.c.l.b16 %v166
    %v219 = vunpack.c.h.b16 %v166
    %v220 = vunpack.c.l.b16 %v167
    %v221 = vunpack.c.h.b16 %v167
    %v222 = vunpack.c.l.b16 %v168
    %v223 = vunpack.c.h.b16 %v168
    %v224 = vunpack.c.l.b16 %v169
    %v225 = vunpack.c.h.b16 %v169
    %v226 = vunpack.c.l.b16 %v170
    %v227 = vunpack.c.h.b16 %v170
    %v228 = vunpack.c.l.b16 %v171
    %v229 = vunpack.c.h.b16 %v171
    %v230 = vunpack.c.l.b16 %v172
    %v231 = vunpack.c.h.b16 %v172
    %v232 = vunpack.c.l.b16 %v173
    %v233 = vunpack.c.h.b16 %v173
    %v234 = vunpack.c.l.b16 %v174
    %v235 = vunpack.c.h.b16 %v174
    %v236 = vunpack.c.l.b16 %v175
    %v237 = vunpack.c.h.b16 %v175
    %v238 = vunpack.c.l.b16 %v176
    %v239 = vunpack.c.h.b16 %v176
    %v240 = vunpack.c.l.b16 %v177
    %v241 = vunpack.c.h.b16 %v177
    %v242 = vunpack.c.l.b16 %v178
    %v243 = vunpack.c.h.b16 %v178
    %v244 = vunpack.c.l.b16 %v179
    %v245 = vunpack.c.h.b16 %v179
    %v246 = vpack.c.b16 %v222, %v214
    %v247 = vpack.c.b16 %v223, %v215
    %v248 = vpack.c.b16 %v224, %v216
    %v249 = vpack.c.b16 %v225, %v217
    %v250 = vpack.c.b16 %v226, %v218
    %v251 = vpack.c.b16 %v227, %v219
    %v252 = vpack.c.b16 %v228, %v220
    %v253 = vpack.c.b16 %v229, %v221
    %v254 = vpack.c.b16 %v238, %v230
    %v255 = vpack.c.b16 %v239, %v231
    %v256 = vpack.c.b16 %v240, %v232
    %v257 = vpack.c.b16 %v241, %v233
    %v258 = vpack.c.b16 %v242, %v234
    %v259 = vpack.c.b16 %v243, %v235
    %v260 = vpack.c.b16 %v244, %v236
    %v261 = vpack.c.b16 %v245, %v237
    %vm278 = vcmask 261120
    %v280 = vsel %vm278, %v163, 0
    %282 = vmatpush.bf16.msra.mxu0 0
    %283 = vmatpush.bf16.msra.mxu0 0
    %284 = vmatpush.bf16.msra.mxu0 0
    %285 = vmatpush.bf16.msra.mxu0 0
    %286 = vmatpush.bf16.msra.mxu0 0
    %287 = vmatpush.bf16.msra.mxu0 0
    %288 = vmatpush.bf16.msra.mxu0 %v254
    %289 = vmatpush.bf16.msra.mxu0 %v246
    %290 = vmatmul.bf16.gmra.mxu0 %v280
    %v291 = vpop.f32.mrf.mxu0
    %v292 = vadd.f32 %v182, %v291
    %v293 = vpop.f32.mrf.mxu0
    %294 = vdwg.mxu0
    %295 = vmatpush.bf16.msra.mxu0 0
    %296 = vmatpush.bf16.msra.mxu0 0
    %297 = vmatpush.bf16.msra.mxu0 0
    %298 = vmatpush.bf16.msra.mxu0 0
    %299 = vmatpush.bf16.msra.mxu0 0
    %300 = vmatpush.bf16.msra.mxu0 0
    %301 = vmatpush.bf16.msra.mxu0 %v255
    %302 = vmatpush.bf16.msra.mxu0 %v247
    %303 = vmatmul.bf16.gmra.mxu0 %v280
    %v304 = vpop.f32.mrf.mxu0
    %v305 = vadd.f32 %v183, %v304
    %v306 = vpop.f32.mrf.mxu0
    %307 = vdwg.mxu0
    %308 = vmatpush.bf16.msra.mxu0 0
    %309 = vmatpush.bf16.msra.mxu0 0
    %310 = vmatpush.bf16.msra.mxu0 0
    %311 = vmatpush.bf16.msra.mxu0 0
    %312 = vmatpush.bf16.msra.mxu0 0
    %313 = vmatpush.bf16.msra.mxu0 0
    %314 = vmatpush.bf16.msra.mxu0 %v256
    %315 = vmatpush.bf16.msra.mxu0 %v248
    %316 = vmatmul.bf16.gmra.mxu0 %v280
    %v317 = vpop.f32.mrf.mxu0
    %v318 = vadd.f32 %v184, %v317
    %v319 = vpop.f32.mrf.mxu0
    %320 = vdwg.mxu0
    %321 = vmatpush.bf16.msra.mxu0 0
    %322 = vmatpush.bf16.msra.mxu0 0
    %323 = vmatpush.bf16.msra.mxu0 0
    %324 = vmatpush.bf16.msra.mxu0 0
    %325 = vmatpush.bf16.msra.mxu0 0
    %326 = vmatpush.bf16.msra.mxu0 0
    %327 = vmatpush.bf16.msra.mxu0 %v257
    %328 = vmatpush.bf16.msra.mxu0 %v249
    %329 = vmatmul.bf16.gmra.mxu0 %v280
    %v330 = vpop.f32.mrf.mxu0
    %v331 = vadd.f32 %v185, %v330
    %v332 = vpop.f32.mrf.mxu0
    %333 = vdwg.mxu0
    %334 = vmatpush.bf16.msra.mxu0 0
    %335 = vmatpush.bf16.msra.mxu0 0
    %336 = vmatpush.bf16.msra.mxu0 0
    %337 = vmatpush.bf16.msra.mxu0 0
    %338 = vmatpush.bf16.msra.mxu0 0
    %339 = vmatpush.bf16.msra.mxu0 0
    %340 = vmatpush.bf16.msra.mxu0 %v258
    %341 = vmatpush.bf16.msra.mxu0 %v250
    %342 = vmatmul.bf16.gmra.mxu0 %v280
    %v343 = vpop.f32.mrf.mxu0
    %v344 = vadd.f32 %v186, %v343
    %v345 = vpop.f32.mrf.mxu0
    %346 = vdwg.mxu0
    %347 = vmatpush.bf16.msra.mxu0 0
    %348 = vmatpush.bf16.msra.mxu0 0
    %349 = vmatpush.bf16.msra.mxu0 0
    %350 = vmatpush.bf16.msra.mxu0 0
    %351 = vmatpush.bf16.msra.mxu0 0
    %352 = vmatpush.bf16.msra.mxu0 0
    %353 = vmatpush.bf16.msra.mxu0 %v259
    %354 = vmatpush.bf16.msra.mxu0 %v251
    %355 = vmatmul.bf16.gmra.mxu0 %v280
    %v356 = vpop.f32.mrf.mxu0
    %v357 = vadd.f32 %v187, %v356
    %v358 = vpop.f32.mrf.mxu0
    %359 = vdwg.mxu0
    %360 = vmatpush.bf16.msra.mxu0 0
    %361 = vmatpush.bf16.msra.mxu0 0
    %362 = vmatpush.bf16.msra.mxu0 0
    %363 = vmatpush.bf16.msra.mxu0 0
    %364 = vmatpush.bf16.msra.mxu0 0
    %365 = vmatpush.bf16.msra.mxu0 0
    %366 = vmatpush.bf16.msra.mxu0 %v260
    %367 = vmatpush.bf16.msra.mxu0 %v252
    %368 = vmatmul.bf16.gmra.mxu0 %v280
    %v369 = vpop.f32.mrf.mxu0
    %v370 = vadd.f32 %v188, %v369
    %v371 = vpop.f32.mrf.mxu0
    %372 = vdwg.mxu0
    %373 = vmatpush.bf16.msra.mxu0 0
    %374 = vmatpush.bf16.msra.mxu0 0
    %375 = vmatpush.bf16.msra.mxu0 0
    %376 = vmatpush.bf16.msra.mxu0 0
    %377 = vmatpush.bf16.msra.mxu0 0
    %378 = vmatpush.bf16.msra.mxu0 0
    %379 = vmatpush.bf16.msra.mxu0 %v261
    %380 = vmatpush.bf16.msra.mxu0 %v253
    %381 = vmatmul.bf16.gmra.mxu0 %v280
    %v382 = vpop.f32.mrf.mxu0
    %v383 = vadd.f32 %v189, %v382
    %v384 = vpop.f32.mrf.mxu0
    %385 = vdwg.mxu0
    %v386 = vmax.f32 %v292, 0.0
    %v387 = vmax.f32 %v305, 0.0
    %v388 = vmax.f32 %v318, 0.0
    %v389 = vmax.f32 %v331, 0.0
    %v390 = vmax.f32 %v344, 0.0
    %v391 = vmax.f32 %v357, 0.0
    %v392 = vmax.f32 %v370, 0.0
    %v393 = vmax.f32 %v383, 0.0
    %v394 = vpack.c.bf16 %v386, %v386
    %v395 = vpack.c.bf16 %v387, %v387
    %v396 = vpack.c.bf16 %v388, %v388
    %v397 = vpack.c.bf16 %v389, %v389
    %v398 = vpack.c.bf16 %v390, %v390
    %v399 = vpack.c.bf16 %v391, %v391
    %v400 = vpack.c.bf16 %v392, %v392
    %v401 = vpack.c.bf16 %v393, %v393
    %v402 = vld [vmem:[#allocation11] sm:$0xff]
    %v403 = vld [vmem:[#allocation11 + $0x8] sm:$0xff]
    %v404 = vld [vmem:[#allocation11 + $0x10] sm:$0xff]
    %v405 = vld [vmem:[#allocation11 + $0x18] sm:$0xff]
    %v406 = vld [vmem:[#allocation11 + $0x20] sm:$0xff]
    %v407 = vld [vmem:[#allocation11 + $0x28] sm:$0xff]
    %v408 = vld [vmem:[#allocation11 + $0x30] sm:$0xff]
    %v409 = vld [vmem:[#allocation11 + $0x38] sm:$0xff]
    %v410 = vld [vmem:[#allocation11 + $0x40] sm:$0xff]
    %v411 = vld [vmem:[#allocation11 + $0x48] sm:$0xff]
    %v412 = vld [vmem:[#allocation11 + $0x50] sm:$0xff]
    %v413 = vld [vmem:[#allocation11 + $0x58] sm:$0xff]
    %v414 = vld [vmem:[#allocation11 + $0x60] sm:$0xff]
    %v415 = vld [vmem:[#allocation11 + $0x68] sm:$0xff]
    %v416 = vld [vmem:[#allocation11 + $0x70] sm:$0xff]
    %v417 = vld [vmem:[#allocation11 + $0x78] sm:$0xff]
    %v418 = vld [vmem:[#allocation11 + $0x80] sm:$0xff]
    %v419 = vld [vmem:[#allocation11 + $0x88] sm:$0xff]
    %v420 = vld [vmem:[#allocation11 + $0x90] sm:$0xff]
    %v421 = vld [vmem:[#allocation11 + $0x98] sm:$0xff]
    %v422 = vld [vmem:[#allocation11 + $0xa0] sm:$0xff]
    %v423 = vld [vmem:[#allocation11 + $0xa8] sm:$0xff]
    %v424 = vld [vmem:[#allocation11 + $0xb0] sm:$0xff]
    %v425 = vld [vmem:[#allocation11 + $0xb8] sm:$0xff]
    %v426 = vld [vmem:[#allocation11 + $0xc0] sm:$0xff]
    %v427 = vld [vmem:[#allocation11 + $0xc8] sm:$0xff]
    %v428 = vld [vmem:[#allocation11 + $0xd0] sm:$0xff]
    %v429 = vld [vmem:[#allocation11 + $0xd8] sm:$0xff]
    %v430 = vld [vmem:[#allocation11 + $0xe0] sm:$0xff]
    %v431 = vld [vmem:[#allocation11 + $0xe8] sm:$0xff]
    %v432 = vld [vmem:[#allocation11 + $0xf0] sm:$0xff]
    %v433 = vld [vmem:[#allocation11 + $0xf8] sm:$0xff]
    %v434 = vld [vmem:[#allocation11 + $0x100] sm:$0xff]
    %v435 = vld [vmem:[#allocation11 + $0x108] sm:$0xff]
    %v436 = vld [vmem:[#allocation11 + $0x110] sm:$0xff]
    %v437 = vld [vmem:[#allocation11 + $0x118] sm:$0xff]
    %v438 = vld [vmem:[#allocation11 + $0x120] sm:$0xff]
    %v439 = vld [vmem:[#allocation11 + $0x128] sm:$0xff]
    %v440 = vld [vmem:[#allocation11 + $0x130] sm:$0xff]
    %v441 = vld [vmem:[#allocation11 + $0x138] sm:$0xff]
    %v442 = vld [vmem:[#allocation11 + $0x140] sm:$0xff]
    %v443 = vld [vmem:[#allocation11 + $0x148] sm:$0xff]
    %v444 = vld [vmem:[#allocation11 + $0x150] sm:$0xff]
    %v445 = vld [vmem:[#allocation11 + $0x158] sm:$0xff]
    %v446 = vld [vmem:[#allocation11 + $0x160] sm:$0xff]
    %v447 = vld [vmem:[#allocation11 + $0x168] sm:$0xff]
    %v448 = vld [vmem:[#allocation11 + $0x170] sm:$0xff]
    %v449 = vld [vmem:[#allocation11 + $0x178] sm:$0xff]
    %v450 = vld [vmem:[#allocation11 + $0x180] sm:$0xff]
    %v451 = vld [vmem:[#allocation11 + $0x188] sm:$0xff]
    %v452 = vld [vmem:[#allocation11 + $0x190] sm:$0xff]
    %v453 = vld [vmem:[#allocation11 + $0x198] sm:$0xff]
    %v454 = vld [vmem:[#allocation11 + $0x1a0] sm:$0xff]
    %v455 = vld [vmem:[#allocation11 + $0x1a8] sm:$0xff]
    %v456 = vld [vmem:[#allocation11 + $0x1b0] sm:$0xff]
    %v457 = vld [vmem:[#allocation11 + $0x1b8] sm:$0xff]
    %v458 = vld [vmem:[#allocation11 + $0x1c0] sm:$0xff]
    %v459 = vld [vmem:[#allocation11 + $0x1c8] sm:$0xff]
    %v460 = vld [vmem:[#allocation11 + $0x1d0] sm:$0xff]
    %v461 = vld [vmem:[#allocation11 + $0x1d8] sm:$0xff]
    %v462 = vld [vmem:[#allocation11 + $0x1e0] sm:$0xff]
    %v463 = vld [vmem:[#allocation11 + $0x1e8] sm:$0xff]
    %v464 = vld [vmem:[#allocation11 + $0x1f0] sm:$0xff]
    %v465 = vld [vmem:[#allocation11 + $0x1f8] sm:$0xff]
    %v466 = vld [vmem:[#allocation11 + $0x200] sm:$0xff]
    %v467 = vld [vmem:[#allocation11 + $0x208] sm:$0xff]
    %v468 = vld [vmem:[#allocation11 + $0x210] sm:$0xff]
    %v469 = vld [vmem:[#allocation11 + $0x218] sm:$0xff]
    %v470 = vld [vmem:[#allocation11 + $0x220] sm:$0xff]
    %v471 = vld [vmem:[#allocation11 + $0x228] sm:$0xff]
    %v472 = vld [vmem:[#allocation11 + $0x230] sm:$0xff]
    %v473 = vld [vmem:[#allocation11 + $0x238] sm:$0xff]
    %v474 = vld [vmem:[#allocation11 + $0x240] sm:$0xff]
    %v475 = vld [vmem:[#allocation11 + $0x248] sm:$0xff]
    %v476 = vld [vmem:[#allocation11 + $0x250] sm:$0xff]
    %v477 = vld [vmem:[#allocation11 + $0x258] sm:$0xff]
    %v478 = vld [vmem:[#allocation11 + $0x260] sm:$0xff]
    %v479 = vld [vmem:[#allocation11 + $0x268] sm:$0xff]
    %v480 = vld [vmem:[#allocation11 + $0x270] sm:$0xff]
    %v481 = vld [vmem:[#allocation11 + $0x278] sm:$0xff]
    %v482 = vld [vmem:[#allocation11 + $0x280] sm:$0xff]
    %v483 = vld [vmem:[#allocation11 + $0x288] sm:$0xff]
    %v484 = vld [vmem:[#allocation11 + $0x290] sm:$0xff]
    %v485 = vld [vmem:[#allocation11 + $0x298] sm:$0xff]
    %v486 = vld [vmem:[#allocation11 + $0x2a0] sm:$0xff]
    %v487 = vld [vmem:[#allocation11 + $0x2a8] sm:$0xff]
    %v488 = vld [vmem:[#allocation11 + $0x2b0] sm:$0xff]
    %v489 = vld [vmem:[#allocation11 + $0x2b8] sm:$0xff]
    %v490 = vld [vmem:[#allocation11 + $0x2c0] sm:$0xff]
    %v491 = vld [vmem:[#allocation11 + $0x2c8] sm:$0xff]
    %v492 = vld [vmem:[#allocation11 + $0x2d0] sm:$0xff]
    %v493 = vld [vmem:[#allocation11 + $0x2d8] sm:$0xff]
    %v494 = vld [vmem:[#allocation11 + $0x2e0] sm:$0xff]
    %v495 = vld [vmem:[#allocation11 + $0x2e8] sm:$0xff]
    %v496 = vld [vmem:[#allocation11 + $0x2f0] sm:$0xff]
    %v497 = vld [vmem:[#allocation11 + $0x2f8] sm:$0xff]
    %v498 = vld [vmem:[#allocation11 + $0x300] sm:$0xff]
    %v499 = vld [vmem:[#allocation11 + $0x308] sm:$0xff]
    %v500 = vld [vmem:[#allocation11 + $0x310] sm:$0xff]
    %v501 = vld [vmem:[#allocation11 + $0x318] sm:$0xff]
    %v502 = vld [vmem:[#allocation11 + $0x320] sm:$0xff]
    %v503 = vld [vmem:[#allocation11 + $0x328] sm:$0xff]
    %v504 = vld [vmem:[#allocation11 + $0x330] sm:$0xff]
    %v505 = vld [vmem:[#allocation11 + $0x338] sm:$0xff]
    %v506 = vld [vmem:[#allocation11 + $0x340] sm:$0xff]
    %v507 = vld [vmem:[#allocation11 + $0x348] sm:$0xff]
    %v508 = vld [vmem:[#allocation11 + $0x350] sm:$0xff]
    %v509 = vld [vmem:[#allocation11 + $0x358] sm:$0xff]
    %v510 = vld [vmem:[#allocation11 + $0x360] sm:$0xff]
    %v511 = vld [vmem:[#allocation11 + $0x368] sm:$0xff]
    %v512 = vld [vmem:[#allocation11 + $0x370] sm:$0xff]
    %v513 = vld [vmem:[#allocation11 + $0x378] sm:$0xff]
    %v514 = vld [vmem:[#allocation11 + $0x380] sm:$0xff]
    %v515 = vld [vmem:[#allocation11 + $0x388] sm:$0xff]
    %v516 = vld [vmem:[#allocation11 + $0x390] sm:$0xff]
    %v517 = vld [vmem:[#allocation11 + $0x398] sm:$0xff]
    %v518 = vld [vmem:[#allocation11 + $0x3a0] sm:$0xff]
    %v519 = vld [vmem:[#allocation11 + $0x3a8] sm:$0xff]
    %v520 = vld [vmem:[#allocation11 + $0x3b0] sm:$0xff]
    %v521 = vld [vmem:[#allocation11 + $0x3b8] sm:$0xff]
    %v522 = vld [vmem:[#allocation11 + $0x3c0] sm:$0xff]
    %v523 = vld [vmem:[#allocation11 + $0x3c8] sm:$0xff]
    %v524 = vld [vmem:[#allocation11 + $0x3d0] sm:$0xff]
    %v525 = vld [vmem:[#allocation11 + $0x3d8] sm:$0xff]
    %v526 = vld [vmem:[#allocation11 + $0x3e0] sm:$0xff]
    %v527 = vld [vmem:[#allocation11 + $0x3e8] sm:$0xff]
    %v528 = vld [vmem:[#allocation11 + $0x3f0] sm:$0xff]
    %v529 = vld [vmem:[#allocation11 + $0x3f8] sm:$0xff]
    %v530 = vld [vmem:[#allocation11 + $0x400] sm:$0xff]
    %v531 = vld [vmem:[#allocation11 + $0x408] sm:$0xff]
    %v532 = vld [vmem:[#allocation11 + $0x410] sm:$0xff]
    %v533 = vld [vmem:[#allocation11 + $0x418] sm:$0xff]
    %v534 = vld [vmem:[#allocation11 + $0x420] sm:$0xff]
    %v535 = vld [vmem:[#allocation11 + $0x428] sm:$0xff]
    %v536 = vld [vmem:[#allocation11 + $0x430] sm:$0xff]
    %v537 = vld [vmem:[#allocation11 + $0x438] sm:$0xff]
    %v538 = vld [vmem:[#allocation11 + $0x440] sm:$0xff]
    %v539 = vld [vmem:[#allocation11 + $0x448] sm:$0xff]
    %v540 = vld [vmem:[#allocation11 + $0x450] sm:$0xff]
    %v541 = vld [vmem:[#allocation11 + $0x458] sm:$0xff]
    %v542 = vld [vmem:[#allocation11 + $0x460] sm:$0xff]
    %v543 = vld [vmem:[#allocation11 + $0x468] sm:$0xff]
    %v544 = vld [vmem:[#allocation11 + $0x470] sm:$0xff]
    %v545 = vld [vmem:[#allocation11 + $0x478] sm:$0xff]
    %v546 = vld [vmem:[#allocation11 + $0x480] sm:$0xff]
    %v547 = vld [vmem:[#allocation11 + $0x488] sm:$0xff]
    %v548 = vld [vmem:[#allocation11 + $0x490] sm:$0xff]
    %v549 = vld [vmem:[#allocation11 + $0x498] sm:$0xff]
    %v550 = vld [vmem:[#allocation11 + $0x4a0] sm:$0xff]
    %v551 = vld [vmem:[#allocation11 + $0x4a8] sm:$0xff]
    %v552 = vld [vmem:[#allocation11 + $0x4b0] sm:$0xff]
    %v553 = vld [vmem:[#allocation11 + $0x4b8] sm:$0xff]
    %v554 = vld [vmem:[#allocation11 + $0x4c0] sm:$0xff]
    %v555 = vld [vmem:[#allocation11 + $0x4c8] sm:$0xff]
    %v556 = vld [vmem:[#allocation11 + $0x4d0] sm:$0xff]
    %v557 = vld [vmem:[#allocation11 + $0x4d8] sm:$0xff]
    %v558 = vld [vmem:[#allocation11 + $0x4e0] sm:$0xff]
    %v559 = vld [vmem:[#allocation11 + $0x4e8] sm:$0xff]
    %v560 = vld [vmem:[#allocation11 + $0x4f0] sm:$0xff]
    %v561 = vld [vmem:[#allocation11 + $0x4f8] sm:$0xff]
    %v562 = vld [vmem:[#allocation11 + $0x500] sm:$0xff]
    %v563 = vld [vmem:[#allocation11 + $0x508] sm:$0xff]
    %v564 = vld [vmem:[#allocation11 + $0x510] sm:$0xff]
    %v565 = vld [vmem:[#allocation11 + $0x518] sm:$0xff]
    %v566 = vld [vmem:[#allocation11 + $0x520] sm:$0xff]
    %v567 = vld [vmem:[#allocation11 + $0x528] sm:$0xff]
    %v568 = vld [vmem:[#allocation11 + $0x530] sm:$0xff]
    %v569 = vld [vmem:[#allocation11 + $0x538] sm:$0xff]
    %v570 = vld [vmem:[#allocation11 + $0x540] sm:$0xff]
    %v571 = vld [vmem:[#allocation11 + $0x548] sm:$0xff]
    %v572 = vld [vmem:[#allocation11 + $0x550] sm:$0xff]
    %v573 = vld [vmem:[#allocation11 + $0x558] sm:$0xff]
    %v574 = vld [vmem:[#allocation11 + $0x560] sm:$0xff]
    %v575 = vld [vmem:[#allocation11 + $0x568] sm:$0xff]
    %v576 = vld [vmem:[#allocation11 + $0x570] sm:$0xff]
    %v577 = vld [vmem:[#allocation11 + $0x578] sm:$0xff]
    %v578 = vld [vmem:[#allocation11 + $0x580] sm:$0xff]
    %v579 = vld [vmem:[#allocation11 + $0x588] sm:$0xff]
    %v580 = vld [vmem:[#allocation11 + $0x590] sm:$0xff]
    %v581 = vld [vmem:[#allocation11 + $0x598] sm:$0xff]
    %v582 = vld [vmem:[#allocation11 + $0x5a0] sm:$0xff]
    %v583 = vld [vmem:[#allocation11 + $0x5a8] sm:$0xff]
    %v584 = vld [vmem:[#allocation11 + $0x5b0] sm:$0xff]
    %v585 = vld [vmem:[#allocation11 + $0x5b8] sm:$0xff]
    %v586 = vld [vmem:[#allocation11 + $0x5c0] sm:$0xff]
    %v587 = vld [vmem:[#allocation11 + $0x5c8] sm:$0xff]
    %v588 = vld [vmem:[#allocation11 + $0x5d0] sm:$0xff]
    %v589 = vld [vmem:[#allocation11 + $0x5d8] sm:$0xff]
    %v590 = vld [vmem:[#allocation11 + $0x5e0] sm:$0xff]
    %v591 = vld [vmem:[#allocation11 + $0x5e8] sm:$0xff]
    %v592 = vld [vmem:[#allocation11 + $0x5f0] sm:$0xff]
    %v593 = vld [vmem:[#allocation11 + $0x5f8] sm:$0xff]
    %v594 = vld [vmem:[#allocation11 + $0x600] sm:$0xff]
    %v595 = vld [vmem:[#allocation11 + $0x608] sm:$0xff]
    %v596 = vld [vmem:[#allocation11 + $0x610] sm:$0xff]
    %v597 = vld [vmem:[#allocation11 + $0x618] sm:$0xff]
    %v598 = vld [vmem:[#allocation11 + $0x620] sm:$0xff]
    %v599 = vld [vmem:[#allocation11 + $0x628] sm:$0xff]
    %v600 = vld [vmem:[#allocation11 + $0x630] sm:$0xff]
    %v601 = vld [vmem:[#allocation11 + $0x638] sm:$0xff]
    %v602 = vld [vmem:[#allocation11 + $0x640] sm:$0xff]
    %v603 = vld [vmem:[#allocation11 + $0x648] sm:$0xff]
    %v604 = vld [vmem:[#allocation11 + $0x650] sm:$0xff]
    %v605 = vld [vmem:[#allocation11 + $0x658] sm:$0xff]
    %v606 = vld [vmem:[#allocation11 + $0x660] sm:$0xff]
    %v607 = vld [vmem:[#allocation11 + $0x668] sm:$0xff]
    %v608 = vld [vmem:[#allocation11 + $0x670] sm:$0xff]
    %v609 = vld [vmem:[#allocation11 + $0x678] sm:$0xff]
    %v610 = vld [vmem:[#allocation11 + $0x680] sm:$0xff]
    %v611 = vld [vmem:[#allocation11 + $0x688] sm:$0xff]
    %v612 = vld [vmem:[#allocation11 + $0x690] sm:$0xff]
    %v613 = vld [vmem:[#allocation11 + $0x698] sm:$0xff]
    %v614 = vld [vmem:[#allocation11 + $0x6a0] sm:$0xff]
    %v615 = vld [vmem:[#allocation11 + $0x6a8] sm:$0xff]
    %v616 = vld [vmem:[#allocation11 + $0x6b0] sm:$0xff]
    %v617 = vld [vmem:[#allocation11 + $0x6b8] sm:$0xff]
    %v618 = vld [vmem:[#allocation11 + $0x6c0] sm:$0xff]
    %v619 = vld [vmem:[#allocation11 + $0x6c8] sm:$0xff]
    %v620 = vld [vmem:[#allocation11 + $0x6d0] sm:$0xff]
    %v621 = vld [vmem:[#allocation11 + $0x6d8] sm:$0xff]
    %v622 = vld [vmem:[#allocation11 + $0x6e0] sm:$0xff]
    %v623 = vld [vmem:[#allocation11 + $0x6e8] sm:$0xff]
    %v624 = vld [vmem:[#allocation11 + $0x6f0] sm:$0xff]
    %v625 = vld [vmem:[#allocation11 + $0x6f8] sm:$0xff]
    %v626 = vld [vmem:[#allocation11 + $0x700] sm:$0xff]
    %v627 = vld [vmem:[#allocation11 + $0x708] sm:$0xff]
    %v628 = vld [vmem:[#allocation11 + $0x710] sm:$0xff]
    %v629 = vld [vmem:[#allocation11 + $0x718] sm:$0xff]
    %v630 = vld [vmem:[#allocation11 + $0x720] sm:$0xff]
    %v631 = vld [vmem:[#allocation11 + $0x728] sm:$0xff]
    %v632 = vld [vmem:[#allocation11 + $0x730] sm:$0xff]
    %v633 = vld [vmem:[#allocation11 + $0x738] sm:$0xff]
    %v634 = vld [vmem:[#allocation11 + $0x740] sm:$0xff]
    %v635 = vld [vmem:[#allocation11 + $0x748] sm:$0xff]
    %v636 = vld [vmem:[#allocation11 + $0x750] sm:$0xff]
    %v637 = vld [vmem:[#allocation11 + $0x758] sm:$0xff]
    %v638 = vld [vmem:[#allocation11 + $0x760] sm:$0xff]
    %v639 = vld [vmem:[#allocation11 + $0x768] sm:$0xff]
    %v640 = vld [vmem:[#allocation11 + $0x770] sm:$0xff]
    %v641 = vld [vmem:[#allocation11 + $0x778] sm:$0xff]
    %v642 = vld [vmem:[#allocation11 + $0x780] sm:$0xff]
    %v643 = vld [vmem:[#allocation11 + $0x788] sm:$0xff]
    %v644 = vld [vmem:[#allocation11 + $0x790] sm:$0xff]
    %v645 = vld [vmem:[#allocation11 + $0x798] sm:$0xff]
    %v646 = vld [vmem:[#allocation11 + $0x7a0] sm:$0xff]
    %v647 = vld [vmem:[#allocation11 + $0x7a8] sm:$0xff]
    %v648 = vld [vmem:[#allocation11 + $0x7b0] sm:$0xff]
    %v649 = vld [vmem:[#allocation11 + $0x7b8] sm:$0xff]
    %v650 = vld [vmem:[#allocation11 + $0x7c0] sm:$0xff]
    %v651 = vld [vmem:[#allocation11 + $0x7c8] sm:$0xff]
    %v652 = vld [vmem:[#allocation11 + $0x7d0] sm:$0xff]
    %v653 = vld [vmem:[#allocation11 + $0x7d8] sm:$0xff]
    %v654 = vld [vmem:[#allocation11 + $0x7e0] sm:$0xff]
    %v655 = vld [vmem:[#allocation11 + $0x7e8] sm:$0xff]
    %v656 = vld [vmem:[#allocation11 + $0x7f0] sm:$0xff]
    %v657 = vld [vmem:[#allocation11 + $0x7f8] sm:$0xff]
    %v658 = vld [vmem:[#allocation11 + $0x800] sm:$0xff]
    %v659 = vld [vmem:[#allocation11 + $0x808] sm:$0xff]
    %v660 = vld [vmem:[#allocation11 + $0x810] sm:$0xff]
    %v661 = vld [vmem:[#allocation11 + $0x818] sm:$0xff]
    %v662 = vld [vmem:[#allocation11 + $0x820] sm:$0xff]
    %v663 = vld [vmem:[#allocation11 + $0x828] sm:$0xff]
    %v664 = vld [vmem:[#allocation11 + $0x830] sm:$0xff]
    %v665 = vld [vmem:[#allocation11 + $0x838] sm:$0xff]
    %v666 = vld [vmem:[#allocation11 + $0x840] sm:$0xff]
    %v667 = vld [vmem:[#allocation11 + $0x848] sm:$0xff]
    %v668 = vld [vmem:[#allocation11 + $0x850] sm:$0xff]
    %v669 = vld [vmem:[#allocation11 + $0x858] sm:$0xff]
    %v670 = vld [vmem:[#allocation11 + $0x860] sm:$0xff]
    %v671 = vld [vmem:[#allocation11 + $0x868] sm:$0xff]
    %v672 = vld [vmem:[#allocation11 + $0x870] sm:$0xff]
    %v673 = vld [vmem:[#allocation11 + $0x878] sm:$0xff]
    %v674 = vld [vmem:[#allocation11 + $0x880] sm:$0xff]
    %v675 = vld [vmem:[#allocation11 + $0x888] sm:$0xff]
    %v676 = vld [vmem:[#allocation11 + $0x890] sm:$0xff]
    %v677 = vld [vmem:[#allocation11 + $0x898] sm:$0xff]
    %v678 = vld [vmem:[#allocation11 + $0x8a0] sm:$0xff]
    %v679 = vld [vmem:[#allocation11 + $0x8a8] sm:$0xff]
    %v680 = vld [vmem:[#allocation11 + $0x8b0] sm:$0xff]
    %v681 = vld [vmem:[#allocation11 + $0x8b8] sm:$0xff]
    %v682 = vld [vmem:[#allocation11 + $0x8c0] sm:$0xff]
    %v683 = vld [vmem:[#allocation11 + $0x8c8] sm:$0xff]
    %v684 = vld [vmem:[#allocation11 + $0x8d0] sm:$0xff]
    %v685 = vld [vmem:[#allocation11 + $0x8d8] sm:$0xff]
    %v686 = vld [vmem:[#allocation11 + $0x8e0] sm:$0xff]
    %v687 = vld [vmem:[#allocation11 + $0x8e8] sm:$0xff]
    %v688 = vld [vmem:[#allocation11 + $0x8f0] sm:$0xff]
    %v689 = vld [vmem:[#allocation11 + $0x8f8] sm:$0xff]
    %v690 = vld [vmem:[#allocation11 + $0x900] sm:$0xff]
    %v691 = vld [vmem:[#allocation11 + $0x908] sm:$0xff]
    %v692 = vld [vmem:[#allocation11 + $0x910] sm:$0xff]
    %v693 = vld [vmem:[#allocation11 + $0x918] sm:$0xff]
    %v694 = vld [vmem:[#allocation11 + $0x920] sm:$0xff]
    %v695 = vld [vmem:[#allocation11 + $0x928] sm:$0xff]
    %v696 = vld [vmem:[#allocation11 + $0x930] sm:$0xff]
    %v697 = vld [vmem:[#allocation11 + $0x938] sm:$0xff]
    %v698 = vld [vmem:[#allocation11 + $0x940] sm:$0xff]
    %v699 = vld [vmem:[#allocation11 + $0x948] sm:$0xff]
    %v700 = vld [vmem:[#allocation11 + $0x950] sm:$0xff]
    %v701 = vld [vmem:[#allocation11 + $0x958] sm:$0xff]
    %v702 = vld [vmem:[#allocation11 + $0x960] sm:$0xff]
    %v703 = vld [vmem:[#allocation11 + $0x968] sm:$0xff]
    %v704 = vld [vmem:[#allocation11 + $0x970] sm:$0xff]
    %v705 = vld [vmem:[#allocation11 + $0x978] sm:$0xff]
    %v706 = vld [vmem:[#allocation11 + $0x980] sm:$0xff]
    %v707 = vld [vmem:[#allocation11 + $0x988] sm:$0xff]
    %v708 = vld [vmem:[#allocation11 + $0x990] sm:$0xff]
    %v709 = vld [vmem:[#allocation11 + $0x998] sm:$0xff]
    %v710 = vld [vmem:[#allocation11 + $0x9a0] sm:$0xff]
    %v711 = vld [vmem:[#allocation11 + $0x9a8] sm:$0xff]
    %v712 = vld [vmem:[#allocation11 + $0x9b0] sm:$0xff]
    %v713 = vld [vmem:[#allocation11 + $0x9b8] sm:$0xff]
    %v714 = vld [vmem:[#allocation11 + $0x9c0] sm:$0xff]
    %v715 = vld [vmem:[#allocation11 + $0x9c8] sm:$0xff]
    %v716 = vld [vmem:[#allocation11 + $0x9d0] sm:$0xff]
    %v717 = vld [vmem:[#allocation11 + $0x9d8] sm:$0xff]
    %v718 = vld [vmem:[#allocation11 + $0x9e0] sm:$0xff]
    %v719 = vld [vmem:[#allocation11 + $0x9e8] sm:$0xff]
    %v720 = vld [vmem:[#allocation11 + $0x9f0] sm:$0xff]
    %v721 = vld [vmem:[#allocation11 + $0x9f8] sm:$0xff]
    %v722 = vld [vmem:[#allocation11 + $0xa00] sm:$0xff]
    %v723 = vld [vmem:[#allocation11 + $0xa08] sm:$0xff]
    %v724 = vld [vmem:[#allocation11 + $0xa10] sm:$0xff]
    %v725 = vld [vmem:[#allocation11 + $0xa18] sm:$0xff]
    %v726 = vld [vmem:[#allocation11 + $0xa20] sm:$0xff]
    %v727 = vld [vmem:[#allocation11 + $0xa28] sm:$0xff]
    %v728 = vld [vmem:[#allocation11 + $0xa30] sm:$0xff]
    %v729 = vld [vmem:[#allocation11 + $0xa38] sm:$0xff]
    %v730 = vld [vmem:[#allocation11 + $0xa40] sm:$0xff]
    %v731 = vld [vmem:[#allocation11 + $0xa48] sm:$0xff]
    %v732 = vld [vmem:[#allocation11 + $0xa50] sm:$0xff]
    %v733 = vld [vmem:[#allocation11 + $0xa58] sm:$0xff]
    %v734 = vld [vmem:[#allocation11 + $0xa60] sm:$0xff]
    %v735 = vld [vmem:[#allocation11 + $0xa68] sm:$0xff]
    %v736 = vld [vmem:[#allocation11 + $0xa70] sm:$0xff]
    %v737 = vld [vmem:[#allocation11 + $0xa78] sm:$0xff]
    %v738 = vld [vmem:[#allocation11 + $0xa80] sm:$0xff]
    %v739 = vld [vmem:[#allocation11 + $0xa88] sm:$0xff]
    %v740 = vld [vmem:[#allocation11 + $0xa90] sm:$0xff]
    %v741 = vld [vmem:[#allocation11 + $0xa98] sm:$0xff]
    %v742 = vld [vmem:[#allocation11 + $0xaa0] sm:$0xff]
    %v743 = vld [vmem:[#allocation11 + $0xaa8] sm:$0xff]
    %v744 = vld [vmem:[#allocation11 + $0xab0] sm:$0xff]
    %v745 = vld [vmem:[#allocation11 + $0xab8] sm:$0xff]
    %v746 = vld [vmem:[#allocation11 + $0xac0] sm:$0xff]
    %v747 = vld [vmem:[#allocation11 + $0xac8] sm:$0xff]
    %v748 = vld [vmem:[#allocation11 + $0xad0] sm:$0xff]
    %v749 = vld [vmem:[#allocation11 + $0xad8] sm:$0xff]
    %v750 = vld [vmem:[#allocation11 + $0xae0] sm:$0xff]
    %v751 = vld [vmem:[#allocation11 + $0xae8] sm:$0xff]
    %v752 = vld [vmem:[#allocation11 + $0xaf0] sm:$0xff]
    %v753 = vld [vmem:[#allocation11 + $0xaf8] sm:$0xff]
    %v754 = vld [vmem:[#allocation11 + $0xb00] sm:$0xff]
    %v755 = vld [vmem:[#allocation11 + $0xb08] sm:$0xff]
    %v756 = vld [vmem:[#allocation11 + $0xb10] sm:$0xff]
    %v757 = vld [vmem:[#allocation11 + $0xb18] sm:$0xff]
    %v758 = vld [vmem:[#allocation11 + $0xb20] sm:$0xff]
    %v759 = vld [vmem:[#allocation11 + $0xb28] sm:$0xff]
    %v760 = vld [vmem:[#allocation11 + $0xb30] sm:$0xff]
    %v761 = vld [vmem:[#allocation11 + $0xb38] sm:$0xff]
    %v762 = vld [vmem:[#allocation11 + $0xb40] sm:$0xff]
    %v763 = vld [vmem:[#allocation11 + $0xb48] sm:$0xff]
    %v764 = vld [vmem:[#allocation11 + $0xb50] sm:$0xff]
    %v765 = vld [vmem:[#allocation11 + $0xb58] sm:$0xff]
    %v766 = vld [vmem:[#allocation11 + $0xb60] sm:$0xff]
    %v767 = vld [vmem:[#allocation11 + $0xb68] sm:$0xff]
    %v768 = vld [vmem:[#allocation11 + $0xb70] sm:$0xff]
    %v769 = vld [vmem:[#allocation11 + $0xb78] sm:$0xff]
    %v770 = vld [vmem:[#allocation11 + $0xb80] sm:$0xff]
    %v771 = vld [vmem:[#allocation11 + $0xb88] sm:$0xff]
    %v772 = vld [vmem:[#allocation11 + $0xb90] sm:$0xff]
    %v773 = vld [vmem:[#allocation11 + $0xb98] sm:$0xff]
    %v774 = vld [vmem:[#allocation11 + $0xba0] sm:$0xff]
    %v775 = vld [vmem:[#allocation11 + $0xba8] sm:$0xff]
    %v776 = vld [vmem:[#allocation11 + $0xbb0] sm:$0xff]
    %v777 = vld [vmem:[#allocation11 + $0xbb8] sm:$0xff]
    %v778 = vld [vmem:[#allocation11 + $0xbc0] sm:$0xff]
    %v779 = vld [vmem:[#allocation11 + $0xbc8] sm:$0xff]
    %v780 = vld [vmem:[#allocation11 + $0xbd0] sm:$0xff]
    %v781 = vld [vmem:[#allocation11 + $0xbd8] sm:$0xff]
    %v782 = vld [vmem:[#allocation11 + $0xbe0] sm:$0xff]
    %v783 = vld [vmem:[#allocation11 + $0xbe8] sm:$0xff]
    %v784 = vld [vmem:[#allocation11 + $0xbf0] sm:$0xff]
    %v785 = vld [vmem:[#allocation11 + $0xbf8] sm:$0xff]
    %v786 = vld [vmem:[#allocation11 + $0xc00] sm:$0xff]
    %v787 = vld [vmem:[#allocation11 + $0xc08] sm:$0xff]
    %v788 = vld [vmem:[#allocation11 + $0xc10] sm:$0xff]
    %v789 = vld [vmem:[#allocation11 + $0xc18] sm:$0xff]
    %v790 = vld [vmem:[#allocation11 + $0xc20] sm:$0xff]
    %v791 = vld [vmem:[#allocation11 + $0xc28] sm:$0xff]
    %v792 = vld [vmem:[#allocation11 + $0xc30] sm:$0xff]
    %v793 = vld [vmem:[#allocation11 + $0xc38] sm:$0xff]
    %v794 = vld [vmem:[#allocation11 + $0xc40] sm:$0xff]
    %v795 = vld [vmem:[#allocation11 + $0xc48] sm:$0xff]
    %v796 = vld [vmem:[#allocation11 + $0xc50] sm:$0xff]
    %v797 = vld [vmem:[#allocation11 + $0xc58] sm:$0xff]
    %v798 = vld [vmem:[#allocation11 + $0xc60] sm:$0xff]
    %v799 = vld [vmem:[#allocation11 + $0xc68] sm:$0xff]
    %v800 = vld [vmem:[#allocation11 + $0xc70] sm:$0xff]
    %v801 = vld [vmem:[#allocation11 + $0xc78] sm:$0xff]
    %v802 = vld [vmem:[#allocation11 + $0xc80] sm:$0xff]
    %v803 = vld [vmem:[#allocation11 + $0xc88] sm:$0xff]
    %v804 = vld [vmem:[#allocation11 + $0xc90] sm:$0xff]
    %v805 = vld [vmem:[#allocation11 + $0xc98] sm:$0xff]
    %v806 = vld [vmem:[#allocation11 + $0xca0] sm:$0xff]
    %v807 = vld [vmem:[#allocation11 + $0xca8] sm:$0xff]
    %v808 = vld [vmem:[#allocation11 + $0xcb0] sm:$0xff]
    %v809 = vld [vmem:[#allocation11 + $0xcb8] sm:$0xff]
    %v810 = vld [vmem:[#allocation11 + $0xcc0] sm:$0xff]
    %v811 = vld [vmem:[#allocation11 + $0xcc8] sm:$0xff]
    %v812 = vld [vmem:[#allocation11 + $0xcd0] sm:$0xff]
    %v813 = vld [vmem:[#allocation11 + $0xcd8] sm:$0xff]
    %v814 = vld [vmem:[#allocation11 + $0xce0] sm:$0xff]
    %v815 = vld [vmem:[#allocation11 + $0xce8] sm:$0xff]
    %v816 = vld [vmem:[#allocation11 + $0xcf0] sm:$0xff]
    %v817 = vld [vmem:[#allocation11 + $0xcf8] sm:$0xff]
    %v818 = vld [vmem:[#allocation11 + $0xd00] sm:$0xff]
    %v819 = vld [vmem:[#allocation11 + $0xd08] sm:$0xff]
    %v820 = vld [vmem:[#allocation11 + $0xd10] sm:$0xff]
    %v821 = vld [vmem:[#allocation11 + $0xd18] sm:$0xff]
    %v822 = vld [vmem:[#allocation11 + $0xd20] sm:$0xff]
    %v823 = vld [vmem:[#allocation11 + $0xd28] sm:$0xff]
    %v824 = vld [vmem:[#allocation11 + $0xd30] sm:$0xff]
    %v825 = vld [vmem:[#allocation11 + $0xd38] sm:$0xff]
    %v826 = vld [vmem:[#allocation11 + $0xd40] sm:$0xff]
    %v827 = vld [vmem:[#allocation11 + $0xd48] sm:$0xff]
    %v828 = vld [vmem:[#allocation11 + $0xd50] sm:$0xff]
    %v829 = vld [vmem:[#allocation11 + $0xd58] sm:$0xff]
    %v830 = vld [vmem:[#allocation11 + $0xd60] sm:$0xff]
    %v831 = vld [vmem:[#allocation11 + $0xd68] sm:$0xff]
    %v832 = vld [vmem:[#allocation11 + $0xd70] sm:$0xff]
    %v833 = vld [vmem:[#allocation11 + $0xd78] sm:$0xff]
    %v834 = vld [vmem:[#allocation11 + $0xd80] sm:$0xff]
    %v835 = vld [vmem:[#allocation11 + $0xd88] sm:$0xff]
    %v836 = vld [vmem:[#allocation11 + $0xd90] sm:$0xff]
    %v837 = vld [vmem:[#allocation11 + $0xd98] sm:$0xff]
    %v838 = vld [vmem:[#allocation11 + $0xda0] sm:$0xff]
    %v839 = vld [vmem:[#allocation11 + $0xda8] sm:$0xff]
    %v840 = vld [vmem:[#allocation11 + $0xdb0] sm:$0xff]
    %v841 = vld [vmem:[#allocation11 + $0xdb8] sm:$0xff]
    %v842 = vld [vmem:[#allocation11 + $0xdc0] sm:$0xff]
    %v843 = vld [vmem:[#allocation11 + $0xdc8] sm:$0xff]
    %v844 = vld [vmem:[#allocation11 + $0xdd0] sm:$0xff]
    %v845 = vld [vmem:[#allocation11 + $0xdd8] sm:$0xff]
    %v846 = vld [vmem:[#allocation11 + $0xde0] sm:$0xff]
    %v847 = vld [vmem:[#allocation11 + $0xde8] sm:$0xff]
    %v848 = vld [vmem:[#allocation11 + $0xdf0] sm:$0xff]
    %v849 = vld [vmem:[#allocation11 + $0xdf8] sm:$0xff]
    %v850 = vld [vmem:[#allocation11 + $0xe00] sm:$0xff]
    %v851 = vld [vmem:[#allocation11 + $0xe08] sm:$0xff]
    %v852 = vld [vmem:[#allocation11 + $0xe10] sm:$0xff]
    %v853 = vld [vmem:[#allocation11 + $0xe18] sm:$0xff]
    %v854 = vld [vmem:[#allocation11 + $0xe20] sm:$0xff]
    %v855 = vld [vmem:[#allocation11 + $0xe28] sm:$0xff]
    %v856 = vld [vmem:[#allocation11 + $0xe30] sm:$0xff]
    %v857 = vld [vmem:[#allocation11 + $0xe38] sm:$0xff]
    %v858 = vld [vmem:[#allocation11 + $0xe40] sm:$0xff]
    %v859 = vld [vmem:[#allocation11 + $0xe48] sm:$0xff]
    %v860 = vld [vmem:[#allocation11 + $0xe50] sm:$0xff]
    %v861 = vld [vmem:[#allocation11 + $0xe58] sm:$0xff]
    %v862 = vld [vmem:[#allocation11 + $0xe60] sm:$0xff]
    %v863 = vld [vmem:[#allocation11 + $0xe68] sm:$0xff]
    %v864 = vld [vmem:[#allocation11 + $0xe70] sm:$0xff]
    %v865 = vld [vmem:[#allocation11 + $0xe78] sm:$0xff]
    %v866 = vld [vmem:[#allocation11 + $0xe80] sm:$0xff]
    %v867 = vld [vmem:[#allocation11 + $0xe88] sm:$0xff]
    %v868 = vld [vmem:[#allocation11 + $0xe90] sm:$0xff]
    %v869 = vld [vmem:[#allocation11 + $0xe98] sm:$0xff]
    %v870 = vld [vmem:[#allocation11 + $0xea0] sm:$0xff]
    %v871 = vld [vmem:[#allocation11 + $0xea8] sm:$0xff]
    %v872 = vld [vmem:[#allocation11 + $0xeb0] sm:$0xff]
    %v873 = vld [vmem:[#allocation11 + $0xeb8] sm:$0xff]
    %v874 = vld [vmem:[#allocation11 + $0xec0] sm:$0xff]
    %v875 = vld [vmem:[#allocation11 + $0xec8] sm:$0xff]
    %v876 = vld [vmem:[#allocation11 + $0xed0] sm:$0xff]
    %v877 = vld [vmem:[#allocation11 + $0xed8] sm:$0xff]
    %v878 = vld [vmem:[#allocation11 + $0xee0] sm:$0xff]
    %v879 = vld [vmem:[#allocation11 + $0xee8] sm:$0xff]
    %v880 = vld [vmem:[#allocation11 + $0xef0] sm:$0xff]
    %v881 = vld [vmem:[#allocation11 + $0xef8] sm:$0xff]
    %v882 = vld [vmem:[#allocation11 + $0xf00] sm:$0xff]
    %v883 = vld [vmem:[#allocation11 + $0xf08] sm:$0xff]
    %v884 = vld [vmem:[#allocation11 + $0xf10] sm:$0xff]
    %v885 = vld [vmem:[#allocation11 + $0xf18] sm:$0xff]
    %v886 = vld [vmem:[#allocation11 + $0xf20] sm:$0xff]
    %v887 = vld [vmem:[#allocation11 + $0xf28] sm:$0xff]
    %v888 = vld [vmem:[#allocation11 + $0xf30] sm:$0xff]
    %v889 = vld [vmem:[#allocation11 + $0xf38] sm:$0xff]
    %v890 = vld [vmem:[#allocation11 + $0xf40] sm:$0xff]
    %v891 = vld [vmem:[#allocation11 + $0xf48] sm:$0xff]
    %v892 = vld [vmem:[#allocation11 + $0xf50] sm:$0xff]
    %v893 = vld [vmem:[#allocation11 + $0xf58] sm:$0xff]
    %v894 = vld [vmem:[#allocation11 + $0xf60] sm:$0xff]
    %v895 = vld [vmem:[#allocation11 + $0xf68] sm:$0xff]
    %v896 = vld [vmem:[#allocation11 + $0xf70] sm:$0xff]
    %v897 = vld [vmem:[#allocation11 + $0xf78] sm:$0xff]
    %v898 = vld [vmem:[#allocation11 + $0xf80] sm:$0xff]
    %v899 = vld [vmem:[#allocation11 + $0xf88] sm:$0xff]
    %v900 = vld [vmem:[#allocation11 + $0xf90] sm:$0xff]
    %v901 = vld [vmem:[#allocation11 + $0xf98] sm:$0xff]
    %v902 = vld [vmem:[#allocation11 + $0xfa0] sm:$0xff]
    %v903 = vld [vmem:[#allocation11 + $0xfa8] sm:$0xff]
    %v904 = vld [vmem:[#allocation11 + $0xfb0] sm:$0xff]
    %v905 = vld [vmem:[#allocation11 + $0xfb8] sm:$0xff]
    %v906 = vld [vmem:[#allocation11 + $0xfc0] sm:$0xff]
    %v907 = vld [vmem:[#allocation11 + $0xfc8] sm:$0xff]
    %v908 = vld [vmem:[#allocation11 + $0xfd0] sm:$0xff]
    %v909 = vld [vmem:[#allocation11 + $0xfd8] sm:$0xff]
    %v910 = vld [vmem:[#allocation11 + $0xfe0] sm:$0xff]
    %v911 = vld [vmem:[#allocation11 + $0xfe8] sm:$0xff]
    %v912 = vld [vmem:[#allocation11 + $0xff0] sm:$0xff]
    %v913 = vld [vmem:[#allocation11 + $0xff8] sm:$0xff]
    %v914 = vld [vmem:[#allocation13] sm:$0xff]
    %v916 = vperm.slane %v914, 0
    %v917 = vperm.slane %v914, 1
    %v918 = vperm.slane %v914, 2
    %v919 = vperm.slane %v914, 3
    %v920 = vperm.slane %v914, 4
    %v921 = vperm.slane %v914, 5
    %v922 = vperm.slane %v914, 6
    %v923 = vperm.slane %v914, 7
    %v1444 = vunpack.c.l.b16 %v402
    %v1445 = vunpack.c.h.b16 %v402
    %v1446 = vunpack.c.l.b16 %v403
    %v1447 = vunpack.c.h.b16 %v403
    %v1448 = vunpack.c.l.b16 %v404
    %v1449 = vunpack.c.h.b16 %v404
    %v1450 = vunpack.c.l.b16 %v405
    %v1451 = vunpack.c.h.b16 %v405
    %v1452 = vunpack.c.l.b16 %v406
    %v1453 = vunpack.c.h.b16 %v406
    %v1454 = vunpack.c.l.b16 %v407
    %v1455 = vunpack.c.h.b16 %v407
    %v1456 = vunpack.c.l.b16 %v408
    %v1457 = vunpack.c.h.b16 %v408
    %v1458 = vunpack.c.l.b16 %v409
    %v1459 = vunpack.c.h.b16 %v409
    %v1460 = vunpack.c.l.b16 %v410
    %v1461 = vunpack.c.h.b16 %v410
    %v1462 = vunpack.c.l.b16 %v411
    %v1463 = vunpack.c.h.b16 %v411
    %v1464 = vunpack.c.l.b16 %v412
    %v1465 = vunpack.c.h.b16 %v412
    %v1466 = vunpack.c.l.b16 %v413
    %v1467 = vunpack.c.h.b16 %v413
    %v1468 = vunpack.c.l.b16 %v414
    %v1469 = vunpack.c.h.b16 %v414
    %v1470 = vunpack.c.l.b16 %v415
    %v1471 = vunpack.c.h.b16 %v415
    %v1472 = vunpack.c.l.b16 %v416
    %v1473 = vunpack.c.h.b16 %v416
    %v1474 = vunpack.c.l.b16 %v417
    %v1475 = vunpack.c.h.b16 %v417
    %v1476 = vunpack.c.l.b16 %v418
    %v1477 = vunpack.c.h.b16 %v418
    %v1478 = vunpack.c.l.b16 %v419
    %v1479 = vunpack.c.h.b16 %v419
    %v1480 = vunpack.c.l.b16 %v420
    %v1481 = vunpack.c.h.b16 %v420
    %v1482 = vunpack.c.l.b16 %v421
    %v1483 = vunpack.c.h.b16 %v421
    %v1484 = vunpack.c.l.b16 %v422
    %v1485 = vunpack.c.h.b16 %v422
    %v1486 = vunpack.c.l.b16 %v423
    %v1487 = vunpack.c.h.b16 %v423
    %v1488 = vunpack.c.l.b16 %v424
    %v1489 = vunpack.c.h.b16 %v424
    %v1490 = vunpack.c.l.b16 %v425
    %v1491 = vunpack.c.h.b16 %v425
    %v1492 = vunpack.c.l.b16 %v426
    %v1493 = vunpack.c.h.b16 %v426
    %v1494 = vunpack.c.l.b16 %v427
    %v1495 = vunpack.c.h.b16 %v427
    %v1496 = vunpack.c.l.b16 %v428
    %v1497 = vunpack.c.h.b16 %v428
    %v1498 = vunpack.c.l.b16 %v429
    %v1499 = vunpack.c.h.b16 %v429
    %v1500 = vunpack.c.l.b16 %v430
    %v1501 = vunpack.c.h.b16 %v430
    %v1502 = vunpack.c.l.b16 %v431
    %v1503 = vunpack.c.h.b16 %v431
    %v1504 = vunpack.c.l.b16 %v432
    %v1505 = vunpack.c.h.b16 %v432
    %v1506 = vunpack.c.l.b16 %v433
    %v1507 = vunpack.c.h.b16 %v433
    %v1508 = vunpack.c.l.b16 %v434
    %v1509 = vunpack.c.h.b16 %v434
    %v1510 = vunpack.c.l.b16 %v435
    %v1511 = vunpack.c.h.b16 %v435
    %v1512 = vunpack.c.l.b16 %v436
    %v1513 = vunpack.c.h.b16 %v436
    %v1514 = vunpack.c.l.b16 %v437
    %v1515 = vunpack.c.h.b16 %v437
    %v1516 = vunpack.c.l.b16 %v438
    %v1517 = vunpack.c.h.b16 %v438
    %v1518 = vunpack.c.l.b16 %v439
    %v1519 = vunpack.c.h.b16 %v439
    %v1520 = vunpack.c.l.b16 %v440
    %v1521 = vunpack.c.h.b16 %v440
    %v1522 = vunpack.c.l.b16 %v441
    %v1523 = vunpack.c.h.b16 %v441
    %v1524 = vunpack.c.l.b16 %v442
    %v1525 = vunpack.c.h.b16 %v442
    %v1526 = vunpack.c.l.b16 %v443
    %v1527 = vunpack.c.h.b16 %v443
    %v1528 = vunpack.c.l.b16 %v444
    %v1529 = vunpack.c.h.b16 %v444
    %v1530 = vunpack.c.l.b16 %v445
    %v1531 = vunpack.c.h.b16 %v445
    %v1532 = vunpack.c.l.b16 %v446
    %v1533 = vunpack.c.h.b16 %v446
    %v1534 = vunpack.c.l.b16 %v447
    %v1535 = vunpack.c.h.b16 %v447
    %v1536 = vunpack.c.l.b16 %v448
    %v1537 = vunpack.c.h.b16 %v448
    %v1538 = vunpack.c.l.b16 %v449
    %v1539 = vunpack.c.h.b16 %v449
    %v1540 = vunpack.c.l.b16 %v450
    %v1541 = vunpack.c.h.b16 %v450
    %v1542 = vunpack.c.l.b16 %v451
    %v1543 = vunpack.c.h.b16 %v451
    %v1544 = vunpack.c.l.b16 %v452
    %v1545 = vunpack.c.h.b16 %v452
    %v1546 = vunpack.c.l.b16 %v453
    %v1547 = vunpack.c.h.b16 %v453
    %v1548 = vunpack.c.l.b16 %v454
    %v1549 = vunpack.c.h.b16 %v454
    %v1550 = vunpack.c.l.b16 %v455
    %v1551 = vunpack.c.h.b16 %v455
    %v1552 = vunpack.c.l.b16 %v456
    %v1553 = vunpack.c.h.b16 %v456
    %v1554 = vunpack.c.l.b16 %v457
    %v1555 = vunpack.c.h.b16 %v457
    %v1556 = vunpack.c.l.b16 %v458
    %v1557 = vunpack.c.h.b16 %v458
    %v1558 = vunpack.c.l.b16 %v459
    %v1559 = vunpack.c.h.b16 %v459
    %v1560 = vunpack.c.l.b16 %v460
    %v1561 = vunpack.c.h.b16 %v460
    %v1562 = vunpack.c.l.b16 %v461
    %v1563 = vunpack.c.h.b16 %v461
    %v1564 = vunpack.c.l.b16 %v462
    %v1565 = vunpack.c.h.b16 %v462
    %v1566 = vunpack.c.l.b16 %v463
    %v1567 = vunpack.c.h.b16 %v463
    %v1568 = vunpack.c.l.b16 %v464
    %v1569 = vunpack.c.h.b16 %v464
    %v1570 = vunpack.c.l.b16 %v465
    %v1571 = vunpack.c.h.b16 %v465
    %v1572 = vunpack.c.l.b16 %v466
    %v1573 = vunpack.c.h.b16 %v466
    %v1574 = vunpack.c.l.b16 %v467
    %v1575 = vunpack.c.h.b16 %v467
    %v1576 = vunpack.c.l.b16 %v468
    %v1577 = vunpack.c.h.b16 %v468
    %v1578 = vunpack.c.l.b16 %v469
    %v1579 = vunpack.c.h.b16 %v469
    %v1580 = vunpack.c.l.b16 %v470
    %v1581 = vunpack.c.h.b16 %v470
    %v1582 = vunpack.c.l.b16 %v471
    %v1583 = vunpack.c.h.b16 %v471
    %v1584 = vunpack.c.l.b16 %v472
    %v1585 = vunpack.c.h.b16 %v472
    %v1586 = vunpack.c.l.b16 %v473
    %v1587 = vunpack.c.h.b16 %v473
    %v1588 = vunpack.c.l.b16 %v474
    %v1589 = vunpack.c.h.b16 %v474
    %v1590 = vunpack.c.l.b16 %v475
    %v1591 = vunpack.c.h.b16 %v475
    %v1592 = vunpack.c.l.b16 %v476
    %v1593 = vunpack.c.h.b16 %v476
    %v1594 = vunpack.c.l.b16 %v477
    %v1595 = vunpack.c.h.b16 %v477
    %v1596 = vunpack.c.l.b16 %v478
    %v1597 = vunpack.c.h.b16 %v478
    %v1598 = vunpack.c.l.b16 %v479
    %v1599 = vunpack.c.h.b16 %v479
    %v1600 = vunpack.c.l.b16 %v480
    %v1601 = vunpack.c.h.b16 %v480
    %v1602 = vunpack.c.l.b16 %v481
    %v1603 = vunpack.c.h.b16 %v481
    %v1604 = vunpack.c.l.b16 %v482
    %v1605 = vunpack.c.h.b16 %v482
    %v1606 = vunpack.c.l.b16 %v483
    %v1607 = vunpack.c.h.b16 %v483
    %v1608 = vunpack.c.l.b16 %v484
    %v1609 = vunpack.c.h.b16 %v484
    %v1610 = vunpack.c.l.b16 %v485
    %v1611 = vunpack.c.h.b16 %v485
    %v1612 = vunpack.c.l.b16 %v486
    %v1613 = vunpack.c.h.b16 %v486
    %v1614 = vunpack.c.l.b16 %v487
    %v1615 = vunpack.c.h.b16 %v487
    %v1616 = vunpack.c.l.b16 %v488
    %v1617 = vunpack.c.h.b16 %v488
    %v1618 = vunpack.c.l.b16 %v489
    %v1619 = vunpack.c.h.b16 %v489
    %v1620 = vunpack.c.l.b16 %v490
    %v1621 = vunpack.c.h.b16 %v490
    %v1622 = vunpack.c.l.b16 %v491
    %v1623 = vunpack.c.h.b16 %v491
    %v1624 = vunpack.c.l.b16 %v492
    %v1625 = vunpack.c.h.b16 %v492
    %v1626 = vunpack.c.l.b16 %v493
    %v1627 = vunpack.c.h.b16 %v493
    %v1628 = vunpack.c.l.b16 %v494
    %v1629 = vunpack.c.h.b16 %v494
    %v1630 = vunpack.c.l.b16 %v495
    %v1631 = vunpack.c.h.b16 %v495
    %v1632 = vunpack.c.l.b16 %v496
    %v1633 = vunpack.c.h.b16 %v496
    %v1634 = vunpack.c.l.b16 %v497
    %v1635 = vunpack.c.h.b16 %v497
    %v1636 = vunpack.c.l.b16 %v498
    %v1637 = vunpack.c.h.b16 %v498
    %v1638 = vunpack.c.l.b16 %v499
    %v1639 = vunpack.c.h.b16 %v499
    %v1640 = vunpack.c.l.b16 %v500
    %v1641 = vunpack.c.h.b16 %v500
    %v1642 = vunpack.c.l.b16 %v501
    %v1643 = vunpack.c.h.b16 %v501
    %v1644 = vunpack.c.l.b16 %v502
    %v1645 = vunpack.c.h.b16 %v502
    %v1646 = vunpack.c.l.b16 %v503
    %v1647 = vunpack.c.h.b16 %v503
    %v1648 = vunpack.c.l.b16 %v504
    %v1649 = vunpack.c.h.b16 %v504
    %v1650 = vunpack.c.l.b16 %v505
    %v1651 = vunpack.c.h.b16 %v505
    %v1652 = vunpack.c.l.b16 %v506
    %v1653 = vunpack.c.h.b16 %v506
    %v1654 = vunpack.c.l.b16 %v507
    %v1655 = vunpack.c.h.b16 %v507
    %v1656 = vunpack.c.l.b16 %v508
    %v1657 = vunpack.c.h.b16 %v508
    %v1658 = vunpack.c.l.b16 %v509
    %v1659 = vunpack.c.h.b16 %v509
    %v1660 = vunpack.c.l.b16 %v510
    %v1661 = vunpack.c.h.b16 %v510
    %v1662 = vunpack.c.l.b16 %v511
    %v1663 = vunpack.c.h.b16 %v511
    %v1664 = vunpack.c.l.b16 %v512
    %v1665 = vunpack.c.h.b16 %v512
    %v1666 = vunpack.c.l.b16 %v513
    %v1667 = vunpack.c.h.b16 %v513
    %v1668 = vunpack.c.l.b16 %v514
    %v1669 = vunpack.c.h.b16 %v514
    %v1670 = vunpack.c.l.b16 %v515
    %v1671 = vunpack.c.h.b16 %v515
    %v1672 = vunpack.c.l.b16 %v516
    %v1673 = vunpack.c.h.b16 %v516
    %v1674 = vunpack.c.l.b16 %v517
    %v1675 = vunpack.c.h.b16 %v517
    %v1676 = vunpack.c.l.b16 %v518
    %v1677 = vunpack.c.h.b16 %v518
    %v1678 = vunpack.c.l.b16 %v519
    %v1679 = vunpack.c.h.b16 %v519
    %v1680 = vunpack.c.l.b16 %v520
    %v1681 = vunpack.c.h.b16 %v520
    %v1682 = vunpack.c.l.b16 %v521
    %v1683 = vunpack.c.h.b16 %v521
    %v1684 = vunpack.c.l.b16 %v522
    %v1685 = vunpack.c.h.b16 %v522
    %v1686 = vunpack.c.l.b16 %v523
    %v1687 = vunpack.c.h.b16 %v523
    %v1688 = vunpack.c.l.b16 %v524
    %v1689 = vunpack.c.h.b16 %v524
    %v1690 = vunpack.c.l.b16 %v525
    %v1691 = vunpack.c.h.b16 %v525
    %v1692 = vunpack.c.l.b16 %v526
    %v1693 = vunpack.c.h.b16 %v526
    %v1694 = vunpack.c.l.b16 %v527
    %v1695 = vunpack.c.h.b16 %v527
    %v1696 = vunpack.c.l.b16 %v528
    %v1697 = vunpack.c.h.b16 %v528
    %v1698 = vunpack.c.l.b16 %v529
    %v1699 = vunpack.c.h.b16 %v529
    %v1700 = vunpack.c.l.b16 %v530
    %v1701 = vunpack.c.h.b16 %v530
    %v1702 = vunpack.c.l.b16 %v531
    %v1703 = vunpack.c.h.b16 %v531
    %v1704 = vunpack.c.l.b16 %v532
    %v1705 = vunpack.c.h.b16 %v532
    %v1706 = vunpack.c.l.b16 %v533
    %v1707 = vunpack.c.h.b16 %v533
    %v1708 = vunpack.c.l.b16 %v534
    %v1709 = vunpack.c.h.b16 %v534
    %v1710 = vunpack.c.l.b16 %v535
    %v1711 = vunpack.c.h.b16 %v535
    %v1712 = vunpack.c.l.b16 %v536
    %v1713 = vunpack.c.h.b16 %v536
    %v1714 = vunpack.c.l.b16 %v537
    %v1715 = vunpack.c.h.b16 %v537
    %v1716 = vunpack.c.l.b16 %v538
    %v1717 = vunpack.c.h.b16 %v538
    %v1718 = vunpack.c.l.b16 %v539
    %v1719 = vunpack.c.h.b16 %v539
    %v1720 = vunpack.c.l.b16 %v540
    %v1721 = vunpack.c.h.b16 %v540
    %v1722 = vunpack.c.l.b16 %v541
    %v1723 = vunpack.c.h.b16 %v541
    %v1724 = vunpack.c.l.b16 %v542
    %v1725 = vunpack.c.h.b16 %v542
    %v1726 = vunpack.c.l.b16 %v543
    %v1727 = vunpack.c.h.b16 %v543
    %v1728 = vunpack.c.l.b16 %v544
    %v1729 = vunpack.c.h.b16 %v544
    %v1730 = vunpack.c.l.b16 %v545
    %v1731 = vunpack.c.h.b16 %v545
    %v1732 = vunpack.c.l.b16 %v546
    %v1733 = vunpack.c.h.b16 %v546
    %v1734 = vunpack.c.l.b16 %v547
    %v1735 = vunpack.c.h.b16 %v547
    %v1736 = vunpack.c.l.b16 %v548
    %v1737 = vunpack.c.h.b16 %v548
    %v1738 = vunpack.c.l.b16 %v549
    %v1739 = vunpack.c.h.b16 %v549
    %v1740 = vunpack.c.l.b16 %v550
    %v1741 = vunpack.c.h.b16 %v550
    %v1742 = vunpack.c.l.b16 %v551
    %v1743 = vunpack.c.h.b16 %v551
    %v1744 = vunpack.c.l.b16 %v552
    %v1745 = vunpack.c.h.b16 %v552
    %v1746 = vunpack.c.l.b16 %v553
    %v1747 = vunpack.c.h.b16 %v553
    %v1748 = vunpack.c.l.b16 %v554
    %v1749 = vunpack.c.h.b16 %v554
    %v1750 = vunpack.c.l.b16 %v555
    %v1751 = vunpack.c.h.b16 %v555
    %v1752 = vunpack.c.l.b16 %v556
    %v1753 = vunpack.c.h.b16 %v556
    %v1754 = vunpack.c.l.b16 %v557
    %v1755 = vunpack.c.h.b16 %v557
    %v1756 = vunpack.c.l.b16 %v558
    %v1757 = vunpack.c.h.b16 %v558
    %v1758 = vunpack.c.l.b16 %v559
    %v1759 = vunpack.c.h.b16 %v559
    %v1760 = vunpack.c.l.b16 %v560
    %v1761 = vunpack.c.h.b16 %v560
    %v1762 = vunpack.c.l.b16 %v561
    %v1763 = vunpack.c.h.b16 %v561
    %v1764 = vunpack.c.l.b16 %v562
    %v1765 = vunpack.c.h.b16 %v562
    %v1766 = vunpack.c.l.b16 %v563
    %v1767 = vunpack.c.h.b16 %v563
    %v1768 = vunpack.c.l.b16 %v564
    %v1769 = vunpack.c.h.b16 %v564
    %v1770 = vunpack.c.l.b16 %v565
    %v1771 = vunpack.c.h.b16 %v565
    %v1772 = vunpack.c.l.b16 %v566
    %v1773 = vunpack.c.h.b16 %v566
    %v1774 = vunpack.c.l.b16 %v567
    %v1775 = vunpack.c.h.b16 %v567
    %v1776 = vunpack.c.l.b16 %v568
    %v1777 = vunpack.c.h.b16 %v568
    %v1778 = vunpack.c.l.b16 %v569
    %v1779 = vunpack.c.h.b16 %v569
    %v1780 = vunpack.c.l.b16 %v570
    %v1781 = vunpack.c.h.b16 %v570
    %v1782 = vunpack.c.l.b16 %v571
    %v1783 = vunpack.c.h.b16 %v571
    %v1784 = vunpack.c.l.b16 %v572
    %v1785 = vunpack.c.h.b16 %v572
    %v1786 = vunpack.c.l.b16 %v573
    %v1787 = vunpack.c.h.b16 %v573
    %v1788 = vunpack.c.l.b16 %v574
    %v1789 = vunpack.c.h.b16 %v574
    %v1790 = vunpack.c.l.b16 %v575
    %v1791 = vunpack.c.h.b16 %v575
    %v1792 = vunpack.c.l.b16 %v576
    %v1793 = vunpack.c.h.b16 %v576
    %v1794 = vunpack.c.l.b16 %v577
    %v1795 = vunpack.c.h.b16 %v577
    %v1796 = vunpack.c.l.b16 %v578
    %v1797 = vunpack.c.h.b16 %v578
    %v1798 = vunpack.c.l.b16 %v579
    %v1799 = vunpack.c.h.b16 %v579
    %v1800 = vunpack.c.l.b16 %v580
    %v1801 = vunpack.c.h.b16 %v580
    %v1802 = vunpack.c.l.b16 %v581
    %v1803 = vunpack.c.h.b16 %v581
    %v1804 = vunpack.c.l.b16 %v582
    %v1805 = vunpack.c.h.b16 %v582
    %v1806 = vunpack.c.l.b16 %v583
    %v1807 = vunpack.c.h.b16 %v583
    %v1808 = vunpack.c.l.b16 %v584
    %v1809 = vunpack.c.h.b16 %v584
    %v1810 = vunpack.c.l.b16 %v585
    %v1811 = vunpack.c.h.b16 %v585
    %v1812 = vunpack.c.l.b16 %v586
    %v1813 = vunpack.c.h.b16 %v586
    %v1814 = vunpack.c.l.b16 %v587
    %v1815 = vunpack.c.h.b16 %v587
    %v1816 = vunpack.c.l.b16 %v588
    %v1817 = vunpack.c.h.b16 %v588
    %v1818 = vunpack.c.l.b16 %v589
    %v1819 = vunpack.c.h.b16 %v589
    %v1820 = vunpack.c.l.b16 %v590
    %v1821 = vunpack.c.h.b16 %v590
    %v1822 = vunpack.c.l.b16 %v591
    %v1823 = vunpack.c.h.b16 %v591
    %v1824 = vunpack.c.l.b16 %v592
    %v1825 = vunpack.c.h.b16 %v592
    %v1826 = vunpack.c.l.b16 %v593
    %v1827 = vunpack.c.h.b16 %v593
    %v1828 = vunpack.c.l.b16 %v594
    %v1829 = vunpack.c.h.b16 %v594
    %v1830 = vunpack.c.l.b16 %v595
    %v1831 = vunpack.c.h.b16 %v595
    %v1832 = vunpack.c.l.b16 %v596
    %v1833 = vunpack.c.h.b16 %v596
    %v1834 = vunpack.c.l.b16 %v597
    %v1835 = vunpack.c.h.b16 %v597
    %v1836 = vunpack.c.l.b16 %v598
    %v1837 = vunpack.c.h.b16 %v598
    %v1838 = vunpack.c.l.b16 %v599
    %v1839 = vunpack.c.h.b16 %v599
    %v1840 = vunpack.c.l.b16 %v600
    %v1841 = vunpack.c.h.b16 %v600
    %v1842 = vunpack.c.l.b16 %v601
    %v1843 = vunpack.c.h.b16 %v601
    %v1844 = vunpack.c.l.b16 %v602
    %v1845 = vunpack.c.h.b16 %v602
    %v1846 = vunpack.c.l.b16 %v603
    %v1847 = vunpack.c.h.b16 %v603
    %v1848 = vunpack.c.l.b16 %v604
    %v1849 = vunpack.c.h.b16 %v604
    %v1850 = vunpack.c.l.b16 %v605
    %v1851 = vunpack.c.h.b16 %v605
    %v1852 = vunpack.c.l.b16 %v606
    %v1853 = vunpack.c.h.b16 %v606
    %v1854 = vunpack.c.l.b16 %v607
    %v1855 = vunpack.c.h.b16 %v607
    %v1856 = vunpack.c.l.b16 %v608
    %v1857 = vunpack.c.h.b16 %v608
    %v1858 = vunpack.c.l.b16 %v609
    %v1859 = vunpack.c.h.b16 %v609
    %v1860 = vunpack.c.l.b16 %v610
    %v1861 = vunpack.c.h.b16 %v610
    %v1862 = vunpack.c.l.b16 %v611
    %v1863 = vunpack.c.h.b16 %v611
    %v1864 = vunpack.c.l.b16 %v612
    %v1865 = vunpack.c.h.b16 %v612
    %v1866 = vunpack.c.l.b16 %v613
    %v1867 = vunpack.c.h.b16 %v613
    %v1868 = vunpack.c.l.b16 %v614
    %v1869 = vunpack.c.h.b16 %v614
    %v1870 = vunpack.c.l.b16 %v615
    %v1871 = vunpack.c.h.b16 %v615
    %v1872 = vunpack.c.l.b16 %v616
    %v1873 = vunpack.c.h.b16 %v616
    %v1874 = vunpack.c.l.b16 %v617
    %v1875 = vunpack.c.h.b16 %v617
    %v1876 = vunpack.c.l.b16 %v618
    %v1877 = vunpack.c.h.b16 %v618
    %v1878 = vunpack.c.l.b16 %v619
    %v1879 = vunpack.c.h.b16 %v619
    %v1880 = vunpack.c.l.b16 %v620
    %v1881 = vunpack.c.h.b16 %v620
    %v1882 = vunpack.c.l.b16 %v621
    %v1883 = vunpack.c.h.b16 %v621
    %v1884 = vunpack.c.l.b16 %v622
    %v1885 = vunpack.c.h.b16 %v622
    %v1886 = vunpack.c.l.b16 %v623
    %v1887 = vunpack.c.h.b16 %v623
    %v1888 = vunpack.c.l.b16 %v624
    %v1889 = vunpack.c.h.b16 %v624
    %v1890 = vunpack.c.l.b16 %v625
    %v1891 = vunpack.c.h.b16 %v625
    %v1892 = vunpack.c.l.b16 %v626
    %v1893 = vunpack.c.h.b16 %v626
    %v1894 = vunpack.c.l.b16 %v627
    %v1895 = vunpack.c.h.b16 %v627
    %v1896 = vunpack.c.l.b16 %v628
    %v1897 = vunpack.c.h.b16 %v628
    %v1898 = vunpack.c.l.b16 %v629
    %v1899 = vunpack.c.h.b16 %v629
    %v1900 = vunpack.c.l.b16 %v630
    %v1901 = vunpack.c.h.b16 %v630
    %v1902 = vunpack.c.l.b16 %v631
    %v1903 = vunpack.c.h.b16 %v631
    %v1904 = vunpack.c.l.b16 %v632
    %v1905 = vunpack.c.h.b16 %v632
    %v1906 = vunpack.c.l.b16 %v633
    %v1907 = vunpack.c.h.b16 %v633
    %v1908 = vunpack.c.l.b16 %v634
    %v1909 = vunpack.c.h.b16 %v634
    %v1910 = vunpack.c.l.b16 %v635
    %v1911 = vunpack.c.h.b16 %v635
    %v1912 = vunpack.c.l.b16 %v636
    %v1913 = vunpack.c.h.b16 %v636
    %v1914 = vunpack.c.l.b16 %v637
    %v1915 = vunpack.c.h.b16 %v637
    %v1916 = vunpack.c.l.b16 %v638
    %v1917 = vunpack.c.h.b16 %v638
    %v1918 = vunpack.c.l.b16 %v639
    %v1919 = vunpack.c.h.b16 %v639
    %v1920 = vunpack.c.l.b16 %v640
    %v1921 = vunpack.c.h.b16 %v640
    %v1922 = vunpack.c.l.b16 %v641
    %v1923 = vunpack.c.h.b16 %v641
    %v1924 = vunpack.c.l.b16 %v642
    %v1925 = vunpack.c.h.b16 %v642
    %v1926 = vunpack.c.l.b16 %v643
    %v1927 = vunpack.c.h.b16 %v643
    %v1928 = vunpack.c.l.b16 %v644
    %v1929 = vunpack.c.h.b16 %v644
    %v1930 = vunpack.c.l.b16 %v645
    %v1931 = vunpack.c.h.b16 %v645
    %v1932 = vunpack.c.l.b16 %v646
    %v1933 = vunpack.c.h.b16 %v646
    %v1934 = vunpack.c.l.b16 %v647
    %v1935 = vunpack.c.h.b16 %v647
    %v1936 = vunpack.c.l.b16 %v648
    %v1937 = vunpack.c.h.b16 %v648
    %v1938 = vunpack.c.l.b16 %v649
    %v1939 = vunpack.c.h.b16 %v649
    %v1940 = vunpack.c.l.b16 %v650
    %v1941 = vunpack.c.h.b16 %v650
    %v1942 = vunpack.c.l.b16 %v651
    %v1943 = vunpack.c.h.b16 %v651
    %v1944 = vunpack.c.l.b16 %v652
    %v1945 = vunpack.c.h.b16 %v652
    %v1946 = vunpack.c.l.b16 %v653
    %v1947 = vunpack.c.h.b16 %v653
    %v1948 = vunpack.c.l.b16 %v654
    %v1949 = vunpack.c.h.b16 %v654
    %v1950 = vunpack.c.l.b16 %v655
    %v1951 = vunpack.c.h.b16 %v655
    %v1952 = vunpack.c.l.b16 %v656
    %v1953 = vunpack.c.h.b16 %v656
    %v1954 = vunpack.c.l.b16 %v657
    %v1955 = vunpack.c.h.b16 %v657
    %v1956 = vunpack.c.l.b16 %v658
    %v1957 = vunpack.c.h.b16 %v658
    %v1958 = vunpack.c.l.b16 %v659
    %v1959 = vunpack.c.h.b16 %v659
    %v1960 = vunpack.c.l.b16 %v660
    %v1961 = vunpack.c.h.b16 %v660
    %v1962 = vunpack.c.l.b16 %v661
    %v1963 = vunpack.c.h.b16 %v661
    %v1964 = vunpack.c.l.b16 %v662
    %v1965 = vunpack.c.h.b16 %v662
    %v1966 = vunpack.c.l.b16 %v663
    %v1967 = vunpack.c.h.b16 %v663
    %v1968 = vunpack.c.l.b16 %v664
    %v1969 = vunpack.c.h.b16 %v664
    %v1970 = vunpack.c.l.b16 %v665
    %v1971 = vunpack.c.h.b16 %v665
    %v1972 = vunpack.c.l.b16 %v666
    %v1973 = vunpack.c.h.b16 %v666
    %v1974 = vunpack.c.l.b16 %v667
    %v1975 = vunpack.c.h.b16 %v667
    %v1976 = vunpack.c.l.b16 %v668
    %v1977 = vunpack.c.h.b16 %v668
    %v1978 = vunpack.c.l.b16 %v669
    %v1979 = vunpack.c.h.b16 %v669
    %v1980 = vunpack.c.l.b16 %v670
    %v1981 = vunpack.c.h.b16 %v670
    %v1982 = vunpack.c.l.b16 %v671
    %v1983 = vunpack.c.h.b16 %v671
    %v1984 = vunpack.c.l.b16 %v672
    %v1985 = vunpack.c.h.b16 %v672
    %v1986 = vunpack.c.l.b16 %v673
    %v1987 = vunpack.c.h.b16 %v673
    %v1988 = vunpack.c.l.b16 %v674
    %v1989 = vunpack.c.h.b16 %v674
    %v1990 = vunpack.c.l.b16 %v675
    %v1991 = vunpack.c.h.b16 %v675
    %v1992 = vunpack.c.l.b16 %v676
    %v1993 = vunpack.c.h.b16 %v676
    %v1994 = vunpack.c.l.b16 %v677
    %v1995 = vunpack.c.h.b16 %v677
    %v1996 = vunpack.c.l.b16 %v678
    %v1997 = vunpack.c.h.b16 %v678
    %v1998 = vunpack.c.l.b16 %v679
    %v1999 = vunpack.c.h.b16 %v679
    %v2000 = vunpack.c.l.b16 %v680
    %v2001 = vunpack.c.h.b16 %v680
    %v2002 = vunpack.c.l.b16 %v681
    %v2003 = vunpack.c.h.b16 %v681
    %v2004 = vunpack.c.l.b16 %v682
    %v2005 = vunpack.c.h.b16 %v682
    %v2006 = vunpack.c.l.b16 %v683
    %v2007 = vunpack.c.h.b16 %v683
    %v2008 = vunpack.c.l.b16 %v684
    %v2009 = vunpack.c.h.b16 %v684
    %v2010 = vunpack.c.l.b16 %v685
    %v2011 = vunpack.c.h.b16 %v685
    %v2012 = vunpack.c.l.b16 %v686
    %v2013 = vunpack.c.h.b16 %v686
    %v2014 = vunpack.c.l.b16 %v687
    %v2015 = vunpack.c.h.b16 %v687
    %v2016 = vunpack.c.l.b16 %v688
    %v2017 = vunpack.c.h.b16 %v688
    %v2018 = vunpack.c.l.b16 %v689
    %v2019 = vunpack.c.h.b16 %v689
    %v2020 = vunpack.c.l.b16 %v690
    %v2021 = vunpack.c.h.b16 %v690
    %v2022 = vunpack.c.l.b16 %v691
    %v2023 = vunpack.c.h.b16 %v691
    %v2024 = vunpack.c.l.b16 %v692
    %v2025 = vunpack.c.h.b16 %v692
    %v2026 = vunpack.c.l.b16 %v693
    %v2027 = vunpack.c.h.b16 %v693
    %v2028 = vunpack.c.l.b16 %v694
    %v2029 = vunpack.c.h.b16 %v694
    %v2030 = vunpack.c.l.b16 %v695
    %v2031 = vunpack.c.h.b16 %v695
    %v2032 = vunpack.c.l.b16 %v696
    %v2033 = vunpack.c.h.b16 %v696
    %v2034 = vunpack.c.l.b16 %v697
    %v2035 = vunpack.c.h.b16 %v697
    %v2036 = vunpack.c.l.b16 %v698
    %v2037 = vunpack.c.h.b16 %v698
    %v2038 = vunpack.c.l.b16 %v699
    %v2039 = vunpack.c.h.b16 %v699
    %v2040 = vunpack.c.l.b16 %v700
    %v2041 = vunpack.c.h.b16 %v700
    %v2042 = vunpack.c.l.b16 %v701
    %v2043 = vunpack.c.h.b16 %v701
    %v2044 = vunpack.c.l.b16 %v702
    %v2045 = vunpack.c.h.b16 %v702
    %v2046 = vunpack.c.l.b16 %v703
    %v2047 = vunpack.c.h.b16 %v703
    %v2048 = vunpack.c.l.b16 %v704
    %v2049 = vunpack.c.h.b16 %v704
    %v2050 = vunpack.c.l.b16 %v705
    %v2051 = vunpack.c.h.b16 %v705
    %v2052 = vunpack.c.l.b16 %v706
    %v2053 = vunpack.c.h.b16 %v706
    %v2054 = vunpack.c.l.b16 %v707
    %v2055 = vunpack.c.h.b16 %v707
    %v2056 = vunpack.c.l.b16 %v708
    %v2057 = vunpack.c.h.b16 %v708
    %v2058 = vunpack.c.l.b16 %v709
    %v2059 = vunpack.c.h.b16 %v709
    %v2060 = vunpack.c.l.b16 %v710
    %v2061 = vunpack.c.h.b16 %v710
    %v2062 = vunpack.c.l.b16 %v711
    %v2063 = vunpack.c.h.b16 %v711
    %v2064 = vunpack.c.l.b16 %v712
    %v2065 = vunpack.c.h.b16 %v712
    %v2066 = vunpack.c.l.b16 %v713
    %v2067 = vunpack.c.h.b16 %v713
    %v2068 = vunpack.c.l.b16 %v714
    %v2069 = vunpack.c.h.b16 %v714
    %v2070 = vunpack.c.l.b16 %v715
    %v2071 = vunpack.c.h.b16 %v715
    %v2072 = vunpack.c.l.b16 %v716
    %v2073 = vunpack.c.h.b16 %v716
    %v2074 = vunpack.c.l.b16 %v717
    %v2075 = vunpack.c.h.b16 %v717
    %v2076 = vunpack.c.l.b16 %v718
    %v2077 = vunpack.c.h.b16 %v718
    %v2078 = vunpack.c.l.b16 %v719
    %v2079 = vunpack.c.h.b16 %v719
    %v2080 = vunpack.c.l.b16 %v720
    %v2081 = vunpack.c.h.b16 %v720
    %v2082 = vunpack.c.l.b16 %v721
    %v2083 = vunpack.c.h.b16 %v721
    %v2084 = vunpack.c.l.b16 %v722
    %v2085 = vunpack.c.h.b16 %v722
    %v2086 = vunpack.c.l.b16 %v723
    %v2087 = vunpack.c.h.b16 %v723
    %v2088 = vunpack.c.l.b16 %v724
    %v2089 = vunpack.c.h.b16 %v724
    %v2090 = vunpack.c.l.b16 %v725
    %v2091 = vunpack.c.h.b16 %v725
    %v2092 = vunpack.c.l.b16 %v726
    %v2093 = vunpack.c.h.b16 %v726
    %v2094 = vunpack.c.l.b16 %v727
    %v2095 = vunpack.c.h.b16 %v727
    %v2096 = vunpack.c.l.b16 %v728
    %v2097 = vunpack.c.h.b16 %v728
    %v2098 = vunpack.c.l.b16 %v729
    %v2099 = vunpack.c.h.b16 %v729
    %v2100 = vunpack.c.l.b16 %v730
    %v2101 = vunpack.c.h.b16 %v730
    %v2102 = vunpack.c.l.b16 %v731
    %v2103 = vunpack.c.h.b16 %v731
    %v2104 = vunpack.c.l.b16 %v732
    %v2105 = vunpack.c.h.b16 %v732
    %v2106 = vunpack.c.l.b16 %v733
    %v2107 = vunpack.c.h.b16 %v733
    %v2108 = vunpack.c.l.b16 %v734
    %v2109 = vunpack.c.h.b16 %v734
    %v2110 = vunpack.c.l.b16 %v735
    %v2111 = vunpack.c.h.b16 %v735
    %v2112 = vunpack.c.l.b16 %v736
    %v2113 = vunpack.c.h.b16 %v736
    %v2114 = vunpack.c.l.b16 %v737
    %v2115 = vunpack.c.h.b16 %v737
    %v2116 = vunpack.c.l.b16 %v738
    %v2117 = vunpack.c.h.b16 %v738
    %v2118 = vunpack.c.l.b16 %v739
    %v2119 = vunpack.c.h.b16 %v739
    %v2120 = vunpack.c.l.b16 %v740
    %v2121 = vunpack.c.h.b16 %v740
    %v2122 = vunpack.c.l.b16 %v741
    %v2123 = vunpack.c.h.b16 %v741
    %v2124 = vunpack.c.l.b16 %v742
    %v2125 = vunpack.c.h.b16 %v742
    %v2126 = vunpack.c.l.b16 %v743
    %v2127 = vunpack.c.h.b16 %v743
    %v2128 = vunpack.c.l.b16 %v744
    %v2129 = vunpack.c.h.b16 %v744
    %v2130 = vunpack.c.l.b16 %v745
    %v2131 = vunpack.c.h.b16 %v745
    %v2132 = vunpack.c.l.b16 %v746
    %v2133 = vunpack.c.h.b16 %v746
    %v2134 = vunpack.c.l.b16 %v747
    %v2135 = vunpack.c.h.b16 %v747
    %v2136 = vunpack.c.l.b16 %v748
    %v2137 = vunpack.c.h.b16 %v748
    %v2138 = vunpack.c.l.b16 %v749
    %v2139 = vunpack.c.h.b16 %v749
    %v2140 = vunpack.c.l.b16 %v750
    %v2141 = vunpack.c.h.b16 %v750
    %v2142 = vunpack.c.l.b16 %v751
    %v2143 = vunpack.c.h.b16 %v751
    %v2144 = vunpack.c.l.b16 %v752
    %v2145 = vunpack.c.h.b16 %v752
    %v2146 = vunpack.c.l.b16 %v753
    %v2147 = vunpack.c.h.b16 %v753
    %v2148 = vunpack.c.l.b16 %v754
    %v2149 = vunpack.c.h.b16 %v754
    %v2150 = vunpack.c.l.b16 %v755
    %v2151 = vunpack.c.h.b16 %v755
    %v2152 = vunpack.c.l.b16 %v756
    %v2153 = vunpack.c.h.b16 %v756
    %v2154 = vunpack.c.l.b16 %v757
    %v2155 = vunpack.c.h.b16 %v757
    %v2156 = vunpack.c.l.b16 %v758
    %v2157 = vunpack.c.h.b16 %v758
    %v2158 = vunpack.c.l.b16 %v759
    %v2159 = vunpack.c.h.b16 %v759
    %v2160 = vunpack.c.l.b16 %v760
    %v2161 = vunpack.c.h.b16 %v760
    %v2162 = vunpack.c.l.b16 %v761
    %v2163 = vunpack.c.h.b16 %v761
    %v2164 = vunpack.c.l.b16 %v762
    %v2165 = vunpack.c.h.b16 %v762
    %v2166 = vunpack.c.l.b16 %v763
    %v2167 = vunpack.c.h.b16 %v763
    %v2168 = vunpack.c.l.b16 %v764
    %v2169 = vunpack.c.h.b16 %v764
    %v2170 = vunpack.c.l.b16 %v765
    %v2171 = vunpack.c.h.b16 %v765
    %v2172 = vunpack.c.l.b16 %v766
    %v2173 = vunpack.c.h.b16 %v766
    %v2174 = vunpack.c.l.b16 %v767
    %v2175 = vunpack.c.h.b16 %v767
    %v2176 = vunpack.c.l.b16 %v768
    %v2177 = vunpack.c.h.b16 %v768
    %v2178 = vunpack.c.l.b16 %v769
    %v2179 = vunpack.c.h.b16 %v769
    %v2180 = vunpack.c.l.b16 %v770
    %v2181 = vunpack.c.h.b16 %v770
    %v2182 = vunpack.c.l.b16 %v771
    %v2183 = vunpack.c.h.b16 %v771
    %v2184 = vunpack.c.l.b16 %v772
    %v2185 = vunpack.c.h.b16 %v772
    %v2186 = vunpack.c.l.b16 %v773
    %v2187 = vunpack.c.h.b16 %v773
    %v2188 = vunpack.c.l.b16 %v774
    %v2189 = vunpack.c.h.b16 %v774
    %v2190 = vunpack.c.l.b16 %v775
    %v2191 = vunpack.c.h.b16 %v775
    %v2192 = vunpack.c.l.b16 %v776
    %v2193 = vunpack.c.h.b16 %v776
    %v2194 = vunpack.c.l.b16 %v777
    %v2195 = vunpack.c.h.b16 %v777
    %v2196 = vunpack.c.l.b16 %v778
    %v2197 = vunpack.c.h.b16 %v778
    %v2198 = vunpack.c.l.b16 %v779
    %v2199 = vunpack.c.h.b16 %v779
    %v2200 = vunpack.c.l.b16 %v780
    %v2201 = vunpack.c.h.b16 %v780
    %v2202 = vunpack.c.l.b16 %v781
    %v2203 = vunpack.c.h.b16 %v781
    %v2204 = vunpack.c.l.b16 %v782
    %v2205 = vunpack.c.h.b16 %v782
    %v2206 = vunpack.c.l.b16 %v783
    %v2207 = vunpack.c.h.b16 %v783
    %v2208 = vunpack.c.l.b16 %v784
    %v2209 = vunpack.c.h.b16 %v784
    %v2210 = vunpack.c.l.b16 %v785
    %v2211 = vunpack.c.h.b16 %v785
    %v2212 = vunpack.c.l.b16 %v786
    %v2213 = vunpack.c.h.b16 %v786
    %v2214 = vunpack.c.l.b16 %v787
    %v2215 = vunpack.c.h.b16 %v787
    %v2216 = vunpack.c.l.b16 %v788
    %v2217 = vunpack.c.h.b16 %v788
    %v2218 = vunpack.c.l.b16 %v789
    %v2219 = vunpack.c.h.b16 %v789
    %v2220 = vunpack.c.l.b16 %v790
    %v2221 = vunpack.c.h.b16 %v790
    %v2222 = vunpack.c.l.b16 %v791
    %v2223 = vunpack.c.h.b16 %v791
    %v2224 = vunpack.c.l.b16 %v792
    %v2225 = vunpack.c.h.b16 %v792
    %v2226 = vunpack.c.l.b16 %v793
    %v2227 = vunpack.c.h.b16 %v793
    %v2228 = vunpack.c.l.b16 %v794
    %v2229 = vunpack.c.h.b16 %v794
    %v2230 = vunpack.c.l.b16 %v795
    %v2231 = vunpack.c.h.b16 %v795
    %v2232 = vunpack.c.l.b16 %v796
    %v2233 = vunpack.c.h.b16 %v796
    %v2234 = vunpack.c.l.b16 %v797
    %v2235 = vunpack.c.h.b16 %v797
    %v2236 = vunpack.c.l.b16 %v798
    %v2237 = vunpack.c.h.b16 %v798
    %v2238 = vunpack.c.l.b16 %v799
    %v2239 = vunpack.c.h.b16 %v799
    %v2240 = vunpack.c.l.b16 %v800
    %v2241 = vunpack.c.h.b16 %v800
    %v2242 = vunpack.c.l.b16 %v801
    %v2243 = vunpack.c.h.b16 %v801
    %v2244 = vunpack.c.l.b16 %v802
    %v2245 = vunpack.c.h.b16 %v802
    %v2246 = vunpack.c.l.b16 %v803
    %v2247 = vunpack.c.h.b16 %v803
    %v2248 = vunpack.c.l.b16 %v804
    %v2249 = vunpack.c.h.b16 %v804
    %v2250 = vunpack.c.l.b16 %v805
    %v2251 = vunpack.c.h.b16 %v805
    %v2252 = vunpack.c.l.b16 %v806
    %v2253 = vunpack.c.h.b16 %v806
    %v2254 = vunpack.c.l.b16 %v807
    %v2255 = vunpack.c.h.b16 %v807
    %v2256 = vunpack.c.l.b16 %v808
    %v2257 = vunpack.c.h.b16 %v808
    %v2258 = vunpack.c.l.b16 %v809
    %v2259 = vunpack.c.h.b16 %v809
    %v2260 = vunpack.c.l.b16 %v810
    %v2261 = vunpack.c.h.b16 %v810
    %v2262 = vunpack.c.l.b16 %v811
    %v2263 = vunpack.c.h.b16 %v811
    %v2264 = vunpack.c.l.b16 %v812
    %v2265 = vunpack.c.h.b16 %v812
    %v2266 = vunpack.c.l.b16 %v813
    %v2267 = vunpack.c.h.b16 %v813
    %v2268 = vunpack.c.l.b16 %v814
    %v2269 = vunpack.c.h.b16 %v814
    %v2270 = vunpack.c.l.b16 %v815
    %v2271 = vunpack.c.h.b16 %v815
    %v2272 = vunpack.c.l.b16 %v816
    %v2273 = vunpack.c.h.b16 %v816
    %v2274 = vunpack.c.l.b16 %v817
    %v2275 = vunpack.c.h.b16 %v817
    %v2276 = vunpack.c.l.b16 %v818
    %v2277 = vunpack.c.h.b16 %v818
    %v2278 = vunpack.c.l.b16 %v819
    %v2279 = vunpack.c.h.b16 %v819
    %v2280 = vunpack.c.l.b16 %v820
    %v2281 = vunpack.c.h.b16 %v820
    %v2282 = vunpack.c.l.b16 %v821
    %v2283 = vunpack.c.h.b16 %v821
    %v2284 = vunpack.c.l.b16 %v822
    %v2285 = vunpack.c.h.b16 %v822
    %v2286 = vunpack.c.l.b16 %v823
    %v2287 = vunpack.c.h.b16 %v823
    %v2288 = vunpack.c.l.b16 %v824
    %v2289 = vunpack.c.h.b16 %v824
    %v2290 = vunpack.c.l.b16 %v825
    %v2291 = vunpack.c.h.b16 %v825
    %v2292 = vunpack.c.l.b16 %v826
    %v2293 = vunpack.c.h.b16 %v826
    %v2294 = vunpack.c.l.b16 %v827
    %v2295 = vunpack.c.h.b16 %v827
    %v2296 = vunpack.c.l.b16 %v828
    %v2297 = vunpack.c.h.b16 %v828
    %v2298 = vunpack.c.l.b16 %v829
    %v2299 = vunpack.c.h.b16 %v829
    %v2300 = vunpack.c.l.b16 %v830
    %v2301 = vunpack.c.h.b16 %v830
    %v2302 = vunpack.c.l.b16 %v831
    %v2303 = vunpack.c.h.b16 %v831
    %v2304 = vunpack.c.l.b16 %v832
    %v2305 = vunpack.c.h.b16 %v832
    %v2306 = vunpack.c.l.b16 %v833
    %v2307 = vunpack.c.h.b16 %v833
    %v2308 = vunpack.c.l.b16 %v834
    %v2309 = vunpack.c.h.b16 %v834
    %v2310 = vunpack.c.l.b16 %v835
    %v2311 = vunpack.c.h.b16 %v835
    %v2312 = vunpack.c.l.b16 %v836
    %v2313 = vunpack.c.h.b16 %v836
    %v2314 = vunpack.c.l.b16 %v837
    %v2315 = vunpack.c.h.b16 %v837
    %v2316 = vunpack.c.l.b16 %v838
    %v2317 = vunpack.c.h.b16 %v838
    %v2318 = vunpack.c.l.b16 %v839
    %v2319 = vunpack.c.h.b16 %v839
    %v2320 = vunpack.c.l.b16 %v840
    %v2321 = vunpack.c.h.b16 %v840
    %v2322 = vunpack.c.l.b16 %v841
    %v2323 = vunpack.c.h.b16 %v841
    %v2324 = vunpack.c.l.b16 %v842
    %v2325 = vunpack.c.h.b16 %v842
    %v2326 = vunpack.c.l.b16 %v843
    %v2327 = vunpack.c.h.b16 %v843
    %v2328 = vunpack.c.l.b16 %v844
    %v2329 = vunpack.c.h.b16 %v844
    %v2330 = vunpack.c.l.b16 %v845
    %v2331 = vunpack.c.h.b16 %v845
    %v2332 = vunpack.c.l.b16 %v846
    %v2333 = vunpack.c.h.b16 %v846
    %v2334 = vunpack.c.l.b16 %v847
    %v2335 = vunpack.c.h.b16 %v847
    %v2336 = vunpack.c.l.b16 %v848
    %v2337 = vunpack.c.h.b16 %v848
    %v2338 = vunpack.c.l.b16 %v849
    %v2339 = vunpack.c.h.b16 %v849
    %v2340 = vunpack.c.l.b16 %v850
    %v2341 = vunpack.c.h.b16 %v850
    %v2342 = vunpack.c.l.b16 %v851
    %v2343 = vunpack.c.h.b16 %v851
    %v2344 = vunpack.c.l.b16 %v852
    %v2345 = vunpack.c.h.b16 %v852
    %v2346 = vunpack.c.l.b16 %v853
    %v2347 = vunpack.c.h.b16 %v853
    %v2348 = vunpack.c.l.b16 %v854
    %v2349 = vunpack.c.h.b16 %v854
    %v2350 = vunpack.c.l.b16 %v855
    %v2351 = vunpack.c.h.b16 %v855
    %v2352 = vunpack.c.l.b16 %v856
    %v2353 = vunpack.c.h.b16 %v856
    %v2354 = vunpack.c.l.b16 %v857
    %v2355 = vunpack.c.h.b16 %v857
    %v2356 = vunpack.c.l.b16 %v858
    %v2357 = vunpack.c.h.b16 %v858
    %v2358 = vunpack.c.l.b16 %v859
    %v2359 = vunpack.c.h.b16 %v859
    %v2360 = vunpack.c.l.b16 %v860
    %v2361 = vunpack.c.h.b16 %v860
    %v2362 = vunpack.c.l.b16 %v861
    %v2363 = vunpack.c.h.b16 %v861
    %v2364 = vunpack.c.l.b16 %v862
    %v2365 = vunpack.c.h.b16 %v862
    %v2366 = vunpack.c.l.b16 %v863
    %v2367 = vunpack.c.h.b16 %v863
    %v2368 = vunpack.c.l.b16 %v864
    %v2369 = vunpack.c.h.b16 %v864
    %v2370 = vunpack.c.l.b16 %v865
    %v2371 = vunpack.c.h.b16 %v865
    %v2372 = vunpack.c.l.b16 %v866
    %v2373 = vunpack.c.h.b16 %v866
    %v2374 = vunpack.c.l.b16 %v867
    %v2375 = vunpack.c.h.b16 %v867
    %v2376 = vunpack.c.l.b16 %v868
    %v2377 = vunpack.c.h.b16 %v868
    %v2378 = vunpack.c.l.b16 %v869
    %v2379 = vunpack.c.h.b16 %v869
    %v2380 = vunpack.c.l.b16 %v870
    %v2381 = vunpack.c.h.b16 %v870
    %v2382 = vunpack.c.l.b16 %v871
    %v2383 = vunpack.c.h.b16 %v871
    %v2384 = vunpack.c.l.b16 %v872
    %v2385 = vunpack.c.h.b16 %v872
    %v2386 = vunpack.c.l.b16 %v873
    %v2387 = vunpack.c.h.b16 %v873
    %v2388 = vunpack.c.l.b16 %v874
    %v2389 = vunpack.c.h.b16 %v874
    %v2390 = vunpack.c.l.b16 %v875
    %v2391 = vunpack.c.h.b16 %v875
    %v2392 = vunpack.c.l.b16 %v876
    %v2393 = vunpack.c.h.b16 %v876
    %v2394 = vunpack.c.l.b16 %v877
    %v2395 = vunpack.c.h.b16 %v877
    %v2396 = vunpack.c.l.b16 %v878
    %v2397 = vunpack.c.h.b16 %v878
    %v2398 = vunpack.c.l.b16 %v879
    %v2399 = vunpack.c.h.b16 %v879
    %v2400 = vunpack.c.l.b16 %v880
    %v2401 = vunpack.c.h.b16 %v880
    %v2402 = vunpack.c.l.b16 %v881
    %v2403 = vunpack.c.h.b16 %v881
    %v2404 = vunpack.c.l.b16 %v882
    %v2405 = vunpack.c.h.b16 %v882
    %v2406 = vunpack.c.l.b16 %v883
    %v2407 = vunpack.c.h.b16 %v883
    %v2408 = vunpack.c.l.b16 %v884
    %v2409 = vunpack.c.h.b16 %v884
    %v2410 = vunpack.c.l.b16 %v885
    %v2411 = vunpack.c.h.b16 %v885
    %v2412 = vunpack.c.l.b16 %v886
    %v2413 = vunpack.c.h.b16 %v886
    %v2414 = vunpack.c.l.b16 %v887
    %v2415 = vunpack.c.h.b16 %v887
    %v2416 = vunpack.c.l.b16 %v888
    %v2417 = vunpack.c.h.b16 %v888
    %v2418 = vunpack.c.l.b16 %v889
    %v2419 = vunpack.c.h.b16 %v889
    %v2420 = vunpack.c.l.b16 %v890
    %v2421 = vunpack.c.h.b16 %v890
    %v2422 = vunpack.c.l.b16 %v891
    %v2423 = vunpack.c.h.b16 %v891
    %v2424 = vunpack.c.l.b16 %v892
    %v2425 = vunpack.c.h.b16 %v892
    %v2426 = vunpack.c.l.b16 %v893
    %v2427 = vunpack.c.h.b16 %v893
    %v2428 = vunpack.c.l.b16 %v894
    %v2429 = vunpack.c.h.b16 %v894
    %v2430 = vunpack.c.l.b16 %v895
    %v2431 = vunpack.c.h.b16 %v895
    %v2432 = vunpack.c.l.b16 %v896
    %v2433 = vunpack.c.h.b16 %v896
    %v2434 = vunpack.c.l.b16 %v897
    %v2435 = vunpack.c.h.b16 %v897
    %v2436 = vunpack.c.l.b16 %v898
    %v2437 = vunpack.c.h.b16 %v898
    %v2438 = vunpack.c.l.b16 %v899
    %v2439 = vunpack.c.h.b16 %v899
    %v2440 = vunpack.c.l.b16 %v900
    %v2441 = vunpack.c.h.b16 %v900
    %v2442 = vunpack.c.l.b16 %v901
    %v2443 = vunpack.c.h.b16 %v901
    %v2444 = vunpack.c.l.b16 %v902
    %v2445 = vunpack.c.h.b16 %v902
    %v2446 = vunpack.c.l.b16 %v903
    %v2447 = vunpack.c.h.b16 %v903
    %v2448 = vunpack.c.l.b16 %v904
    %v2449 = vunpack.c.h.b16 %v904
    %v2450 = vunpack.c.l.b16 %v905
    %v2451 = vunpack.c.h.b16 %v905
    %v2452 = vunpack.c.l.b16 %v906
    %v2453 = vunpack.c.h.b16 %v906
    %v2454 = vunpack.c.l.b16 %v907
    %v2455 = vunpack.c.h.b16 %v907
    %v2456 = vunpack.c.l.b16 %v908
    %v2457 = vunpack.c.h.b16 %v908
    %v2458 = vunpack.c.l.b16 %v909
    %v2459 = vunpack.c.h.b16 %v909
    %v2460 = vunpack.c.l.b16 %v910
    %v2461 = vunpack.c.h.b16 %v910
    %v2462 = vunpack.c.l.b16 %v911
    %v2463 = vunpack.c.h.b16 %v911
    %v2464 = vunpack.c.l.b16 %v912
    %v2465 = vunpack.c.h.b16 %v912
    %v2466 = vunpack.c.l.b16 %v913
    %v2467 = vunpack.c.h.b16 %v913
    %v2468 = vpack.c.b16 %v1452, %v1444
    %v2469 = vpack.c.b16 %v1453, %v1445
    %v2470 = vpack.c.b16 %v1454, %v1446
    %v2471 = vpack.c.b16 %v1455, %v1447
    %v2472 = vpack.c.b16 %v1456, %v1448
    %v2473 = vpack.c.b16 %v1457, %v1449
    %v2474 = vpack.c.b16 %v1458, %v1450
    %v2475 = vpack.c.b16 %v1459, %v1451
    %v2476 = vpack.c.b16 %v1468, %v1460
    %v2477 = vpack.c.b16 %v1469, %v1461
    %v2478 = vpack.c.b16 %v1470, %v1462
    %v2479 = vpack.c.b16 %v1471, %v1463
    %v2480 = vpack.c.b16 %v1472, %v1464
    %v2481 = vpack.c.b16 %v1473, %v1465
    %v2482 = vpack.c.b16 %v1474, %v1466
    %v2483 = vpack.c.b16 %v1475, %v1467
    %v2484 = vpack.c.b16 %v1484, %v1476
    %v2485 = vpack.c.b16 %v1485, %v1477
    %v2486 = vpack.c.b16 %v1486, %v1478
    %v2487 = vpack.c.b16 %v1487, %v1479
    %v2488 = vpack.c.b16 %v1488, %v1480
    %v2489 = vpack.c.b16 %v1489, %v1481
    %v2490 = vpack.c.b16 %v1490, %v1482
    %v2491 = vpack.c.b16 %v1491, %v1483
    %v2492 = vpack.c.b16 %v1500, %v1492
    %v2493 = vpack.c.b16 %v1501, %v1493
    %v2494 = vpack.c.b16 %v1502, %v1494
    %v2495 = vpack.c.b16 %v1503, %v1495
    %v2496 = vpack.c.b16 %v1504, %v1496
    %v2497 = vpack.c.b16 %v1505, %v1497
    %v2498 = vpack.c.b16 %v1506, %v1498
    %v2499 = vpack.c.b16 %v1507, %v1499
    %v2500 = vpack.c.b16 %v1516, %v1508
    %v2501 = vpack.c.b16 %v1517, %v1509
    %v2502 = vpack.c.b16 %v1518, %v1510
    %v2503 = vpack.c.b16 %v1519, %v1511
    %v2504 = vpack.c.b16 %v1520, %v1512
    %v2505 = vpack.c.b16 %v1521, %v1513
    %v2506 = vpack.c.b16 %v1522, %v1514
    %v2507 = vpack.c.b16 %v1523, %v1515
    %v2508 = vpack.c.b16 %v1532, %v1524
    %v2509 = vpack.c.b16 %v1533, %v1525
    %v2510 = vpack.c.b16 %v1534, %v1526
    %v2511 = vpack.c.b16 %v1535, %v1527
    %v2512 = vpack.c.b16 %v1536, %v1528
    %v2513 = vpack.c.b16 %v1537, %v1529
    %v2514 = vpack.c.b16 %v1538, %v1530
    %v2515 = vpack.c.b16 %v1539, %v1531
    %v2516 = vpack.c.b16 %v1548, %v1540
    %v2517 = vpack.c.b16 %v1549, %v1541
    %v2518 = vpack.c.b16 %v1550, %v1542
    %v2519 = vpack.c.b16 %v1551, %v1543
    %v2520 = vpack.c.b16 %v1552, %v1544
    %v2521 = vpack.c.b16 %v1553, %v1545
    %v2522 = vpack.c.b16 %v1554, %v1546
    %v2523 = vpack.c.b16 %v1555, %v1547
    %v2524 = vpack.c.b16 %v1564, %v1556
    %v2525 = vpack.c.b16 %v1565, %v1557
    %v2526 = vpack.c.b16 %v1566, %v1558
    %v2527 = vpack.c.b16 %v1567, %v1559
    %v2528 = vpack.c.b16 %v1568, %v1560
    %v2529 = vpack.c.b16 %v1569, %v1561
    %v2530 = vpack.c.b16 %v1570, %v1562
    %v2531 = vpack.c.b16 %v1571, %v1563
    %v2532 = vpack.c.b16 %v1580, %v1572
    %v2533 = vpack.c.b16 %v1581, %v1573
    %v2534 = vpack.c.b16 %v1582, %v1574
    %v2535 = vpack.c.b16 %v1583, %v1575
    %v2536 = vpack.c.b16 %v1584, %v1576
    %v2537 = vpack.c.b16 %v1585, %v1577
    %v2538 = vpack.c.b16 %v1586, %v1578
    %v2539 = vpack.c.b16 %v1587, %v1579
    %v2540 = vpack.c.b16 %v1596, %v1588
    %v2541 = vpack.c.b16 %v1597, %v1589
    %v2542 = vpack.c.b16 %v1598, %v1590
    %v2543 = vpack.c.b16 %v1599, %v1591
    %v2544 = vpack.c.b16 %v1600, %v1592
    %v2545 = vpack.c.b16 %v1601, %v1593
    %v2546 = vpack.c.b16 %v1602, %v1594
    %v2547 = vpack.c.b16 %v1603, %v1595
    %v2548 = vpack.c.b16 %v1612, %v1604
    %v2549 = vpack.c.b16 %v1613, %v1605
    %v2550 = vpack.c.b16 %v1614, %v1606
    %v2551 = vpack.c.b16 %v1615, %v1607
    %v2552 = vpack.c.b16 %v1616, %v1608
    %v2553 = vpack.c.b16 %v1617, %v1609
    %v2554 = vpack.c.b16 %v1618, %v1610
    %v2555 = vpack.c.b16 %v1619, %v1611
    %v2556 = vpack.c.b16 %v1628, %v1620
    %v2557 = vpack.c.b16 %v1629, %v1621
    %v2558 = vpack.c.b16 %v1630, %v1622
    %v2559 = vpack.c.b16 %v1631, %v1623
    %v2560 = vpack.c.b16 %v1632, %v1624
    %v2561 = vpack.c.b16 %v1633, %v1625
    %v2562 = vpack.c.b16 %v1634, %v1626
    %v2563 = vpack.c.b16 %v1635, %v1627
    %v2564 = vpack.c.b16 %v1644, %v1636
    %v2565 = vpack.c.b16 %v1645, %v1637
    %v2566 = vpack.c.b16 %v1646, %v1638
    %v2567 = vpack.c.b16 %v1647, %v1639
    %v2568 = vpack.c.b16 %v1648, %v1640
    %v2569 = vpack.c.b16 %v1649, %v1641
    %v2570 = vpack.c.b16 %v1650, %v1642
    %v2571 = vpack.c.b16 %v1651, %v1643
    %v2572 = vpack.c.b16 %v1660, %v1652
    %v2573 = vpack.c.b16 %v1661, %v1653
    %v2574 = vpack.c.b16 %v1662, %v1654
    %v2575 = vpack.c.b16 %v1663, %v1655
    %v2576 = vpack.c.b16 %v1664, %v1656
    %v2577 = vpack.c.b16 %v1665, %v1657
    %v2578 = vpack.c.b16 %v1666, %v1658
    %v2579 = vpack.c.b16 %v1667, %v1659
    %v2580 = vpack.c.b16 %v1676, %v1668
    %v2581 = vpack.c.b16 %v1677, %v1669
    %v2582 = vpack.c.b16 %v1678, %v1670
    %v2583 = vpack.c.b16 %v1679, %v1671
    %v2584 = vpack.c.b16 %v1680, %v1672
    %v2585 = vpack.c.b16 %v1681, %v1673
    %v2586 = vpack.c.b16 %v1682, %v1674
    %v2587 = vpack.c.b16 %v1683, %v1675
    %v2588 = vpack.c.b16 %v1692, %v1684
    %v2589 = vpack.c.b16 %v1693, %v1685
    %v2590 = vpack.c.b16 %v1694, %v1686
    %v2591 = vpack.c.b16 %v1695, %v1687
    %v2592 = vpack.c.b16 %v1696, %v1688
    %v2593 = vpack.c.b16 %v1697, %v1689
    %v2594 = vpack.c.b16 %v1698, %v1690
    %v2595 = vpack.c.b16 %v1699, %v1691
    %v2596 = vpack.c.b16 %v1708, %v1700
    %v2597 = vpack.c.b16 %v1709, %v1701
    %v2598 = vpack.c.b16 %v1710, %v1702
    %v2599 = vpack.c.b16 %v1711, %v1703
    %v2600 = vpack.c.b16 %v1712, %v1704
    %v2601 = vpack.c.b16 %v1713, %v1705
    %v2602 = vpack.c.b16 %v1714, %v1706
    %v2603 = vpack.c.b16 %v1715, %v1707
    %v2604 = vpack.c.b16 %v1724, %v1716
    %v2605 = vpack.c.b16 %v1725, %v1717
    %v2606 = vpack.c.b16 %v1726, %v1718
    %v2607 = vpack.c.b16 %v1727, %v1719
    %v2608 = vpack.c.b16 %v1728, %v1720
    %v2609 = vpack.c.b16 %v1729, %v1721
    %v2610 = vpack.c.b16 %v1730, %v1722
    %v2611 = vpack.c.b16 %v1731, %v1723
    %v2612 = vpack.c.b16 %v1740, %v1732
    %v2613 = vpack.c.b16 %v1741, %v1733
    %v2614 = vpack.c.b16 %v1742, %v1734
    %v2615 = vpack.c.b16 %v1743, %v1735
    %v2616 = vpack.c.b16 %v1744, %v1736
    %v2617 = vpack.c.b16 %v1745, %v1737
    %v2618 = vpack.c.b16 %v1746, %v1738
    %v2619 = vpack.c.b16 %v1747, %v1739
    %v2620 = vpack.c.b16 %v1756, %v1748
    %v2621 = vpack.c.b16 %v1757, %v1749
    %v2622 = vpack.c.b16 %v1758, %v1750
    %v2623 = vpack.c.b16 %v1759, %v1751
    %v2624 = vpack.c.b16 %v1760, %v1752
    %v2625 = vpack.c.b16 %v1761, %v1753
    %v2626 = vpack.c.b16 %v1762, %v1754
    %v2627 = vpack.c.b16 %v1763, %v1755
    %v2628 = vpack.c.b16 %v1772, %v1764
    %v2629 = vpack.c.b16 %v1773, %v1765
    %v2630 = vpack.c.b16 %v1774, %v1766
    %v2631 = vpack.c.b16 %v1775, %v1767
    %v2632 = vpack.c.b16 %v1776, %v1768
    %v2633 = vpack.c.b16 %v1777, %v1769
    %v2634 = vpack.c.b16 %v1778, %v1770
    %v2635 = vpack.c.b16 %v1779, %v1771
    %v2636 = vpack.c.b16 %v1788, %v1780
    %v2637 = vpack.c.b16 %v1789, %v1781
    %v2638 = vpack.c.b16 %v1790, %v1782
    %v2639 = vpack.c.b16 %v1791, %v1783
    %v2640 = vpack.c.b16 %v1792, %v1784
    %v2641 = vpack.c.b16 %v1793, %v1785
    %v2642 = vpack.c.b16 %v1794, %v1786
    %v2643 = vpack.c.b16 %v1795, %v1787
    %v2644 = vpack.c.b16 %v1804, %v1796
    %v2645 = vpack.c.b16 %v1805, %v1797
    %v2646 = vpack.c.b16 %v1806, %v1798
    %v2647 = vpack.c.b16 %v1807, %v1799
    %v2648 = vpack.c.b16 %v1808, %v1800
    %v2649 = vpack.c.b16 %v1809, %v1801
    %v2650 = vpack.c.b16 %v1810, %v1802
    %v2651 = vpack.c.b16 %v1811, %v1803
    %v2652 = vpack.c.b16 %v1820, %v1812
    %v2653 = vpack.c.b16 %v1821, %v1813
    %v2654 = vpack.c.b16 %v1822, %v1814
    %v2655 = vpack.c.b16 %v1823, %v1815
    %v2656 = vpack.c.b16 %v1824, %v1816
    %v2657 = vpack.c.b16 %v1825, %v1817
    %v2658 = vpack.c.b16 %v1826, %v1818
    %v2659 = vpack.c.b16 %v1827, %v1819
    %v2660 = vpack.c.b16 %v1836, %v1828
    %v2661 = vpack.c.b16 %v1837, %v1829
    %v2662 = vpack.c.b16 %v1838, %v1830
    %v2663 = vpack.c.b16 %v1839, %v1831
    %v2664 = vpack.c.b16 %v1840, %v1832
    %v2665 = vpack.c.b16 %v1841, %v1833
    %v2666 = vpack.c.b16 %v1842, %v1834
    %v2667 = vpack.c.b16 %v1843, %v1835
    %v2668 = vpack.c.b16 %v1852, %v1844
    %v2669 = vpack.c.b16 %v1853, %v1845
    %v2670 = vpack.c.b16 %v1854, %v1846
    %v2671 = vpack.c.b16 %v1855, %v1847
    %v2672 = vpack.c.b16 %v1856, %v1848
    %v2673 = vpack.c.b16 %v1857, %v1849
    %v2674 = vpack.c.b16 %v1858, %v1850
    %v2675 = vpack.c.b16 %v1859, %v1851
    %v2676 = vpack.c.b16 %v1868, %v1860
    %v2677 = vpack.c.b16 %v1869, %v1861
    %v2678 = vpack.c.b16 %v1870, %v1862
    %v2679 = vpack.c.b16 %v1871, %v1863
    %v2680 = vpack.c.b16 %v1872, %v1864
    %v2681 = vpack.c.b16 %v1873, %v1865
    %v2682 = vpack.c.b16 %v1874, %v1866
    %v2683 = vpack.c.b16 %v1875, %v1867
    %v2684 = vpack.c.b16 %v1884, %v1876
    %v2685 = vpack.c.b16 %v1885, %v1877
    %v2686 = vpack.c.b16 %v1886, %v1878
    %v2687 = vpack.c.b16 %v1887, %v1879
    %v2688 = vpack.c.b16 %v1888, %v1880
    %v2689 = vpack.c.b16 %v1889, %v1881
    %v2690 = vpack.c.b16 %v1890, %v1882
    %v2691 = vpack.c.b16 %v1891, %v1883
    %v2692 = vpack.c.b16 %v1900, %v1892
    %v2693 = vpack.c.b16 %v1901, %v1893
    %v2694 = vpack.c.b16 %v1902, %v1894
    %v2695 = vpack.c.b16 %v1903, %v1895
    %v2696 = vpack.c.b16 %v1904, %v1896
    %v2697 = vpack.c.b16 %v1905, %v1897
    %v2698 = vpack.c.b16 %v1906, %v1898
    %v2699 = vpack.c.b16 %v1907, %v1899
    %v2700 = vpack.c.b16 %v1916, %v1908
    %v2701 = vpack.c.b16 %v1917, %v1909
    %v2702 = vpack.c.b16 %v1918, %v1910
    %v2703 = vpack.c.b16 %v1919, %v1911
    %v2704 = vpack.c.b16 %v1920, %v1912
    %v2705 = vpack.c.b16 %v1921, %v1913
    %v2706 = vpack.c.b16 %v1922, %v1914
    %v2707 = vpack.c.b16 %v1923, %v1915
    %v2708 = vpack.c.b16 %v1932, %v1924
    %v2709 = vpack.c.b16 %v1933, %v1925
    %v2710 = vpack.c.b16 %v1934, %v1926
    %v2711 = vpack.c.b16 %v1935, %v1927
    %v2712 = vpack.c.b16 %v1936, %v1928
    %v2713 = vpack.c.b16 %v1937, %v1929
    %v2714 = vpack.c.b16 %v1938, %v1930
    %v2715 = vpack.c.b16 %v1939, %v1931
    %v2716 = vpack.c.b16 %v1948, %v1940
    %v2717 = vpack.c.b16 %v1949, %v1941
    %v2718 = vpack.c.b16 %v1950, %v1942
    %v2719 = vpack.c.b16 %v1951, %v1943
    %v2720 = vpack.c.b16 %v1952, %v1944
    %v2721 = vpack.c.b16 %v1953, %v1945
    %v2722 = vpack.c.b16 %v1954, %v1946
    %v2723 = vpack.c.b16 %v1955, %v1947
    %v2724 = vpack.c.b16 %v1964, %v1956
    %v2725 = vpack.c.b16 %v1965, %v1957
    %v2726 = vpack.c.b16 %v1966, %v1958
    %v2727 = vpack.c.b16 %v1967, %v1959
    %v2728 = vpack.c.b16 %v1968, %v1960
    %v2729 = vpack.c.b16 %v1969, %v1961
    %v2730 = vpack.c.b16 %v1970, %v1962
    %v2731 = vpack.c.b16 %v1971, %v1963
    %v2732 = vpack.c.b16 %v1980, %v1972
    %v2733 = vpack.c.b16 %v1981, %v1973
    %v2734 = vpack.c.b16 %v1982, %v1974
    %v2735 = vpack.c.b16 %v1983, %v1975
    %v2736 = vpack.c.b16 %v1984, %v1976
    %v2737 = vpack.c.b16 %v1985, %v1977
    %v2738 = vpack.c.b16 %v1986, %v1978
    %v2739 = vpack.c.b16 %v1987, %v1979
    %v2740 = vpack.c.b16 %v1996, %v1988
    %v2741 = vpack.c.b16 %v1997, %v1989
    %v2742 = vpack.c.b16 %v1998, %v1990
    %v2743 = vpack.c.b16 %v1999, %v1991
    %v2744 = vpack.c.b16 %v2000, %v1992
    %v2745 = vpack.c.b16 %v2001, %v1993
    %v2746 = vpack.c.b16 %v2002, %v1994
    %v2747 = vpack.c.b16 %v2003, %v1995
    %v2748 = vpack.c.b16 %v2012, %v2004
    %v2749 = vpack.c.b16 %v2013, %v2005
    %v2750 = vpack.c.b16 %v2014, %v2006
    %v2751 = vpack.c.b16 %v2015, %v2007
    %v2752 = vpack.c.b16 %v2016, %v2008
    %v2753 = vpack.c.b16 %v2017, %v2009
    %v2754 = vpack.c.b16 %v2018, %v2010
    %v2755 = vpack.c.b16 %v2019, %v2011
    %v2756 = vpack.c.b16 %v2028, %v2020
    %v2757 = vpack.c.b16 %v2029, %v2021
    %v2758 = vpack.c.b16 %v2030, %v2022
    %v2759 = vpack.c.b16 %v2031, %v2023
    %v2760 = vpack.c.b16 %v2032, %v2024
    %v2761 = vpack.c.b16 %v2033, %v2025
    %v2762 = vpack.c.b16 %v2034, %v2026
    %v2763 = vpack.c.b16 %v2035, %v2027
    %v2764 = vpack.c.b16 %v2044, %v2036
    %v2765 = vpack.c.b16 %v2045, %v2037
    %v2766 = vpack.c.b16 %v2046, %v2038
    %v2767 = vpack.c.b16 %v2047, %v2039
    %v2768 = vpack.c.b16 %v2048, %v2040
    %v2769 = vpack.c.b16 %v2049, %v2041
    %v2770 = vpack.c.b16 %v2050, %v2042
    %v2771 = vpack.c.b16 %v2051, %v2043
    %v2772 = vpack.c.b16 %v2060, %v2052
    %v2773 = vpack.c.b16 %v2061, %v2053
    %v2774 = vpack.c.b16 %v2062, %v2054
    %v2775 = vpack.c.b16 %v2063, %v2055
    %v2776 = vpack.c.b16 %v2064, %v2056
    %v2777 = vpack.c.b16 %v2065, %v2057
    %v2778 = vpack.c.b16 %v2066, %v2058
    %v2779 = vpack.c.b16 %v2067, %v2059
    %v2780 = vpack.c.b16 %v2076, %v2068
    %v2781 = vpack.c.b16 %v2077, %v2069
    %v2782 = vpack.c.b16 %v2078, %v2070
    %v2783 = vpack.c.b16 %v2079, %v2071
    %v2784 = vpack.c.b16 %v2080, %v2072
    %v2785 = vpack.c.b16 %v2081, %v2073
    %v2786 = vpack.c.b16 %v2082, %v2074
    %v2787 = vpack.c.b16 %v2083, %v2075
    %v2788 = vpack.c.b16 %v2092, %v2084
    %v2789 = vpack.c.b16 %v2093, %v2085
    %v2790 = vpack.c.b16 %v2094, %v2086
    %v2791 = vpack.c.b16 %v2095, %v2087
    %v2792 = vpack.c.b16 %v2096, %v2088
    %v2793 = vpack.c.b16 %v2097, %v2089
    %v2794 = vpack.c.b16 %v2098, %v2090
    %v2795 = vpack.c.b16 %v2099, %v2091
    %v2796 = vpack.c.b16 %v2108, %v2100
    %v2797 = vpack.c.b16 %v2109, %v2101
    %v2798 = vpack.c.b16 %v2110, %v2102
    %v2799 = vpack.c.b16 %v2111, %v2103
    %v2800 = vpack.c.b16 %v2112, %v2104
    %v2801 = vpack.c.b16 %v2113, %v2105
    %v2802 = vpack.c.b16 %v2114, %v2106
    %v2803 = vpack.c.b16 %v2115, %v2107
    %v2804 = vpack.c.b16 %v2124, %v2116
    %v2805 = vpack.c.b16 %v2125, %v2117
    %v2806 = vpack.c.b16 %v2126, %v2118
    %v2807 = vpack.c.b16 %v2127, %v2119
    %v2808 = vpack.c.b16 %v2128, %v2120
    %v2809 = vpack.c.b16 %v2129, %v2121
    %v2810 = vpack.c.b16 %v2130, %v2122
    %v2811 = vpack.c.b16 %v2131, %v2123
    %v2812 = vpack.c.b16 %v2140, %v2132
    %v2813 = vpack.c.b16 %v2141, %v2133
    %v2814 = vpack.c.b16 %v2142, %v2134
    %v2815 = vpack.c.b16 %v2143, %v2135
    %v2816 = vpack.c.b16 %v2144, %v2136
    %v2817 = vpack.c.b16 %v2145, %v2137
    %v2818 = vpack.c.b16 %v2146, %v2138
    %v2819 = vpack.c.b16 %v2147, %v2139
    %v2820 = vpack.c.b16 %v2156, %v2148
    %v2821 = vpack.c.b16 %v2157, %v2149
    %v2822 = vpack.c.b16 %v2158, %v2150
    %v2823 = vpack.c.b16 %v2159, %v2151
    %v2824 = vpack.c.b16 %v2160, %v2152
    %v2825 = vpack.c.b16 %v2161, %v2153
    %v2826 = vpack.c.b16 %v2162, %v2154
    %v2827 = vpack.c.b16 %v2163, %v2155
    %v2828 = vpack.c.b16 %v2172, %v2164
    %v2829 = vpack.c.b16 %v2173, %v2165
    %v2830 = vpack.c.b16 %v2174, %v2166
    %v2831 = vpack.c.b16 %v2175, %v2167
    %v2832 = vpack.c.b16 %v2176, %v2168
    %v2833 = vpack.c.b16 %v2177, %v2169
    %v2834 = vpack.c.b16 %v2178, %v2170
    %v2835 = vpack.c.b16 %v2179, %v2171
    %v2836 = vpack.c.b16 %v2188, %v2180
    %v2837 = vpack.c.b16 %v2189, %v2181
    %v2838 = vpack.c.b16 %v2190, %v2182
    %v2839 = vpack.c.b16 %v2191, %v2183
    %v2840 = vpack.c.b16 %v2192, %v2184
    %v2841 = vpack.c.b16 %v2193, %v2185
    %v2842 = vpack.c.b16 %v2194, %v2186
    %v2843 = vpack.c.b16 %v2195, %v2187
    %v2844 = vpack.c.b16 %v2204, %v2196
    %v2845 = vpack.c.b16 %v2205, %v2197
    %v2846 = vpack.c.b16 %v2206, %v2198
    %v2847 = vpack.c.b16 %v2207, %v2199
    %v2848 = vpack.c.b16 %v2208, %v2200
    %v2849 = vpack.c.b16 %v2209, %v2201
    %v2850 = vpack.c.b16 %v2210, %v2202
    %v2851 = vpack.c.b16 %v2211, %v2203
    %v2852 = vpack.c.b16 %v2220, %v2212
    %v2853 = vpack.c.b16 %v2221, %v2213
    %v2854 = vpack.c.b16 %v2222, %v2214
    %v2855 = vpack.c.b16 %v2223, %v2215
    %v2856 = vpack.c.b16 %v2224, %v2216
    %v2857 = vpack.c.b16 %v2225, %v2217
    %v2858 = vpack.c.b16 %v2226, %v2218
    %v2859 = vpack.c.b16 %v2227, %v2219
    %v2860 = vpack.c.b16 %v2236, %v2228
    %v2861 = vpack.c.b16 %v2237, %v2229
    %v2862 = vpack.c.b16 %v2238, %v2230
    %v2863 = vpack.c.b16 %v2239, %v2231
    %v2864 = vpack.c.b16 %v2240, %v2232
    %v2865 = vpack.c.b16 %v2241, %v2233
    %v2866 = vpack.c.b16 %v2242, %v2234
    %v2867 = vpack.c.b16 %v2243, %v2235
    %v2868 = vpack.c.b16 %v2252, %v2244
    %v2869 = vpack.c.b16 %v2253, %v2245
    %v2870 = vpack.c.b16 %v2254, %v2246
    %v2871 = vpack.c.b16 %v2255, %v2247
    %v2872 = vpack.c.b16 %v2256, %v2248
    %v2873 = vpack.c.b16 %v2257, %v2249
    %v2874 = vpack.c.b16 %v2258, %v2250
    %v2875 = vpack.c.b16 %v2259, %v2251
    %v2876 = vpack.c.b16 %v2268, %v2260
    %v2877 = vpack.c.b16 %v2269, %v2261
    %v2878 = vpack.c.b16 %v2270, %v2262
    %v2879 = vpack.c.b16 %v2271, %v2263
    %v2880 = vpack.c.b16 %v2272, %v2264
    %v2881 = vpack.c.b16 %v2273, %v2265
    %v2882 = vpack.c.b16 %v2274, %v2266
    %v2883 = vpack.c.b16 %v2275, %v2267
    %v2884 = vpack.c.b16 %v2284, %v2276
    %v2885 = vpack.c.b16 %v2285, %v2277
    %v2886 = vpack.c.b16 %v2286, %v2278
    %v2887 = vpack.c.b16 %v2287, %v2279
    %v2888 = vpack.c.b16 %v2288, %v2280
    %v2889 = vpack.c.b16 %v2289, %v2281
    %v2890 = vpack.c.b16 %v2290, %v2282
    %v2891 = vpack.c.b16 %v2291, %v2283
    %v2892 = vpack.c.b16 %v2300, %v2292
    %v2893 = vpack.c.b16 %v2301, %v2293
    %v2894 = vpack.c.b16 %v2302, %v2294
    %v2895 = vpack.c.b16 %v2303, %v2295
    %v2896 = vpack.c.b16 %v2304, %v2296
    %v2897 = vpack.c.b16 %v2305, %v2297
    %v2898 = vpack.c.b16 %v2306, %v2298
    %v2899 = vpack.c.b16 %v2307, %v2299
    %v2900 = vpack.c.b16 %v2316, %v2308
    %v2901 = vpack.c.b16 %v2317, %v2309
    %v2902 = vpack.c.b16 %v2318, %v2310
    %v2903 = vpack.c.b16 %v2319, %v2311
    %v2904 = vpack.c.b16 %v2320, %v2312
    %v2905 = vpack.c.b16 %v2321, %v2313
    %v2906 = vpack.c.b16 %v2322, %v2314
    %v2907 = vpack.c.b16 %v2323, %v2315
    %v2908 = vpack.c.b16 %v2332, %v2324
    %v2909 = vpack.c.b16 %v2333, %v2325
    %v2910 = vpack.c.b16 %v2334, %v2326
    %v2911 = vpack.c.b16 %v2335, %v2327
    %v2912 = vpack.c.b16 %v2336, %v2328
    %v2913 = vpack.c.b16 %v2337, %v2329
    %v2914 = vpack.c.b16 %v2338, %v2330
    %v2915 = vpack.c.b16 %v2339, %v2331
    %v2916 = vpack.c.b16 %v2348, %v2340
    %v2917 = vpack.c.b16 %v2349, %v2341
    %v2918 = vpack.c.b16 %v2350, %v2342
    %v2919 = vpack.c.b16 %v2351, %v2343
    %v2920 = vpack.c.b16 %v2352, %v2344
    %v2921 = vpack.c.b16 %v2353, %v2345
    %v2922 = vpack.c.b16 %v2354, %v2346
    %v2923 = vpack.c.b16 %v2355, %v2347
    %v2924 = vpack.c.b16 %v2364, %v2356
    %v2925 = vpack.c.b16 %v2365, %v2357
    %v2926 = vpack.c.b16 %v2366, %v2358
    %v2927 = vpack.c.b16 %v2367, %v2359
    %v2928 = vpack.c.b16 %v2368, %v2360
    %v2929 = vpack.c.b16 %v2369, %v2361
    %v2930 = vpack.c.b16 %v2370, %v2362
    %v2931 = vpack.c.b16 %v2371, %v2363
    %v2932 = vpack.c.b16 %v2380, %v2372
    %v2933 = vpack.c.b16 %v2381, %v2373
    %v2934 = vpack.c.b16 %v2382, %v2374
    %v2935 = vpack.c.b16 %v2383, %v2375
    %v2936 = vpack.c.b16 %v2384, %v2376
    %v2937 = vpack.c.b16 %v2385, %v2377
    %v2938 = vpack.c.b16 %v2386, %v2378
    %v2939 = vpack.c.b16 %v2387, %v2379
    %v2940 = vpack.c.b16 %v2396, %v2388
    %v2941 = vpack.c.b16 %v2397, %v2389
    %v2942 = vpack.c.b16 %v2398, %v2390
    %v2943 = vpack.c.b16 %v2399, %v2391
    %v2944 = vpack.c.b16 %v2400, %v2392
    %v2945 = vpack.c.b16 %v2401, %v2393
    %v2946 = vpack.c.b16 %v2402, %v2394
    %v2947 = vpack.c.b16 %v2403, %v2395
    %v2948 = vpack.c.b16 %v2412, %v2404
    %v2949 = vpack.c.b16 %v2413, %v2405
    %v2950 = vpack.c.b16 %v2414, %v2406
    %v2951 = vpack.c.b16 %v2415, %v2407
    %v2952 = vpack.c.b16 %v2416, %v2408
    %v2953 = vpack.c.b16 %v2417, %v2409
    %v2954 = vpack.c.b16 %v2418, %v2410
    %v2955 = vpack.c.b16 %v2419, %v2411
    %v2956 = vpack.c.b16 %v2428, %v2420
    %v2957 = vpack.c.b16 %v2429, %v2421
    %v2958 = vpack.c.b16 %v2430, %v2422
    %v2959 = vpack.c.b16 %v2431, %v2423
    %v2960 = vpack.c.b16 %v2432, %v2424
    %v2961 = vpack.c.b16 %v2433, %v2425
    %v2962 = vpack.c.b16 %v2434, %v2426
    %v2963 = vpack.c.b16 %v2435, %v2427
    %v2964 = vpack.c.b16 %v2444, %v2436
    %v2965 = vpack.c.b16 %v2445, %v2437
    %v2966 = vpack.c.b16 %v2446, %v2438
    %v2967 = vpack.c.b16 %v2447, %v2439
    %v2968 = vpack.c.b16 %v2448, %v2440
    %v2969 = vpack.c.b16 %v2449, %v2441
    %v2970 = vpack.c.b16 %v2450, %v2442
    %v2971 = vpack.c.b16 %v2451, %v2443
    %v2972 = vpack.c.b16 %v2460, %v2452
    %v2973 = vpack.c.b16 %v2461, %v2453
    %v2974 = vpack.c.b16 %v2462, %v2454
    %v2975 = vpack.c.b16 %v2463, %v2455
    %v2976 = vpack.c.b16 %v2464, %v2456
    %v2977 = vpack.c.b16 %v2465, %v2457
    %v2978 = vpack.c.b16 %v2466, %v2458
    %v2979 = vpack.c.b16 %v2467, %v2459
    %3492 = vmatpush.bf16.msra.mxu0 %v2524
    %3493 = vmatpush.bf16.msra.mxu0 %v2516
    %3494 = vmatpush.bf16.msra.mxu0 %v2508
    %3495 = vmatpush.bf16.msra.mxu0 %v2500
    %3496 = vmatpush.bf16.msra.mxu0 %v2492
    %3497 = vmatpush.bf16.msra.mxu0 %v2484
    %3498 = vmatpush.bf16.msra.mxu0 %v2476
    %3499 = vmatpush.bf16.msra.mxu0 %v2468
    %3500 = vmatmul.bf16.gmra.mxu0 %v394
    %v3501 = vpop.f32.mrf.mxu0
    %v3502 = vadd.f32 %v916, %v3501
    %v3503 = vpop.f32.mrf.mxu0
    %3504 = vdwg.mxu0
    %3505 = vmatpush.bf16.msra.mxu0 %v2588
    %3506 = vmatpush.bf16.msra.mxu0 %v2580
    %3507 = vmatpush.bf16.msra.mxu0 %v2572
    %3508 = vmatpush.bf16.msra.mxu0 %v2564
    %3509 = vmatpush.bf16.msra.mxu0 %v2556
    %3510 = vmatpush.bf16.msra.mxu0 %v2548
    %3511 = vmatpush.bf16.msra.mxu0 %v2540
    %3512 = vmatpush.bf16.msra.mxu0 %v2532
    %3513 = vmatmul.bf16.gmra.mxu0 %v395
    %v3514 = vpop.f32.mrf.mxu0
    %v3515 = vadd.f32 %v3502, %v3514
    %v3516 = vpop.f32.mrf.mxu0
    %3517 = vdwg.mxu0
    %3518 = vmatpush.bf16.msra.mxu0 %v2652
    %3519 = vmatpush.bf16.msra.mxu0 %v2644
    %3520 = vmatpush.bf16.msra.mxu0 %v2636
    %3521 = vmatpush.bf16.msra.mxu0 %v2628
    %3522 = vmatpush.bf16.msra.mxu0 %v2620
    %3523 = vmatpush.bf16.msra.mxu0 %v2612
    %3524 = vmatpush.bf16.msra.mxu0 %v2604
    %3525 = vmatpush.bf16.msra.mxu0 %v2596
    %3526 = vmatmul.bf16.gmra.mxu0 %v396
    %v3527 = vpop.f32.mrf.mxu0
    %v3528 = vadd.f32 %v3515, %v3527
    %v3529 = vpop.f32.mrf.mxu0
    %3530 = vdwg.mxu0
    %3531 = vmatpush.bf16.msra.mxu0 %v2716
    %3532 = vmatpush.bf16.msra.mxu0 %v2708
    %3533 = vmatpush.bf16.msra.mxu0 %v2700
    %3534 = vmatpush.bf16.msra.mxu0 %v2692
    %3535 = vmatpush.bf16.msra.mxu0 %v2684
    %3536 = vmatpush.bf16.msra.mxu0 %v2676
    %3537 = vmatpush.bf16.msra.mxu0 %v2668
    %3538 = vmatpush.bf16.msra.mxu0 %v2660
    %3539 = vmatmul.bf16.gmra.mxu0 %v397
    %v3540 = vpop.f32.mrf.mxu0
    %v3541 = vadd.f32 %v3528, %v3540
    %v3542 = vpop.f32.mrf.mxu0
    %3543 = vdwg.mxu0
    %3544 = vmatpush.bf16.msra.mxu0 %v2780
    %3545 = vmatpush.bf16.msra.mxu0 %v2772
    %3546 = vmatpush.bf16.msra.mxu0 %v2764
    %3547 = vmatpush.bf16.msra.mxu0 %v2756
    %3548 = vmatpush.bf16.msra.mxu0 %v2748
    %3549 = vmatpush.bf16.msra.mxu0 %v2740
    %3550 = vmatpush.bf16.msra.mxu0 %v2732
    %3551 = vmatpush.bf16.msra.mxu0 %v2724
    %3552 = vmatmul.bf16.gmra.mxu0 %v398
    %v3553 = vpop.f32.mrf.mxu0
    %v3554 = vadd.f32 %v3541, %v3553
    %v3555 = vpop.f32.mrf.mxu0
    %3556 = vdwg.mxu0
    %3557 = vmatpush.bf16.msra.mxu0 %v2844
    %3558 = vmatpush.bf16.msra.mxu0 %v2836
    %3559 = vmatpush.bf16.msra.mxu0 %v2828
    %3560 = vmatpush.bf16.msra.mxu0 %v2820
    %3561 = vmatpush.bf16.msra.mxu0 %v2812
    %3562 = vmatpush.bf16.msra.mxu0 %v2804
    %3563 = vmatpush.bf16.msra.mxu0 %v2796
    %3564 = vmatpush.bf16.msra.mxu0 %v2788
    %3565 = vmatmul.bf16.gmra.mxu0 %v399
    %v3566 = vpop.f32.mrf.mxu0
    %v3567 = vadd.f32 %v3554, %v3566
    %v3568 = vpop.f32.mrf.mxu0
    %3569 = vdwg.mxu0
    %3570 = vmatpush.bf16.msra.mxu0 %v2908
    %3571 = vmatpush.bf16.msra.mxu0 %v2900
    %3572 = vmatpush.bf16.msra.mxu0 %v2892
    %3573 = vmatpush.bf16.msra.mxu0 %v2884
    %3574 = vmatpush.bf16.msra.mxu0 %v2876
    %3575 = vmatpush.bf16.msra.mxu0 %v2868
    %3576 = vmatpush.bf16.msra.mxu0 %v2860
    %3577 = vmatpush.bf16.msra.mxu0 %v2852
    %3578 = vmatmul.bf16.gmra.mxu0 %v400
    %v3579 = vpop.f32.mrf.mxu0
    %v3580 = vadd.f32 %v3567, %v3579
    %v3581 = vpop.f32.mrf.mxu0
    %3582 = vdwg.mxu0
    %3583 = vmatpush.bf16.msra.mxu0 %v2972
    %3584 = vmatpush.bf16.msra.mxu0 %v2964
    %3585 = vmatpush.bf16.msra.mxu0 %v2956
    %3586 = vmatpush.bf16.msra.mxu0 %v2948
    %3587 = vmatpush.bf16.msra.mxu0 %v2940
    %3588 = vmatpush.bf16.msra.mxu0 %v2932
    %3589 = vmatpush.bf16.msra.mxu0 %v2924
    %3590 = vmatpush.bf16.msra.mxu0 %v2916
    %3591 = vmatmul.bf16.gmra.mxu0 %v401
    %v3592 = vpop.f32.mrf.mxu0
    %v3593 = vadd.f32 %v3580, %v3592
    %v3594 = vpop.f32.mrf.mxu0
    %3595 = vdwg.mxu0
    %3596 = vmatpush.bf16.msra.mxu0 %v2525
    %3597 = vmatpush.bf16.msra.mxu0 %v2517
    %3598 = vmatpush.bf16.msra.mxu0 %v2509
    %3599 = vmatpush.bf16.msra.mxu0 %v2501
    %3600 = vmatpush.bf16.msra.mxu0 %v2493
    %3601 = vmatpush.bf16.msra.mxu0 %v2485
    %3602 = vmatpush.bf16.msra.mxu0 %v2477
    %3603 = vmatpush.bf16.msra.mxu0 %v2469
    %3604 = vmatmul.bf16.gmra.mxu0 %v394
    %v3605 = vpop.f32.mrf.mxu0
    %v3606 = vadd.f32 %v917, %v3605
    %v3607 = vpop.f32.mrf.mxu0
    %3608 = vdwg.mxu0
    %3609 = vmatpush.bf16.msra.mxu0 %v2589
    %3610 = vmatpush.bf16.msra.mxu0 %v2581
    %3611 = vmatpush.bf16.msra.mxu0 %v2573
    %3612 = vmatpush.bf16.msra.mxu0 %v2565
    %3613 = vmatpush.bf16.msra.mxu0 %v2557
    %3614 = vmatpush.bf16.msra.mxu0 %v2549
    %3615 = vmatpush.bf16.msra.mxu0 %v2541
    %3616 = vmatpush.bf16.msra.mxu0 %v2533
    %3617 = vmatmul.bf16.gmra.mxu0 %v395
    %v3618 = vpop.f32.mrf.mxu0
    %v3619 = vadd.f32 %v3606, %v3618
    %v3620 = vpop.f32.mrf.mxu0
    %3621 = vdwg.mxu0
    %3622 = vmatpush.bf16.msra.mxu0 %v2653
    %3623 = vmatpush.bf16.msra.mxu0 %v2645
    %3624 = vmatpush.bf16.msra.mxu0 %v2637
    %3625 = vmatpush.bf16.msra.mxu0 %v2629
    %3626 = vmatpush.bf16.msra.mxu0 %v2621
    %3627 = vmatpush.bf16.msra.mxu0 %v2613
    %3628 = vmatpush.bf16.msra.mxu0 %v2605
    %3629 = vmatpush.bf16.msra.mxu0 %v2597
    %3630 = vmatmul.bf16.gmra.mxu0 %v396
    %v3631 = vpop.f32.mrf.mxu0
    %v3632 = vadd.f32 %v3619, %v3631
    %v3633 = vpop.f32.mrf.mxu0
    %3634 = vdwg.mxu0
    %3635 = vmatpush.bf16.msra.mxu0 %v2717
    %3636 = vmatpush.bf16.msra.mxu0 %v2709
    %3637 = vmatpush.bf16.msra.mxu0 %v2701
    %3638 = vmatpush.bf16.msra.mxu0 %v2693
    %3639 = vmatpush.bf16.msra.mxu0 %v2685
    %3640 = vmatpush.bf16.msra.mxu0 %v2677
    %3641 = vmatpush.bf16.msra.mxu0 %v2669
    %3642 = vmatpush.bf16.msra.mxu0 %v2661
    %3643 = vmatmul.bf16.gmra.mxu0 %v397
    %v3644 = vpop.f32.mrf.mxu0
    %v3645 = vadd.f32 %v3632, %v3644
    %v3646 = vpop.f32.mrf.mxu0
    %3647 = vdwg.mxu0
    %3648 = vmatpush.bf16.msra.mxu0 %v2781
    %3649 = vmatpush.bf16.msra.mxu0 %v2773
    %3650 = vmatpush.bf16.msra.mxu0 %v2765
    %3651 = vmatpush.bf16.msra.mxu0 %v2757
    %3652 = vmatpush.bf16.msra.mxu0 %v2749
    %3653 = vmatpush.bf16.msra.mxu0 %v2741
    %3654 = vmatpush.bf16.msra.mxu0 %v2733
    %3655 = vmatpush.bf16.msra.mxu0 %v2725
    %3656 = vmatmul.bf16.gmra.mxu0 %v398
    %v3657 = vpop.f32.mrf.mxu0
    %v3658 = vadd.f32 %v3645, %v3657
    %v3659 = vpop.f32.mrf.mxu0
    %3660 = vdwg.mxu0
    %3661 = vmatpush.bf16.msra.mxu0 %v2845
    %3662 = vmatpush.bf16.msra.mxu0 %v2837
    %3663 = vmatpush.bf16.msra.mxu0 %v2829
    %3664 = vmatpush.bf16.msra.mxu0 %v2821
    %3665 = vmatpush.bf16.msra.mxu0 %v2813
    %3666 = vmatpush.bf16.msra.mxu0 %v2805
    %3667 = vmatpush.bf16.msra.mxu0 %v2797
    %3668 = vmatpush.bf16.msra.mxu0 %v2789
    %3669 = vmatmul.bf16.gmra.mxu0 %v399
    %v3670 = vpop.f32.mrf.mxu0
    %v3671 = vadd.f32 %v3658, %v3670
    %v3672 = vpop.f32.mrf.mxu0
    %3673 = vdwg.mxu0
    %3674 = vmatpush.bf16.msra.mxu0 %v2909
    %3675 = vmatpush.bf16.msra.mxu0 %v2901
    %3676 = vmatpush.bf16.msra.mxu0 %v2893
    %3677 = vmatpush.bf16.msra.mxu0 %v2885
    %3678 = vmatpush.bf16.msra.mxu0 %v2877
    %3679 = vmatpush.bf16.msra.mxu0 %v2869
    %3680 = vmatpush.bf16.msra.mxu0 %v2861
    %3681 = vmatpush.bf16.msra.mxu0 %v2853
    %3682 = vmatmul.bf16.gmra.mxu0 %v400
    %v3683 = vpop.f32.mrf.mxu0
    %v3684 = vadd.f32 %v3671, %v3683
    %v3685 = vpop.f32.mrf.mxu0
    %3686 = vdwg.mxu0
    %3687 = vmatpush.bf16.msra.mxu0 %v2973
    %3688 = vmatpush.bf16.msra.mxu0 %v2965
    %3689 = vmatpush.bf16.msra.mxu0 %v2957
    %3690 = vmatpush.bf16.msra.mxu0 %v2949
    %3691 = vmatpush.bf16.msra.mxu0 %v2941
    %3692 = vmatpush.bf16.msra.mxu0 %v2933
    %3693 = vmatpush.bf16.msra.mxu0 %v2925
    %3694 = vmatpush.bf16.msra.mxu0 %v2917
    %3695 = vmatmul.bf16.gmra.mxu0 %v401
    %v3696 = vpop.f32.mrf.mxu0
    %v3697 = vadd.f32 %v3684, %v3696
    %v3698 = vpop.f32.mrf.mxu0
    %3699 = vdwg.mxu0
    %3700 = vmatpush.bf16.msra.mxu0 %v2526
    %3701 = vmatpush.bf16.msra.mxu0 %v2518
    %3702 = vmatpush.bf16.msra.mxu0 %v2510
    %3703 = vmatpush.bf16.msra.mxu0 %v2502
    %3704 = vmatpush.bf16.msra.mxu0 %v2494
    %3705 = vmatpush.bf16.msra.mxu0 %v2486
    %3706 = vmatpush.bf16.msra.mxu0 %v2478
    %3707 = vmatpush.bf16.msra.mxu0 %v2470
    %3708 = vmatmul.bf16.gmra.mxu0 %v394
    %v3709 = vpop.f32.mrf.mxu0
    %v3710 = vadd.f32 %v918, %v3709
    %v3711 = vpop.f32.mrf.mxu0
    %3712 = vdwg.mxu0
    %3713 = vmatpush.bf16.msra.mxu0 %v2590
    %3714 = vmatpush.bf16.msra.mxu0 %v2582
    %3715 = vmatpush.bf16.msra.mxu0 %v2574
    %3716 = vmatpush.bf16.msra.mxu0 %v2566
    %3717 = vmatpush.bf16.msra.mxu0 %v2558
    %3718 = vmatpush.bf16.msra.mxu0 %v2550
    %3719 = vmatpush.bf16.msra.mxu0 %v2542
    %3720 = vmatpush.bf16.msra.mxu0 %v2534
    %3721 = vmatmul.bf16.gmra.mxu0 %v395
    %v3722 = vpop.f32.mrf.mxu0
    %v3723 = vadd.f32 %v3710, %v3722
    %v3724 = vpop.f32.mrf.mxu0
    %3725 = vdwg.mxu0
    %3726 = vmatpush.bf16.msra.mxu0 %v2654
    %3727 = vmatpush.bf16.msra.mxu0 %v2646
    %3728 = vmatpush.bf16.msra.mxu0 %v2638
    %3729 = vmatpush.bf16.msra.mxu0 %v2630
    %3730 = vmatpush.bf16.msra.mxu0 %v2622
    %3731 = vmatpush.bf16.msra.mxu0 %v2614
    %3732 = vmatpush.bf16.msra.mxu0 %v2606
    %3733 = vmatpush.bf16.msra.mxu0 %v2598
    %3734 = vmatmul.bf16.gmra.mxu0 %v396
    %v3735 = vpop.f32.mrf.mxu0
    %v3736 = vadd.f32 %v3723, %v3735
    %v3737 = vpop.f32.mrf.mxu0
    %3738 = vdwg.mxu0
    %3739 = vmatpush.bf16.msra.mxu0 %v2718
    %3740 = vmatpush.bf16.msra.mxu0 %v2710
    %3741 = vmatpush.bf16.msra.mxu0 %v2702
    %3742 = vmatpush.bf16.msra.mxu0 %v2694
    %3743 = vmatpush.bf16.msra.mxu0 %v2686
    %3744 = vmatpush.bf16.msra.mxu0 %v2678
    %3745 = vmatpush.bf16.msra.mxu0 %v2670
    %3746 = vmatpush.bf16.msra.mxu0 %v2662
    %3747 = vmatmul.bf16.gmra.mxu0 %v397
    %v3748 = vpop.f32.mrf.mxu0
    %v3749 = vadd.f32 %v3736, %v3748
    %v3750 = vpop.f32.mrf.mxu0
    %3751 = vdwg.mxu0
    %3752 = vmatpush.bf16.msra.mxu0 %v2782
    %3753 = vmatpush.bf16.msra.mxu0 %v2774
    %3754 = vmatpush.bf16.msra.mxu0 %v2766
    %3755 = vmatpush.bf16.msra.mxu0 %v2758
    %3756 = vmatpush.bf16.msra.mxu0 %v2750
    %3757 = vmatpush.bf16.msra.mxu0 %v2742
    %3758 = vmatpush.bf16.msra.mxu0 %v2734
    %3759 = vmatpush.bf16.msra.mxu0 %v2726
    %3760 = vmatmul.bf16.gmra.mxu0 %v398
    %v3761 = vpop.f32.mrf.mxu0
    %v3762 = vadd.f32 %v3749, %v3761
    %v3763 = vpop.f32.mrf.mxu0
    %3764 = vdwg.mxu0
    %3765 = vmatpush.bf16.msra.mxu0 %v2846
    %3766 = vmatpush.bf16.msra.mxu0 %v2838
    %3767 = vmatpush.bf16.msra.mxu0 %v2830
    %3768 = vmatpush.bf16.msra.mxu0 %v2822
    %3769 = vmatpush.bf16.msra.mxu0 %v2814
    %3770 = vmatpush.bf16.msra.mxu0 %v2806
    %3771 = vmatpush.bf16.msra.mxu0 %v2798
    %3772 = vmatpush.bf16.msra.mxu0 %v2790
    %3773 = vmatmul.bf16.gmra.mxu0 %v399
    %v3774 = vpop.f32.mrf.mxu0
    %v3775 = vadd.f32 %v3762, %v3774
    %v3776 = vpop.f32.mrf.mxu0
    %3777 = vdwg.mxu0
    %3778 = vmatpush.bf16.msra.mxu0 %v2910
    %3779 = vmatpush.bf16.msra.mxu0 %v2902
    %3780 = vmatpush.bf16.msra.mxu0 %v2894
    %3781 = vmatpush.bf16.msra.mxu0 %v2886
    %3782 = vmatpush.bf16.msra.mxu0 %v2878
    %3783 = vmatpush.bf16.msra.mxu0 %v2870
    %3784 = vmatpush.bf16.msra.mxu0 %v2862
    %3785 = vmatpush.bf16.msra.mxu0 %v2854
    %3786 = vmatmul.bf16.gmra.mxu0 %v400
    %v3787 = vpop.f32.mrf.mxu0
    %v3788 = vadd.f32 %v3775, %v3787
    %v3789 = vpop.f32.mrf.mxu0
    %3790 = vdwg.mxu0
    %3791 = vmatpush.bf16.msra.mxu0 %v2974
    %3792 = vmatpush.bf16.msra.mxu0 %v2966
    %3793 = vmatpush.bf16.msra.mxu0 %v2958
    %3794 = vmatpush.bf16.msra.mxu0 %v2950
    %3795 = vmatpush.bf16.msra.mxu0 %v2942
    %3796 = vmatpush.bf16.msra.mxu0 %v2934
    %3797 = vmatpush.bf16.msra.mxu0 %v2926
    %3798 = vmatpush.bf16.msra.mxu0 %v2918
    %3799 = vmatmul.bf16.gmra.mxu0 %v401
    %v3800 = vpop.f32.mrf.mxu0
    %v3801 = vadd.f32 %v3788, %v3800
    %v3802 = vpop.f32.mrf.mxu0
    %3803 = vdwg.mxu0
    %3804 = vmatpush.bf16.msra.mxu0 %v2527
    %3805 = vmatpush.bf16.msra.mxu0 %v2519
    %3806 = vmatpush.bf16.msra.mxu0 %v2511
    %3807 = vmatpush.bf16.msra.mxu0 %v2503
    %3808 = vmatpush.bf16.msra.mxu0 %v2495
    %3809 = vmatpush.bf16.msra.mxu0 %v2487
    %3810 = vmatpush.bf16.msra.mxu0 %v2479
    %3811 = vmatpush.bf16.msra.mxu0 %v2471
    %3812 = vmatmul.bf16.gmra.mxu0 %v394
    %v3813 = vpop.f32.mrf.mxu0
    %v3814 = vadd.f32 %v919, %v3813
    %v3815 = vpop.f32.mrf.mxu0
    %3816 = vdwg.mxu0
    %3817 = vmatpush.bf16.msra.mxu0 %v2591
    %3818 = vmatpush.bf16.msra.mxu0 %v2583
    %3819 = vmatpush.bf16.msra.mxu0 %v2575
    %3820 = vmatpush.bf16.msra.mxu0 %v2567
    %3821 = vmatpush.bf16.msra.mxu0 %v2559
    %3822 = vmatpush.bf16.msra.mxu0 %v2551
    %3823 = vmatpush.bf16.msra.mxu0 %v2543
    %3824 = vmatpush.bf16.msra.mxu0 %v2535
    %3825 = vmatmul.bf16.gmra.mxu0 %v395
    %v3826 = vpop.f32.mrf.mxu0
    %v3827 = vadd.f32 %v3814, %v3826
    %v3828 = vpop.f32.mrf.mxu0
    %3829 = vdwg.mxu0
    %3830 = vmatpush.bf16.msra.mxu0 %v2655
    %3831 = vmatpush.bf16.msra.mxu0 %v2647
    %3832 = vmatpush.bf16.msra.mxu0 %v2639
    %3833 = vmatpush.bf16.msra.mxu0 %v2631
    %3834 = vmatpush.bf16.msra.mxu0 %v2623
    %3835 = vmatpush.bf16.msra.mxu0 %v2615
    %3836 = vmatpush.bf16.msra.mxu0 %v2607
    %3837 = vmatpush.bf16.msra.mxu0 %v2599
    %3838 = vmatmul.bf16.gmra.mxu0 %v396
    %v3839 = vpop.f32.mrf.mxu0
    %v3840 = vadd.f32 %v3827, %v3839
    %v3841 = vpop.f32.mrf.mxu0
    %3842 = vdwg.mxu0
    %3843 = vmatpush.bf16.msra.mxu0 %v2719
    %3844 = vmatpush.bf16.msra.mxu0 %v2711
    %3845 = vmatpush.bf16.msra.mxu0 %v2703
    %3846 = vmatpush.bf16.msra.mxu0 %v2695
    %3847 = vmatpush.bf16.msra.mxu0 %v2687
    %3848 = vmatpush.bf16.msra.mxu0 %v2679
    %3849 = vmatpush.bf16.msra.mxu0 %v2671
    %3850 = vmatpush.bf16.msra.mxu0 %v2663
    %3851 = vmatmul.bf16.gmra.mxu0 %v397
    %v3852 = vpop.f32.mrf.mxu0
    %v3853 = vadd.f32 %v3840, %v3852
    %v3854 = vpop.f32.mrf.mxu0
    %3855 = vdwg.mxu0
    %3856 = vmatpush.bf16.msra.mxu0 %v2783
    %3857 = vmatpush.bf16.msra.mxu0 %v2775
    %3858 = vmatpush.bf16.msra.mxu0 %v2767
    %3859 = vmatpush.bf16.msra.mxu0 %v2759
    %3860 = vmatpush.bf16.msra.mxu0 %v2751
    %3861 = vmatpush.bf16.msra.mxu0 %v2743
    %3862 = vmatpush.bf16.msra.mxu0 %v2735
    %3863 = vmatpush.bf16.msra.mxu0 %v2727
    %3864 = vmatmul.bf16.gmra.mxu0 %v398
    %v3865 = vpop.f32.mrf.mxu0
    %v3866 = vadd.f32 %v3853, %v3865
    %v3867 = vpop.f32.mrf.mxu0
    %3868 = vdwg.mxu0
    %3869 = vmatpush.bf16.msra.mxu0 %v2847
    %3870 = vmatpush.bf16.msra.mxu0 %v2839
    %3871 = vmatpush.bf16.msra.mxu0 %v2831
    %3872 = vmatpush.bf16.msra.mxu0 %v2823
    %3873 = vmatpush.bf16.msra.mxu0 %v2815
    %3874 = vmatpush.bf16.msra.mxu0 %v2807
    %3875 = vmatpush.bf16.msra.mxu0 %v2799
    %3876 = vmatpush.bf16.msra.mxu0 %v2791
    %3877 = vmatmul.bf16.gmra.mxu0 %v399
    %v3878 = vpop.f32.mrf.mxu0
    %v3879 = vadd.f32 %v3866, %v3878
    %v3880 = vpop.f32.mrf.mxu0
    %3881 = vdwg.mxu0
    %3882 = vmatpush.bf16.msra.mxu0 %v2911
    %3883 = vmatpush.bf16.msra.mxu0 %v2903
    %3884 = vmatpush.bf16.msra.mxu0 %v2895
    %3885 = vmatpush.bf16.msra.mxu0 %v2887
    %3886 = vmatpush.bf16.msra.mxu0 %v2879
    %3887 = vmatpush.bf16.msra.mxu0 %v2871
    %3888 = vmatpush.bf16.msra.mxu0 %v2863
    %3889 = vmatpush.bf16.msra.mxu0 %v2855
    %3890 = vmatmul.bf16.gmra.mxu0 %v400
    %v3891 = vpop.f32.mrf.mxu0
    %v3892 = vadd.f32 %v3879, %v3891
    %v3893 = vpop.f32.mrf.mxu0
    %3894 = vdwg.mxu0
    %3895 = vmatpush.bf16.msra.mxu0 %v2975
    %3896 = vmatpush.bf16.msra.mxu0 %v2967
    %3897 = vmatpush.bf16.msra.mxu0 %v2959
    %3898 = vmatpush.bf16.msra.mxu0 %v2951
    %3899 = vmatpush.bf16.msra.mxu0 %v2943
    %3900 = vmatpush.bf16.msra.mxu0 %v2935
    %3901 = vmatpush.bf16.msra.mxu0 %v2927
    %3902 = vmatpush.bf16.msra.mxu0 %v2919
    %3903 = vmatmul.bf16.gmra.mxu0 %v401
    %v3904 = vpop.f32.mrf.mxu0
    %v3905 = vadd.f32 %v3892, %v3904
    %v3906 = vpop.f32.mrf.mxu0
    %3907 = vdwg.mxu0
    %3908 = vmatpush.bf16.msra.mxu0 %v2528
    %3909 = vmatpush.bf16.msra.mxu0 %v2520
    %3910 = vmatpush.bf16.msra.mxu0 %v2512
    %3911 = vmatpush.bf16.msra.mxu0 %v2504
    %3912 = vmatpush.bf16.msra.mxu0 %v2496
    %3913 = vmatpush.bf16.msra.mxu0 %v2488
    %3914 = vmatpush.bf16.msra.mxu0 %v2480
    %3915 = vmatpush.bf16.msra.mxu0 %v2472
    %3916 = vmatmul.bf16.gmra.mxu0 %v394
    %v3917 = vpop.f32.mrf.mxu0
    %v3918 = vadd.f32 %v920, %v3917
    %v3919 = vpop.f32.mrf.mxu0
    %3920 = vdwg.mxu0
    %3921 = vmatpush.bf16.msra.mxu0 %v2592
    %3922 = vmatpush.bf16.msra.mxu0 %v2584
    %3923 = vmatpush.bf16.msra.mxu0 %v2576
    %3924 = vmatpush.bf16.msra.mxu0 %v2568
    %3925 = vmatpush.bf16.msra.mxu0 %v2560
    %3926 = vmatpush.bf16.msra.mxu0 %v2552
    %3927 = vmatpush.bf16.msra.mxu0 %v2544
    %3928 = vmatpush.bf16.msra.mxu0 %v2536
    %3929 = vmatmul.bf16.gmra.mxu0 %v395
    %v3930 = vpop.f32.mrf.mxu0
    %v3931 = vadd.f32 %v3918, %v3930
    %v3932 = vpop.f32.mrf.mxu0
    %3933 = vdwg.mxu0
    %3934 = vmatpush.bf16.msra.mxu0 %v2656
    %3935 = vmatpush.bf16.msra.mxu0 %v2648
    %3936 = vmatpush.bf16.msra.mxu0 %v2640
    %3937 = vmatpush.bf16.msra.mxu0 %v2632
    %3938 = vmatpush.bf16.msra.mxu0 %v2624
    %3939 = vmatpush.bf16.msra.mxu0 %v2616
    %3940 = vmatpush.bf16.msra.mxu0 %v2608
    %3941 = vmatpush.bf16.msra.mxu0 %v2600
    %3942 = vmatmul.bf16.gmra.mxu0 %v396
    %v3943 = vpop.f32.mrf.mxu0
    %v3944 = vadd.f32 %v3931, %v3943
    %v3945 = vpop.f32.mrf.mxu0
    %3946 = vdwg.mxu0
    %3947 = vmatpush.bf16.msra.mxu0 %v2720
    %3948 = vmatpush.bf16.msra.mxu0 %v2712
    %3949 = vmatpush.bf16.msra.mxu0 %v2704
    %3950 = vmatpush.bf16.msra.mxu0 %v2696
    %3951 = vmatpush.bf16.msra.mxu0 %v2688
    %3952 = vmatpush.bf16.msra.mxu0 %v2680
    %3953 = vmatpush.bf16.msra.mxu0 %v2672
    %3954 = vmatpush.bf16.msra.mxu0 %v2664
    %3955 = vmatmul.bf16.gmra.mxu0 %v397
    %v3956 = vpop.f32.mrf.mxu0
    %v3957 = vadd.f32 %v3944, %v3956
    %v3958 = vpop.f32.mrf.mxu0
    %3959 = vdwg.mxu0
    %3960 = vmatpush.bf16.msra.mxu0 %v2784
    %3961 = vmatpush.bf16.msra.mxu0 %v2776
    %3962 = vmatpush.bf16.msra.mxu0 %v2768
    %3963 = vmatpush.bf16.msra.mxu0 %v2760
    %3964 = vmatpush.bf16.msra.mxu0 %v2752
    %3965 = vmatpush.bf16.msra.mxu0 %v2744
    %3966 = vmatpush.bf16.msra.mxu0 %v2736
    %3967 = vmatpush.bf16.msra.mxu0 %v2728
    %3968 = vmatmul.bf16.gmra.mxu0 %v398
    %v3969 = vpop.f32.mrf.mxu0
    %v3970 = vadd.f32 %v3957, %v3969
    %v3971 = vpop.f32.mrf.mxu0
    %3972 = vdwg.mxu0
    %3973 = vmatpush.bf16.msra.mxu0 %v2848
    %3974 = vmatpush.bf16.msra.mxu0 %v2840
    %3975 = vmatpush.bf16.msra.mxu0 %v2832
    %3976 = vmatpush.bf16.msra.mxu0 %v2824
    %3977 = vmatpush.bf16.msra.mxu0 %v2816
    %3978 = vmatpush.bf16.msra.mxu0 %v2808
    %3979 = vmatpush.bf16.msra.mxu0 %v2800
    %3980 = vmatpush.bf16.msra.mxu0 %v2792
    %3981 = vmatmul.bf16.gmra.mxu0 %v399
    %v3982 = vpop.f32.mrf.mxu0
    %v3983 = vadd.f32 %v3970, %v3982
    %v3984 = vpop.f32.mrf.mxu0
    %3985 = vdwg.mxu0
    %3986 = vmatpush.bf16.msra.mxu0 %v2912
    %3987 = vmatpush.bf16.msra.mxu0 %v2904
    %3988 = vmatpush.bf16.msra.mxu0 %v2896
    %3989 = vmatpush.bf16.msra.mxu0 %v2888
    %3990 = vmatpush.bf16.msra.mxu0 %v2880
    %3991 = vmatpush.bf16.msra.mxu0 %v2872
    %3992 = vmatpush.bf16.msra.mxu0 %v2864
    %3993 = vmatpush.bf16.msra.mxu0 %v2856
    %3994 = vmatmul.bf16.gmra.mxu0 %v400
    %v3995 = vpop.f32.mrf.mxu0
    %v3996 = vadd.f32 %v3983, %v3995
    %v3997 = vpop.f32.mrf.mxu0
    %3998 = vdwg.mxu0
    %3999 = vmatpush.bf16.msra.mxu0 %v2976
    %4000 = vmatpush.bf16.msra.mxu0 %v2968
    %4001 = vmatpush.bf16.msra.mxu0 %v2960
    %4002 = vmatpush.bf16.msra.mxu0 %v2952
    %4003 = vmatpush.bf16.msra.mxu0 %v2944
    %4004 = vmatpush.bf16.msra.mxu0 %v2936
    %4005 = vmatpush.bf16.msra.mxu0 %v2928
    %4006 = vmatpush.bf16.msra.mxu0 %v2920
    %4007 = vmatmul.bf16.gmra.mxu0 %v401
    %v4008 = vpop.f32.mrf.mxu0
    %v4009 = vadd.f32 %v3996, %v4008
    %v4010 = vpop.f32.mrf.mxu0
    %4011 = vdwg.mxu0
    %4012 = vmatpush.bf16.msra.mxu0 %v2529
    %4013 = vmatpush.bf16.msra.mxu0 %v2521
    %4014 = vmatpush.bf16.msra.mxu0 %v2513
    %4015 = vmatpush.bf16.msra.mxu0 %v2505
    %4016 = vmatpush.bf16.msra.mxu0 %v2497
    %4017 = vmatpush.bf16.msra.mxu0 %v2489
    %4018 = vmatpush.bf16.msra.mxu0 %v2481
    %4019 = vmatpush.bf16.msra.mxu0 %v2473
    %4020 = vmatmul.bf16.gmra.mxu0 %v394
    %v4021 = vpop.f32.mrf.mxu0
    %v4022 = vadd.f32 %v921, %v4021
    %v4023 = vpop.f32.mrf.mxu0
    %4024 = vdwg.mxu0
    %4025 = vmatpush.bf16.msra.mxu0 %v2593
    %4026 = vmatpush.bf16.msra.mxu0 %v2585
    %4027 = vmatpush.bf16.msra.mxu0 %v2577
    %4028 = vmatpush.bf16.msra.mxu0 %v2569
    %4029 = vmatpush.bf16.msra.mxu0 %v2561
    %4030 = vmatpush.bf16.msra.mxu0 %v2553
    %4031 = vmatpush.bf16.msra.mxu0 %v2545
    %4032 = vmatpush.bf16.msra.mxu0 %v2537
    %4033 = vmatmul.bf16.gmra.mxu0 %v395
    %v4034 = vpop.f32.mrf.mxu0
    %v4035 = vadd.f32 %v4022, %v4034
    %v4036 = vpop.f32.mrf.mxu0
    %4037 = vdwg.mxu0
    %4038 = vmatpush.bf16.msra.mxu0 %v2657
    %4039 = vmatpush.bf16.msra.mxu0 %v2649
    %4040 = vmatpush.bf16.msra.mxu0 %v2641
    %4041 = vmatpush.bf16.msra.mxu0 %v2633
    %4042 = vmatpush.bf16.msra.mxu0 %v2625
    %4043 = vmatpush.bf16.msra.mxu0 %v2617
    %4044 = vmatpush.bf16.msra.mxu0 %v2609
    %4045 = vmatpush.bf16.msra.mxu0 %v2601
    %4046 = vmatmul.bf16.gmra.mxu0 %v396
    %v4047 = vpop.f32.mrf.mxu0
    %v4048 = vadd.f32 %v4035, %v4047
    %v4049 = vpop.f32.mrf.mxu0
    %4050 = vdwg.mxu0
    %4051 = vmatpush.bf16.msra.mxu0 %v2721
    %4052 = vmatpush.bf16.msra.mxu0 %v2713
    %4053 = vmatpush.bf16.msra.mxu0 %v2705
    %4054 = vmatpush.bf16.msra.mxu0 %v2697
    %4055 = vmatpush.bf16.msra.mxu0 %v2689
    %4056 = vmatpush.bf16.msra.mxu0 %v2681
    %4057 = vmatpush.bf16.msra.mxu0 %v2673
    %4058 = vmatpush.bf16.msra.mxu0 %v2665
    %4059 = vmatmul.bf16.gmra.mxu0 %v397
    %v4060 = vpop.f32.mrf.mxu0
    %v4061 = vadd.f32 %v4048, %v4060
    %v4062 = vpop.f32.mrf.mxu0
    %4063 = vdwg.mxu0
    %4064 = vmatpush.bf16.msra.mxu0 %v2785
    %4065 = vmatpush.bf16.msra.mxu0 %v2777
    %4066 = vmatpush.bf16.msra.mxu0 %v2769
    %4067 = vmatpush.bf16.msra.mxu0 %v2761
    %4068 = vmatpush.bf16.msra.mxu0 %v2753
    %4069 = vmatpush.bf16.msra.mxu0 %v2745
    %4070 = vmatpush.bf16.msra.mxu0 %v2737
    %4071 = vmatpush.bf16.msra.mxu0 %v2729
    %4072 = vmatmul.bf16.gmra.mxu0 %v398
    %v4073 = vpop.f32.mrf.mxu0
    %v4074 = vadd.f32 %v4061, %v4073
    %v4075 = vpop.f32.mrf.mxu0
    %4076 = vdwg.mxu0
    %4077 = vmatpush.bf16.msra.mxu0 %v2849
    %4078 = vmatpush.bf16.msra.mxu0 %v2841
    %4079 = vmatpush.bf16.msra.mxu0 %v2833
    %4080 = vmatpush.bf16.msra.mxu0 %v2825
    %4081 = vmatpush.bf16.msra.mxu0 %v2817
    %4082 = vmatpush.bf16.msra.mxu0 %v2809
    %4083 = vmatpush.bf16.msra.mxu0 %v2801
    %4084 = vmatpush.bf16.msra.mxu0 %v2793
    %4085 = vmatmul.bf16.gmra.mxu0 %v399
    %v4086 = vpop.f32.mrf.mxu0
    %v4087 = vadd.f32 %v4074, %v4086
    %v4088 = vpop.f32.mrf.mxu0
    %4089 = vdwg.mxu0
    %4090 = vmatpush.bf16.msra.mxu0 %v2913
    %4091 = vmatpush.bf16.msra.mxu0 %v2905
    %4092 = vmatpush.bf16.msra.mxu0 %v2897
    %4093 = vmatpush.bf16.msra.mxu0 %v2889
    %4094 = vmatpush.bf16.msra.mxu0 %v2881
    %4095 = vmatpush.bf16.msra.mxu0 %v2873
    %4096 = vmatpush.bf16.msra.mxu0 %v2865
    %4097 = vmatpush.bf16.msra.mxu0 %v2857
    %4098 = vmatmul.bf16.gmra.mxu0 %v400
    %v4099 = vpop.f32.mrf.mxu0
    %v4100 = vadd.f32 %v4087, %v4099
    %v4101 = vpop.f32.mrf.mxu0
    %4102 = vdwg.mxu0
    %4103 = vmatpush.bf16.msra.mxu0 %v2977
    %4104 = vmatpush.bf16.msra.mxu0 %v2969
    %4105 = vmatpush.bf16.msra.mxu0 %v2961
    %4106 = vmatpush.bf16.msra.mxu0 %v2953
    %4107 = vmatpush.bf16.msra.mxu0 %v2945
    %4108 = vmatpush.bf16.msra.mxu0 %v2937
    %4109 = vmatpush.bf16.msra.mxu0 %v2929
    %4110 = vmatpush.bf16.msra.mxu0 %v2921
    %4111 = vmatmul.bf16.gmra.mxu0 %v401
    %v4112 = vpop.f32.mrf.mxu0
    %v4113 = vadd.f32 %v4100, %v4112
    %v4114 = vpop.f32.mrf.mxu0
    %4115 = vdwg.mxu0
    %4116 = vmatpush.bf16.msra.mxu0 %v2530
    %4117 = vmatpush.bf16.msra.mxu0 %v2522
    %4118 = vmatpush.bf16.msra.mxu0 %v2514
    %4119 = vmatpush.bf16.msra.mxu0 %v2506
    %4120 = vmatpush.bf16.msra.mxu0 %v2498
    %4121 = vmatpush.bf16.msra.mxu0 %v2490
    %4122 = vmatpush.bf16.msra.mxu0 %v2482
    %4123 = vmatpush.bf16.msra.mxu0 %v2474
    %4124 = vmatmul.bf16.gmra.mxu0 %v394
    %v4125 = vpop.f32.mrf.mxu0
    %v4126 = vadd.f32 %v922, %v4125
    %v4127 = vpop.f32.mrf.mxu0
    %4128 = vdwg.mxu0
    %4129 = vmatpush.bf16.msra.mxu0 %v2594
    %4130 = vmatpush.bf16.msra.mxu0 %v2586
    %4131 = vmatpush.bf16.msra.mxu0 %v2578
    %4132 = vmatpush.bf16.msra.mxu0 %v2570
    %4133 = vmatpush.bf16.msra.mxu0 %v2562
    %4134 = vmatpush.bf16.msra.mxu0 %v2554
    %4135 = vmatpush.bf16.msra.mxu0 %v2546
    %4136 = vmatpush.bf16.msra.mxu0 %v2538
    %4137 = vmatmul.bf16.gmra.mxu0 %v395
    %v4138 = vpop.f32.mrf.mxu0
    %v4139 = vadd.f32 %v4126, %v4138
    %v4140 = vpop.f32.mrf.mxu0
    %4141 = vdwg.mxu0
    %4142 = vmatpush.bf16.msra.mxu0 %v2658
    %4143 = vmatpush.bf16.msra.mxu0 %v2650
    %4144 = vmatpush.bf16.msra.mxu0 %v2642
    %4145 = vmatpush.bf16.msra.mxu0 %v2634
    %4146 = vmatpush.bf16.msra.mxu0 %v2626
    %4147 = vmatpush.bf16.msra.mxu0 %v2618
    %4148 = vmatpush.bf16.msra.mxu0 %v2610
    %4149 = vmatpush.bf16.msra.mxu0 %v2602
    %4150 = vmatmul.bf16.gmra.mxu0 %v396
    %v4151 = vpop.f32.mrf.mxu0
    %v4152 = vadd.f32 %v4139, %v4151
    %v4153 = vpop.f32.mrf.mxu0
    %4154 = vdwg.mxu0
    %4155 = vmatpush.bf16.msra.mxu0 %v2722
    %4156 = vmatpush.bf16.msra.mxu0 %v2714
    %4157 = vmatpush.bf16.msra.mxu0 %v2706
    %4158 = vmatpush.bf16.msra.mxu0 %v2698
    %4159 = vmatpush.bf16.msra.mxu0 %v2690
    %4160 = vmatpush.bf16.msra.mxu0 %v2682
    %4161 = vmatpush.bf16.msra.mxu0 %v2674
    %4162 = vmatpush.bf16.msra.mxu0 %v2666
    %4163 = vmatmul.bf16.gmra.mxu0 %v397
    %v4164 = vpop.f32.mrf.mxu0
    %v4165 = vadd.f32 %v4152, %v4164
    %v4166 = vpop.f32.mrf.mxu0
    %4167 = vdwg.mxu0
    %4168 = vmatpush.bf16.msra.mxu0 %v2786
    %4169 = vmatpush.bf16.msra.mxu0 %v2778
    %4170 = vmatpush.bf16.msra.mxu0 %v2770
    %4171 = vmatpush.bf16.msra.mxu0 %v2762
    %4172 = vmatpush.bf16.msra.mxu0 %v2754
    %4173 = vmatpush.bf16.msra.mxu0 %v2746
    %4174 = vmatpush.bf16.msra.mxu0 %v2738
    %4175 = vmatpush.bf16.msra.mxu0 %v2730
    %4176 = vmatmul.bf16.gmra.mxu0 %v398
    %v4177 = vpop.f32.mrf.mxu0
    %v4178 = vadd.f32 %v4165, %v4177
    %v4179 = vpop.f32.mrf.mxu0
    %4180 = vdwg.mxu0
    %4181 = vmatpush.bf16.msra.mxu0 %v2850
    %4182 = vmatpush.bf16.msra.mxu0 %v2842
    %4183 = vmatpush.bf16.msra.mxu0 %v2834
    %4184 = vmatpush.bf16.msra.mxu0 %v2826
    %4185 = vmatpush.bf16.msra.mxu0 %v2818
    %4186 = vmatpush.bf16.msra.mxu0 %v2810
    %4187 = vmatpush.bf16.msra.mxu0 %v2802
    %4188 = vmatpush.bf16.msra.mxu0 %v2794
    %4189 = vmatmul.bf16.gmra.mxu0 %v399
    %v4190 = vpop.f32.mrf.mxu0
    %v4191 = vadd.f32 %v4178, %v4190
    %v4192 = vpop.f32.mrf.mxu0
    %4193 = vdwg.mxu0
    %4194 = vmatpush.bf16.msra.mxu0 %v2914
    %4195 = vmatpush.bf16.msra.mxu0 %v2906
    %4196 = vmatpush.bf16.msra.mxu0 %v2898
    %4197 = vmatpush.bf16.msra.mxu0 %v2890
    %4198 = vmatpush.bf16.msra.mxu0 %v2882
    %4199 = vmatpush.bf16.msra.mxu0 %v2874
    %4200 = vmatpush.bf16.msra.mxu0 %v2866
    %4201 = vmatpush.bf16.msra.mxu0 %v2858
    %4202 = vmatmul.bf16.gmra.mxu0 %v400
    %v4203 = vpop.f32.mrf.mxu0
    %v4204 = vadd.f32 %v4191, %v4203
    %v4205 = vpop.f32.mrf.mxu0
    %4206 = vdwg.mxu0
    %4207 = vmatpush.bf16.msra.mxu0 %v2978
    %4208 = vmatpush.bf16.msra.mxu0 %v2970
    %4209 = vmatpush.bf16.msra.mxu0 %v2962
    %4210 = vmatpush.bf16.msra.mxu0 %v2954
    %4211 = vmatpush.bf16.msra.mxu0 %v2946
    %4212 = vmatpush.bf16.msra.mxu0 %v2938
    %4213 = vmatpush.bf16.msra.mxu0 %v2930
    %4214 = vmatpush.bf16.msra.mxu0 %v2922
    %4215 = vmatmul.bf16.gmra.mxu0 %v401
    %v4216 = vpop.f32.mrf.mxu0
    %v4217 = vadd.f32 %v4204, %v4216
    %v4218 = vpop.f32.mrf.mxu0
    %4219 = vdwg.mxu0
    %4220 = vmatpush.bf16.msra.mxu0 %v2531
    %4221 = vmatpush.bf16.msra.mxu0 %v2523
    %4222 = vmatpush.bf16.msra.mxu0 %v2515
    %4223 = vmatpush.bf16.msra.mxu0 %v2507
    %4224 = vmatpush.bf16.msra.mxu0 %v2499
    %4225 = vmatpush.bf16.msra.mxu0 %v2491
    %4226 = vmatpush.bf16.msra.mxu0 %v2483
    %4227 = vmatpush.bf16.msra.mxu0 %v2475
    %4228 = vmatmul.bf16.gmra.mxu0 %v394
    %v4229 = vpop.f32.mrf.mxu0
    %v4230 = vadd.f32 %v923, %v4229
    %v4231 = vpop.f32.mrf.mxu0
    %4232 = vdwg.mxu0
    %4233 = vmatpush.bf16.msra.mxu0 %v2595
    %4234 = vmatpush.bf16.msra.mxu0 %v2587
    %4235 = vmatpush.bf16.msra.mxu0 %v2579
    %4236 = vmatpush.bf16.msra.mxu0 %v2571
    %4237 = vmatpush.bf16.msra.mxu0 %v2563
    %4238 = vmatpush.bf16.msra.mxu0 %v2555
    %4239 = vmatpush.bf16.msra.mxu0 %v2547
    %4240 = vmatpush.bf16.msra.mxu0 %v2539
    %4241 = vmatmul.bf16.gmra.mxu0 %v395
    %v4242 = vpop.f32.mrf.mxu0
    %v4243 = vadd.f32 %v4230, %v4242
    %v4244 = vpop.f32.mrf.mxu0
    %4245 = vdwg.mxu0
    %4246 = vmatpush.bf16.msra.mxu0 %v2659
    %4247 = vmatpush.bf16.msra.mxu0 %v2651
    %4248 = vmatpush.bf16.msra.mxu0 %v2643
    %4249 = vmatpush.bf16.msra.mxu0 %v2635
    %4250 = vmatpush.bf16.msra.mxu0 %v2627
    %4251 = vmatpush.bf16.msra.mxu0 %v2619
    %4252 = vmatpush.bf16.msra.mxu0 %v2611
    %4253 = vmatpush.bf16.msra.mxu0 %v2603
    %4254 = vmatmul.bf16.gmra.mxu0 %v396
    %v4255 = vpop.f32.mrf.mxu0
    %v4256 = vadd.f32 %v4243, %v4255
    %v4257 = vpop.f32.mrf.mxu0
    %4258 = vdwg.mxu0
    %4259 = vmatpush.bf16.msra.mxu0 %v2723
    %4260 = vmatpush.bf16.msra.mxu0 %v2715
    %4261 = vmatpush.bf16.msra.mxu0 %v2707
    %4262 = vmatpush.bf16.msra.mxu0 %v2699
    %4263 = vmatpush.bf16.msra.mxu0 %v2691
    %4264 = vmatpush.bf16.msra.mxu0 %v2683
    %4265 = vmatpush.bf16.msra.mxu0 %v2675
    %4266 = vmatpush.bf16.msra.mxu0 %v2667
    %4267 = vmatmul.bf16.gmra.mxu0 %v397
    %v4268 = vpop.f32.mrf.mxu0
    %v4269 = vadd.f32 %v4256, %v4268
    %v4270 = vpop.f32.mrf.mxu0
    %4271 = vdwg.mxu0
    %4272 = vmatpush.bf16.msra.mxu0 %v2787
    %4273 = vmatpush.bf16.msra.mxu0 %v2779
    %4274 = vmatpush.bf16.msra.mxu0 %v2771
    %4275 = vmatpush.bf16.msra.mxu0 %v2763
    %4276 = vmatpush.bf16.msra.mxu0 %v2755
    %4277 = vmatpush.bf16.msra.mxu0 %v2747
    %4278 = vmatpush.bf16.msra.mxu0 %v2739
    %4279 = vmatpush.bf16.msra.mxu0 %v2731
    %4280 = vmatmul.bf16.gmra.mxu0 %v398
    %v4281 = vpop.f32.mrf.mxu0
    %v4282 = vadd.f32 %v4269, %v4281
    %v4283 = vpop.f32.mrf.mxu0
    %4284 = vdwg.mxu0
    %4285 = vmatpush.bf16.msra.mxu0 %v2851
    %4286 = vmatpush.bf16.msra.mxu0 %v2843
    %4287 = vmatpush.bf16.msra.mxu0 %v2835
    %4288 = vmatpush.bf16.msra.mxu0 %v2827
    %4289 = vmatpush.bf16.msra.mxu0 %v2819
    %4290 = vmatpush.bf16.msra.mxu0 %v2811
    %4291 = vmatpush.bf16.msra.mxu0 %v2803
    %4292 = vmatpush.bf16.msra.mxu0 %v2795
    %4293 = vmatmul.bf16.gmra.mxu0 %v399
    %v4294 = vpop.f32.mrf.mxu0
    %v4295 = vadd.f32 %v4282, %v4294
    %v4296 = vpop.f32.mrf.mxu0
    %4297 = vdwg.mxu0
    %4298 = vmatpush.bf16.msra.mxu0 %v2915
    %4299 = vmatpush.bf16.msra.mxu0 %v2907
    %4300 = vmatpush.bf16.msra.mxu0 %v2899
    %4301 = vmatpush.bf16.msra.mxu0 %v2891
    %4302 = vmatpush.bf16.msra.mxu0 %v2883
    %4303 = vmatpush.bf16.msra.mxu0 %v2875
    %4304 = vmatpush.bf16.msra.mxu0 %v2867
    %4305 = vmatpush.bf16.msra.mxu0 %v2859
    %4306 = vmatmul.bf16.gmra.mxu0 %v400
    %v4307 = vpop.f32.mrf.mxu0
    %v4308 = vadd.f32 %v4295, %v4307
    %v4309 = vpop.f32.mrf.mxu0
    %4310 = vdwg.mxu0
    %4311 = vmatpush.bf16.msra.mxu0 %v2979
    %4312 = vmatpush.bf16.msra.mxu0 %v2971
    %4313 = vmatpush.bf16.msra.mxu0 %v2963
    %4314 = vmatpush.bf16.msra.mxu0 %v2955
    %4315 = vmatpush.bf16.msra.mxu0 %v2947
    %4316 = vmatpush.bf16.msra.mxu0 %v2939
    %4317 = vmatpush.bf16.msra.mxu0 %v2931
    %4318 = vmatpush.bf16.msra.mxu0 %v2923
    %4319 = vmatmul.bf16.gmra.mxu0 %v401
    %v4320 = vpop.f32.mrf.mxu0
    %v4321 = vadd.f32 %v4308, %v4320
    %v4322 = vpop.f32.mrf.mxu0
    %4323 = vdwg.mxu0
    %v4324 = vmax.f32 %v3593, 0.0
    %v4325 = vmax.f32 %v3697, 0.0
    %v4326 = vmax.f32 %v3801, 0.0
    %v4327 = vmax.f32 %v3905, 0.0
    %v4328 = vmax.f32 %v4009, 0.0
    %v4329 = vmax.f32 %v4113, 0.0
    %v4330 = vmax.f32 %v4217, 0.0
    %v4331 = vmax.f32 %v4321, 0.0
    %v4332 = vpack.c.bf16 %v4324, %v4324
    %v4333 = vpack.c.bf16 %v4325, %v4325
    %v4334 = vpack.c.bf16 %v4326, %v4326
    %v4335 = vpack.c.bf16 %v4327, %v4327
    %v4336 = vpack.c.bf16 %v4328, %v4328
    %v4337 = vpack.c.bf16 %v4329, %v4329
    %v4338 = vpack.c.bf16 %v4330, %v4330
    %v4339 = vpack.c.bf16 %v4331, %v4331
    %v4340 = vld [vmem:[#allocation14] sm:$0xf]
    %v4341 = vld [vmem:[#allocation14 + $0x4] sm:$0xf]
    %v4342 = vld [vmem:[#allocation14 + $0x8] sm:$0xf]
    %v4343 = vld [vmem:[#allocation14 + $0xc] sm:$0xf]
    %v4344 = vld [vmem:[#allocation14 + $0x10] sm:$0xf]
    %v4345 = vld [vmem:[#allocation14 + $0x14] sm:$0xf]
    %v4346 = vld [vmem:[#allocation14 + $0x18] sm:$0xf]
    %v4347 = vld [vmem:[#allocation14 + $0x1c] sm:$0xf]
    %v4348 = vld [vmem:[#allocation14 + $0x20] sm:$0xf]
    %v4349 = vld [vmem:[#allocation14 + $0x24] sm:$0xf]
    %v4350 = vld [vmem:[#allocation14 + $0x28] sm:$0xf]
    %v4351 = vld [vmem:[#allocation14 + $0x2c] sm:$0xf]
    %v4352 = vld [vmem:[#allocation14 + $0x30] sm:$0xf]
    %v4353 = vld [vmem:[#allocation14 + $0x34] sm:$0xf]
    %v4354 = vld [vmem:[#allocation14 + $0x38] sm:$0xf]
    %v4355 = vld [vmem:[#allocation14 + $0x3c] sm:$0xf]
    %v4356 = vld [vmem:[#allocation14 + $0x40] sm:$0xf]
    %v4357 = vld [vmem:[#allocation14 + $0x44] sm:$0xf]
    %v4358 = vld [vmem:[#allocation14 + $0x48] sm:$0xf]
    %v4359 = vld [vmem:[#allocation14 + $0x4c] sm:$0xf]
    %v4360 = vld [vmem:[#allocation14 + $0x50] sm:$0xf]
    %v4361 = vld [vmem:[#allocation14 + $0x54] sm:$0xf]
    %v4362 = vld [vmem:[#allocation14 + $0x58] sm:$0xf]
    %v4363 = vld [vmem:[#allocation14 + $0x5c] sm:$0xf]
    %v4364 = vld [vmem:[#allocation14 + $0x60] sm:$0xf]
    %v4365 = vld [vmem:[#allocation14 + $0x64] sm:$0xf]
    %v4366 = vld [vmem:[#allocation14 + $0x68] sm:$0xf]
    %v4367 = vld [vmem:[#allocation14 + $0x6c] sm:$0xf]
    %v4368 = vld [vmem:[#allocation14 + $0x70] sm:$0xf]
    %v4369 = vld [vmem:[#allocation14 + $0x74] sm:$0xf]
    %v4370 = vld [vmem:[#allocation14 + $0x78] sm:$0xf]
    %v4371 = vld [vmem:[#allocation14 + $0x7c] sm:$0xf]
    %v4372 = vld [vmem:[#allocation14 + $0x80] sm:$0xf]
    %v4373 = vld [vmem:[#allocation14 + $0x84] sm:$0xf]
    %v4374 = vld [vmem:[#allocation14 + $0x88] sm:$0xf]
    %v4375 = vld [vmem:[#allocation14 + $0x8c] sm:$0xf]
    %v4376 = vld [vmem:[#allocation14 + $0x90] sm:$0xf]
    %v4377 = vld [vmem:[#allocation14 + $0x94] sm:$0xf]
    %v4378 = vld [vmem:[#allocation14 + $0x98] sm:$0xf]
    %v4379 = vld [vmem:[#allocation14 + $0x9c] sm:$0xf]
    %v4380 = vld [vmem:[#allocation14 + $0xa0] sm:$0xf]
    %v4381 = vld [vmem:[#allocation14 + $0xa4] sm:$0xf]
    %v4382 = vld [vmem:[#allocation14 + $0xa8] sm:$0xf]
    %v4383 = vld [vmem:[#allocation14 + $0xac] sm:$0xf]
    %v4384 = vld [vmem:[#allocation14 + $0xb0] sm:$0xf]
    %v4385 = vld [vmem:[#allocation14 + $0xb4] sm:$0xf]
    %v4386 = vld [vmem:[#allocation14 + $0xb8] sm:$0xf]
    %v4387 = vld [vmem:[#allocation14 + $0xbc] sm:$0xf]
    %v4388 = vld [vmem:[#allocation14 + $0xc0] sm:$0xf]
    %v4389 = vld [vmem:[#allocation14 + $0xc4] sm:$0xf]
    %v4390 = vld [vmem:[#allocation14 + $0xc8] sm:$0xf]
    %v4391 = vld [vmem:[#allocation14 + $0xcc] sm:$0xf]
    %v4392 = vld [vmem:[#allocation14 + $0xd0] sm:$0xf]
    %v4393 = vld [vmem:[#allocation14 + $0xd4] sm:$0xf]
    %v4394 = vld [vmem:[#allocation14 + $0xd8] sm:$0xf]
    %v4395 = vld [vmem:[#allocation14 + $0xdc] sm:$0xf]
    %v4396 = vld [vmem:[#allocation14 + $0xe0] sm:$0xf]
    %v4397 = vld [vmem:[#allocation14 + $0xe4] sm:$0xf]
    %v4398 = vld [vmem:[#allocation14 + $0xe8] sm:$0xf]
    %v4399 = vld [vmem:[#allocation14 + $0xec] sm:$0xf]
    %v4400 = vld [vmem:[#allocation14 + $0xf0] sm:$0xf]
    %v4401 = vld [vmem:[#allocation14 + $0xf4] sm:$0xf]
    %v4402 = vld [vmem:[#allocation14 + $0xf8] sm:$0xf]
    %v4403 = vld [vmem:[#allocation14 + $0xfc] sm:$0xf]
    %v4404 = vld [vmem:[#allocation14 + $0x100] sm:$0xf]
    %v4405 = vld [vmem:[#allocation14 + $0x104] sm:$0xf]
    %v4406 = vld [vmem:[#allocation14 + $0x108] sm:$0xf]
    %v4407 = vld [vmem:[#allocation14 + $0x10c] sm:$0xf]
    %v4408 = vld [vmem:[#allocation14 + $0x110] sm:$0xf]
    %v4409 = vld [vmem:[#allocation14 + $0x114] sm:$0xf]
    %v4410 = vld [vmem:[#allocation14 + $0x118] sm:$0xf]
    %v4411 = vld [vmem:[#allocation14 + $0x11c] sm:$0xf]
    %v4412 = vld [vmem:[#allocation14 + $0x120] sm:$0xf]
    %v4413 = vld [vmem:[#allocation14 + $0x124] sm:$0xf]
    %v4414 = vld [vmem:[#allocation14 + $0x128] sm:$0xf]
    %v4415 = vld [vmem:[#allocation14 + $0x12c] sm:$0xf]
    %v4416 = vld [vmem:[#allocation14 + $0x130] sm:$0xf]
    %v4417 = vld [vmem:[#allocation14 + $0x134] sm:$0xf]
    %v4418 = vld [vmem:[#allocation14 + $0x138] sm:$0xf]
    %v4419 = vld [vmem:[#allocation14 + $0x13c] sm:$0xf]
    %v4420 = vld [vmem:[#allocation14 + $0x140] sm:$0xf]
    %v4421 = vld [vmem:[#allocation14 + $0x144] sm:$0xf]
    %v4422 = vld [vmem:[#allocation14 + $0x148] sm:$0xf]
    %v4423 = vld [vmem:[#allocation14 + $0x14c] sm:$0xf]
    %v4424 = vld [vmem:[#allocation14 + $0x150] sm:$0xf]
    %v4425 = vld [vmem:[#allocation14 + $0x154] sm:$0xf]
    %v4426 = vld [vmem:[#allocation14 + $0x158] sm:$0xf]
    %v4427 = vld [vmem:[#allocation14 + $0x15c] sm:$0xf]
    %v4428 = vld [vmem:[#allocation14 + $0x160] sm:$0xf]
    %v4429 = vld [vmem:[#allocation14 + $0x164] sm:$0xf]
    %v4430 = vld [vmem:[#allocation14 + $0x168] sm:$0xf]
    %v4431 = vld [vmem:[#allocation14 + $0x16c] sm:$0xf]
    %v4432 = vld [vmem:[#allocation14 + $0x170] sm:$0xf]
    %v4433 = vld [vmem:[#allocation14 + $0x174] sm:$0xf]
    %v4434 = vld [vmem:[#allocation14 + $0x178] sm:$0xf]
    %v4435 = vld [vmem:[#allocation14 + $0x17c] sm:$0xf]
    %v4436 = vld [vmem:[#allocation14 + $0x180] sm:$0xf]
    %v4437 = vld [vmem:[#allocation14 + $0x184] sm:$0xf]
    %v4438 = vld [vmem:[#allocation14 + $0x188] sm:$0xf]
    %v4439 = vld [vmem:[#allocation14 + $0x18c] sm:$0xf]
    %v4440 = vld [vmem:[#allocation14 + $0x190] sm:$0xf]
    %v4441 = vld [vmem:[#allocation14 + $0x194] sm:$0xf]
    %v4442 = vld [vmem:[#allocation14 + $0x198] sm:$0xf]
    %v4443 = vld [vmem:[#allocation14 + $0x19c] sm:$0xf]
    %v4444 = vld [vmem:[#allocation14 + $0x1a0] sm:$0xf]
    %v4445 = vld [vmem:[#allocation14 + $0x1a4] sm:$0xf]
    %v4446 = vld [vmem:[#allocation14 + $0x1a8] sm:$0xf]
    %v4447 = vld [vmem:[#allocation14 + $0x1ac] sm:$0xf]
    %v4448 = vld [vmem:[#allocation14 + $0x1b0] sm:$0xf]
    %v4449 = vld [vmem:[#allocation14 + $0x1b4] sm:$0xf]
    %v4450 = vld [vmem:[#allocation14 + $0x1b8] sm:$0xf]
    %v4451 = vld [vmem:[#allocation14 + $0x1bc] sm:$0xf]
    %v4452 = vld [vmem:[#allocation14 + $0x1c0] sm:$0xf]
    %v4453 = vld [vmem:[#allocation14 + $0x1c4] sm:$0xf]
    %v4454 = vld [vmem:[#allocation14 + $0x1c8] sm:$0xf]
    %v4455 = vld [vmem:[#allocation14 + $0x1cc] sm:$0xf]
    %v4456 = vld [vmem:[#allocation14 + $0x1d0] sm:$0xf]
    %v4457 = vld [vmem:[#allocation14 + $0x1d4] sm:$0xf]
    %v4458 = vld [vmem:[#allocation14 + $0x1d8] sm:$0xf]
    %v4459 = vld [vmem:[#allocation14 + $0x1dc] sm:$0xf]
    %v4460 = vld [vmem:[#allocation14 + $0x1e0] sm:$0xf]
    %v4461 = vld [vmem:[#allocation14 + $0x1e4] sm:$0xf]
    %v4462 = vld [vmem:[#allocation14 + $0x1e8] sm:$0xf]
    %v4463 = vld [vmem:[#allocation14 + $0x1ec] sm:$0xf]
    %v4464 = vld [vmem:[#allocation14 + $0x1f0] sm:$0xf]
    %v4465 = vld [vmem:[#allocation14 + $0x1f4] sm:$0xf]
    %v4466 = vld [vmem:[#allocation14 + $0x1f8] sm:$0xf]
    %v4467 = vld [vmem:[#allocation14 + $0x1fc] sm:$0xf]
    %v4468 = vld [vmem:[#allocation16] sm:$0x1]
    %v4470 = vperm.slane %v4468, 0
    %v4600 = vunpack.c.l.b16 %v4340
    %v4601 = vunpack.c.l.b16 %v4341
    %v4602 = vunpack.c.l.b16 %v4342
    %v4603 = vunpack.c.l.b16 %v4343
    %v4604 = vunpack.c.l.b16 %v4344
    %v4605 = vunpack.c.l.b16 %v4345
    %v4606 = vunpack.c.l.b16 %v4346
    %v4607 = vunpack.c.l.b16 %v4347
    %v4608 = vunpack.c.l.b16 %v4348
    %v4609 = vunpack.c.l.b16 %v4349
    %v4610 = vunpack.c.l.b16 %v4350
    %v4611 = vunpack.c.l.b16 %v4351
    %v4612 = vunpack.c.l.b16 %v4352
    %v4613 = vunpack.c.l.b16 %v4353
    %v4614 = vunpack.c.l.b16 %v4354
    %v4615 = vunpack.c.l.b16 %v4355
    %v4616 = vunpack.c.l.b16 %v4356
    %v4617 = vunpack.c.l.b16 %v4357
    %v4618 = vunpack.c.l.b16 %v4358
    %v4619 = vunpack.c.l.b16 %v4359
    %v4620 = vunpack.c.l.b16 %v4360
    %v4621 = vunpack.c.l.b16 %v4361
    %v4622 = vunpack.c.l.b16 %v4362
    %v4623 = vunpack.c.l.b16 %v4363
    %v4624 = vunpack.c.l.b16 %v4364
    %v4625 = vunpack.c.l.b16 %v4365
    %v4626 = vunpack.c.l.b16 %v4366
    %v4627 = vunpack.c.l.b16 %v4367
    %v4628 = vunpack.c.l.b16 %v4368
    %v4629 = vunpack.c.l.b16 %v4369
    %v4630 = vunpack.c.l.b16 %v4370
    %v4631 = vunpack.c.l.b16 %v4371
    %v4632 = vunpack.c.l.b16 %v4372
    %v4633 = vunpack.c.l.b16 %v4373
    %v4634 = vunpack.c.l.b16 %v4374
    %v4635 = vunpack.c.l.b16 %v4375
    %v4636 = vunpack.c.l.b16 %v4376
    %v4637 = vunpack.c.l.b16 %v4377
    %v4638 = vunpack.c.l.b16 %v4378
    %v4639 = vunpack.c.l.b16 %v4379
    %v4640 = vunpack.c.l.b16 %v4380
    %v4641 = vunpack.c.l.b16 %v4381
    %v4642 = vunpack.c.l.b16 %v4382
    %v4643 = vunpack.c.l.b16 %v4383
    %v4644 = vunpack.c.l.b16 %v4384
    %v4645 = vunpack.c.l.b16 %v4385
    %v4646 = vunpack.c.l.b16 %v4386
    %v4647 = vunpack.c.l.b16 %v4387
    %v4648 = vunpack.c.l.b16 %v4388
    %v4649 = vunpack.c.l.b16 %v4389
    %v4650 = vunpack.c.l.b16 %v4390
    %v4651 = vunpack.c.l.b16 %v4391
    %v4652 = vunpack.c.l.b16 %v4392
    %v4653 = vunpack.c.l.b16 %v4393
    %v4654 = vunpack.c.l.b16 %v4394
    %v4655 = vunpack.c.l.b16 %v4395
    %v4656 = vunpack.c.l.b16 %v4396
    %v4657 = vunpack.c.l.b16 %v4397
    %v4658 = vunpack.c.l.b16 %v4398
    %v4659 = vunpack.c.l.b16 %v4399
    %v4660 = vunpack.c.l.b16 %v4400
    %v4661 = vunpack.c.l.b16 %v4401
    %v4662 = vunpack.c.l.b16 %v4402
    %v4663 = vunpack.c.l.b16 %v4403
    %v4664 = vunpack.c.l.b16 %v4404
    %v4665 = vunpack.c.l.b16 %v4405
    %v4666 = vunpack.c.l.b16 %v4406
    %v4667 = vunpack.c.l.b16 %v4407
    %v4668 = vunpack.c.l.b16 %v4408
    %v4669 = vunpack.c.l.b16 %v4409
    %v4670 = vunpack.c.l.b16 %v4410
    %v4671 = vunpack.c.l.b16 %v4411
    %v4672 = vunpack.c.l.b16 %v4412
    %v4673 = vunpack.c.l.b16 %v4413
    %v4674 = vunpack.c.l.b16 %v4414
    %v4675 = vunpack.c.l.b16 %v4415
    %v4676 = vunpack.c.l.b16 %v4416
    %v4677 = vunpack.c.l.b16 %v4417
    %v4678 = vunpack.c.l.b16 %v4418
    %v4679 = vunpack.c.l.b16 %v4419
    %v4680 = vunpack.c.l.b16 %v4420
    %v4681 = vunpack.c.l.b16 %v4421
    %v4682 = vunpack.c.l.b16 %v4422
    %v4683 = vunpack.c.l.b16 %v4423
    %v4684 = vunpack.c.l.b16 %v4424
    %v4685 = vunpack.c.l.b16 %v4425
    %v4686 = vunpack.c.l.b16 %v4426
    %v4687 = vunpack.c.l.b16 %v4427
    %v4688 = vunpack.c.l.b16 %v4428
    %v4689 = vunpack.c.l.b16 %v4429
    %v4690 = vunpack.c.l.b16 %v4430
    %v4691 = vunpack.c.l.b16 %v4431
    %v4692 = vunpack.c.l.b16 %v4432
    %v4693 = vunpack.c.l.b16 %v4433
    %v4694 = vunpack.c.l.b16 %v4434
    %v4695 = vunpack.c.l.b16 %v4435
    %v4696 = vunpack.c.l.b16 %v4436
    %v4697 = vunpack.c.l.b16 %v4437
    %v4698 = vunpack.c.l.b16 %v4438
    %v4699 = vunpack.c.l.b16 %v4439
    %v4700 = vunpack.c.l.b16 %v4440
    %v4701 = vunpack.c.l.b16 %v4441
    %v4702 = vunpack.c.l.b16 %v4442
    %v4703 = vunpack.c.l.b16 %v4443
    %v4704 = vunpack.c.l.b16 %v4444
    %v4705 = vunpack.c.l.b16 %v4445
    %v4706 = vunpack.c.l.b16 %v4446
    %v4707 = vunpack.c.l.b16 %v4447
    %v4708 = vunpack.c.l.b16 %v4448
    %v4709 = vunpack.c.l.b16 %v4449
    %v4710 = vunpack.c.l.b16 %v4450
    %v4711 = vunpack.c.l.b16 %v4451
    %v4712 = vunpack.c.l.b16 %v4452
    %v4713 = vunpack.c.l.b16 %v4453
    %v4714 = vunpack.c.l.b16 %v4454
    %v4715 = vunpack.c.l.b16 %v4455
    %v4716 = vunpack.c.l.b16 %v4456
    %v4717 = vunpack.c.l.b16 %v4457
    %v4718 = vunpack.c.l.b16 %v4458
    %v4719 = vunpack.c.l.b16 %v4459
    %v4720 = vunpack.c.l.b16 %v4460
    %v4721 = vunpack.c.l.b16 %v4461
    %v4722 = vunpack.c.l.b16 %v4462
    %v4723 = vunpack.c.l.b16 %v4463
    %v4724 = vunpack.c.l.b16 %v4464
    %v4725 = vunpack.c.l.b16 %v4465
    %v4726 = vunpack.c.l.b16 %v4466
    %v4727 = vunpack.c.l.b16 %v4467
    %v4728 = vpack.c.b16 %v4601, %v4600
    %v4729 = vpack.c.b16 %v4603, %v4602
    %v4730 = vpack.c.b16 %v4605, %v4604
    %v4731 = vpack.c.b16 %v4607, %v4606
    %v4732 = vpack.c.b16 %v4609, %v4608
    %v4733 = vpack.c.b16 %v4611, %v4610
    %v4734 = vpack.c.b16 %v4613, %v4612
    %v4735 = vpack.c.b16 %v4615, %v4614
    %v4736 = vpack.c.b16 %v4617, %v4616
    %v4737 = vpack.c.b16 %v4619, %v4618
    %v4738 = vpack.c.b16 %v4621, %v4620
    %v4739 = vpack.c.b16 %v4623, %v4622
    %v4740 = vpack.c.b16 %v4625, %v4624
    %v4741 = vpack.c.b16 %v4627, %v4626
    %v4742 = vpack.c.b16 %v4629, %v4628
    %v4743 = vpack.c.b16 %v4631, %v4630
    %v4744 = vpack.c.b16 %v4633, %v4632
    %v4745 = vpack.c.b16 %v4635, %v4634
    %v4746 = vpack.c.b16 %v4637, %v4636
    %v4747 = vpack.c.b16 %v4639, %v4638
    %v4748 = vpack.c.b16 %v4641, %v4640
    %v4749 = vpack.c.b16 %v4643, %v4642
    %v4750 = vpack.c.b16 %v4645, %v4644
    %v4751 = vpack.c.b16 %v4647, %v4646
    %v4752 = vpack.c.b16 %v4649, %v4648
    %v4753 = vpack.c.b16 %v4651, %v4650
    %v4754 = vpack.c.b16 %v4653, %v4652
    %v4755 = vpack.c.b16 %v4655, %v4654
    %v4756 = vpack.c.b16 %v4657, %v4656
    %v4757 = vpack.c.b16 %v4659, %v4658
    %v4758 = vpack.c.b16 %v4661, %v4660
    %v4759 = vpack.c.b16 %v4663, %v4662
    %v4760 = vpack.c.b16 %v4665, %v4664
    %v4761 = vpack.c.b16 %v4667, %v4666
    %v4762 = vpack.c.b16 %v4669, %v4668
    %v4763 = vpack.c.b16 %v4671, %v4670
    %v4764 = vpack.c.b16 %v4673, %v4672
    %v4765 = vpack.c.b16 %v4675, %v4674
    %v4766 = vpack.c.b16 %v4677, %v4676
    %v4767 = vpack.c.b16 %v4679, %v4678
    %v4768 = vpack.c.b16 %v4681, %v4680
    %v4769 = vpack.c.b16 %v4683, %v4682
    %v4770 = vpack.c.b16 %v4685, %v4684
    %v4771 = vpack.c.b16 %v4687, %v4686
    %v4772 = vpack.c.b16 %v4689, %v4688
    %v4773 = vpack.c.b16 %v4691, %v4690
    %v4774 = vpack.c.b16 %v4693, %v4692
    %v4775 = vpack.c.b16 %v4695, %v4694
    %v4776 = vpack.c.b16 %v4697, %v4696
    %v4777 = vpack.c.b16 %v4699, %v4698
    %v4778 = vpack.c.b16 %v4701, %v4700
    %v4779 = vpack.c.b16 %v4703, %v4702
    %v4780 = vpack.c.b16 %v4705, %v4704
    %v4781 = vpack.c.b16 %v4707, %v4706
    %v4782 = vpack.c.b16 %v4709, %v4708
    %v4783 = vpack.c.b16 %v4711, %v4710
    %v4784 = vpack.c.b16 %v4713, %v4712
    %v4785 = vpack.c.b16 %v4715, %v4714
    %v4786 = vpack.c.b16 %v4717, %v4716
    %v4787 = vpack.c.b16 %v4719, %v4718
    %v4788 = vpack.c.b16 %v4721, %v4720
    %v4789 = vpack.c.b16 %v4723, %v4722
    %v4790 = vpack.c.b16 %v4725, %v4724
    %v4791 = vpack.c.b16 %v4727, %v4726
    %4856 = vmatpush.bf16.msra.mxu0 %v4735
    %4857 = vmatpush.bf16.msra.mxu0 %v4734
    %4858 = vmatpush.bf16.msra.mxu0 %v4733
    %4859 = vmatpush.bf16.msra.mxu0 %v4732
    %4860 = vmatpush.bf16.msra.mxu0 %v4731
    %4861 = vmatpush.bf16.msra.mxu0 %v4730
    %4862 = vmatpush.bf16.msra.mxu0 %v4729
    %4863 = vmatpush.bf16.msra.mxu0 %v4728
    %4864 = vmatmul.bf16.gmra.mxu0 %v4332
    %v4865 = vpop.f32.mrf.mxu0
    %v4866 = vadd.f32 %v4470, %v4865
    %v4867 = vpop.f32.mrf.mxu0
    %4868 = vdwg.mxu0
    %4869 = vmatpush.bf16.msra.mxu0 %v4743
    %4870 = vmatpush.bf16.msra.mxu0 %v4742
    %4871 = vmatpush.bf16.msra.mxu0 %v4741
    %4872 = vmatpush.bf16.msra.mxu0 %v4740
    %4873 = vmatpush.bf16.msra.mxu0 %v4739
    %4874 = vmatpush.bf16.msra.mxu0 %v4738
    %4875 = vmatpush.bf16.msra.mxu0 %v4737
    %4876 = vmatpush.bf16.msra.mxu0 %v4736
    %4877 = vmatmul.bf16.gmra.mxu0 %v4333
    %v4878 = vpop.f32.mrf.mxu0
    %v4879 = vadd.f32 %v4866, %v4878
    %v4880 = vpop.f32.mrf.mxu0
    %4881 = vdwg.mxu0
    %4882 = vmatpush.bf16.msra.mxu0 %v4751
    %4883 = vmatpush.bf16.msra.mxu0 %v4750
    %4884 = vmatpush.bf16.msra.mxu0 %v4749
    %4885 = vmatpush.bf16.msra.mxu0 %v4748
    %4886 = vmatpush.bf16.msra.mxu0 %v4747
    %4887 = vmatpush.bf16.msra.mxu0 %v4746
    %4888 = vmatpush.bf16.msra.mxu0 %v4745
    %4889 = vmatpush.bf16.msra.mxu0 %v4744
    %4890 = vmatmul.bf16.gmra.mxu0 %v4334
    %v4891 = vpop.f32.mrf.mxu0
    %v4892 = vadd.f32 %v4879, %v4891
    %v4893 = vpop.f32.mrf.mxu0
    %4894 = vdwg.mxu0
    %4895 = vmatpush.bf16.msra.mxu0 %v4759
    %4896 = vmatpush.bf16.msra.mxu0 %v4758
    %4897 = vmatpush.bf16.msra.mxu0 %v4757
    %4898 = vmatpush.bf16.msra.mxu0 %v4756
    %4899 = vmatpush.bf16.msra.mxu0 %v4755
    %4900 = vmatpush.bf16.msra.mxu0 %v4754
    %4901 = vmatpush.bf16.msra.mxu0 %v4753
    %4902 = vmatpush.bf16.msra.mxu0 %v4752
    %4903 = vmatmul.bf16.gmra.mxu0 %v4335
    %v4904 = vpop.f32.mrf.mxu0
    %v4905 = vadd.f32 %v4892, %v4904
    %v4906 = vpop.f32.mrf.mxu0
    %4907 = vdwg.mxu0
    %4908 = vmatpush.bf16.msra.mxu0 %v4767
    %4909 = vmatpush.bf16.msra.mxu0 %v4766
    %4910 = vmatpush.bf16.msra.mxu0 %v4765
    %4911 = vmatpush.bf16.msra.mxu0 %v4764
    %4912 = vmatpush.bf16.msra.mxu0 %v4763
    %4913 = vmatpush.bf16.msra.mxu0 %v4762
    %4914 = vmatpush.bf16.msra.mxu0 %v4761
    %4915 = vmatpush.bf16.msra.mxu0 %v4760
    %4916 = vmatmul.bf16.gmra.mxu0 %v4336
    %v4917 = vpop.f32.mrf.mxu0
    %v4918 = vadd.f32 %v4905, %v4917
    %v4919 = vpop.f32.mrf.mxu0
    %4920 = vdwg.mxu0
    %4921 = vmatpush.bf16.msra.mxu0 %v4775
    %4922 = vmatpush.bf16.msra.mxu0 %v4774
    %4923 = vmatpush.bf16.msra.mxu0 %v4773
    %4924 = vmatpush.bf16.msra.mxu0 %v4772
    %4925 = vmatpush.bf16.msra.mxu0 %v4771
    %4926 = vmatpush.bf16.msra.mxu0 %v4770
    %4927 = vmatpush.bf16.msra.mxu0 %v4769
    %4928 = vmatpush.bf16.msra.mxu0 %v4768
    %4929 = vmatmul.bf16.gmra.mxu0 %v4337
    %v4930 = vpop.f32.mrf.mxu0
    %v4931 = vadd.f32 %v4918, %v4930
    %v4932 = vpop.f32.mrf.mxu0
    %4933 = vdwg.mxu0
    %4934 = vmatpush.bf16.msra.mxu0 %v4783
    %4935 = vmatpush.bf16.msra.mxu0 %v4782
    %4936 = vmatpush.bf16.msra.mxu0 %v4781
    %4937 = vmatpush.bf16.msra.mxu0 %v4780
    %4938 = vmatpush.bf16.msra.mxu0 %v4779
    %4939 = vmatpush.bf16.msra.mxu0 %v4778
    %4940 = vmatpush.bf16.msra.mxu0 %v4777
    %4941 = vmatpush.bf16.msra.mxu0 %v4776
    %4942 = vmatmul.bf16.gmra.mxu0 %v4338
    %v4943 = vpop.f32.mrf.mxu0
    %v4944 = vadd.f32 %v4931, %v4943
    %v4945 = vpop.f32.mrf.mxu0
    %4946 = vdwg.mxu0
    %4947 = vmatpush.bf16.msra.mxu0 %v4791
    %4948 = vmatpush.bf16.msra.mxu0 %v4790
    %4949 = vmatpush.bf16.msra.mxu0 %v4789
    %4950 = vmatpush.bf16.msra.mxu0 %v4788
    %4951 = vmatpush.bf16.msra.mxu0 %v4787
    %4952 = vmatpush.bf16.msra.mxu0 %v4786
    %4953 = vmatpush.bf16.msra.mxu0 %v4785
    %4954 = vmatpush.bf16.msra.mxu0 %v4784
    %4955 = vmatmul.bf16.gmra.mxu0 %v4339
    %v4956 = vpop.f32.mrf.mxu0
    %v4957 = vadd.f32 %v4944, %v4956
    %v4958 = vpop.f32.mrf.mxu0
    %4959 = vdwg.mxu0
    %v4960 = vld [vmem:[#allocation7] sm:$0xf]
    %v4961 = vld [vmem:[#allocation5] sm:$0xf]
    %v4962 = vmul.f32 %v4961, 0.0078125
    %v4963 = vadd.f32 %v4962, 0.001953125
    %v4964 = vsub.f32 %v4957, %v4960
    %v4965 = vand.u32 2147483647, %v4964
    %vm4966 = vcmp.lt.f32.partialorder %v4965, 1.0
    %v4967 = vmul.f32 %v4964, 0.5
    %v4968 = vmul.f32 %v4967, %v4964
    %v4969 = vsub.f32 %v4965, 0.5
    %v4970 = vsel %vm4966, %v4968, %v4969
    %4972 = vset.pattern.permute.xlu0 0
    %4973 = vperm.xlu0 %4972, %v4963
    %v4974 = vpop.permute.xlu0 %4973
    %v4976 = vmul.f32 %v4970, %v4974
    %v4977 = vadd.f32 %v4976, 0.0
    %4979 = vrot.lane.b32.xlu0 %v4960, 32
    %v4980 = vpop.permute.xlu0 %4979
    %v4982 = vsub.f32 %v4957, %v4980
    %v4983 = vand.u32 2147483647, %v4982
    %vm4984 = vcmp.lt.f32.partialorder %v4983, 1.0
    %v4985 = vmul.f32 %v4982, 0.5
    %v4986 = vmul.f32 %v4985, %v4982
    %v4987 = vsub.f32 %v4983, 0.5
    %v4988 = vsel %vm4984, %v4986, %v4987
    %4989 = vset.pattern.permute.xlu0 1
    %4990 = vperm.xlu0 %4989, %v4963
    %v4991 = vpop.permute.xlu0 %4990
    %v4993 = vmul.f32 %v4988, %v4991
    %4995 = vrot.lane.b32.xlu0 %v4993, 96
    %v4996 = vpop.permute.xlu0 %4995
    %v4998 = vadd.f32 %v4977, %v4996
    %4999 = vrot.lane.b32.xlu0 %v4960, 64
    %v5000 = vpop.permute.xlu0 %4999
    %v5002 = vsub.f32 %v4957, %v5000
    %v5003 = vand.u32 2147483647, %v5002
    %vm5004 = vcmp.lt.f32.partialorder %v5003, 1.0
    %v5005 = vmul.f32 %v5002, 0.5
    %v5006 = vmul.f32 %v5005, %v5002
    %v5007 = vsub.f32 %v5003, 0.5
    %v5008 = vsel %vm5004, %v5006, %v5007
    %5009 = vset.pattern.permute.xlu0 2
    %5010 = vperm.xlu0 %5009, %v4963
    %v5011 = vpop.permute.xlu0 %5010
    %v5013 = vmul.f32 %v5008, %v5011
    %5015 = vrot.lane.b32.xlu0 %v5013, 64
    %v5016 = vpop.permute.xlu0 %5015
    %v5018 = vadd.f32 %v4998, %v5016
    %5019 = vrot.lane.b32.xlu0 %v4960, 96
    %v5020 = vpop.permute.xlu0 %5019
    %v5022 = vsub.f32 %v4957, %v5020
    %v5023 = vand.u32 2147483647, %v5022
    %vm5024 = vcmp.lt.f32.partialorder %v5023, 1.0
    %v5025 = vmul.f32 %v5022, 0.5
    %v5026 = vmul.f32 %v5025, %v5022
    %v5027 = vsub.f32 %v5023, 0.5
    %v5028 = vsel %vm5024, %v5026, %v5027
    %5029 = vset.pattern.permute.xlu0 3
    %5030 = vperm.xlu0 %5029, %v4963
    %v5031 = vpop.permute.xlu0 %5030
    %v5033 = vmul.f32 %v5028, %v5031
    %5035 = vrot.lane.b32.xlu0 %v5033, 32
    %v5036 = vpop.permute.xlu0 %5035
    %v5038 = vadd.f32 %v5018, %v5036
    %vm5039 = vcmask 257024
    %v5040 = vsel %vm5039, %v5038, 0.0
    %5041 = vadd.xlane.f32.xlu0 %v5040
    %v5042 = vpop.xlane.xlu0 %5041
    %v5043 = vrot.slane %v5042, 4
    %v5044 = vadd.f32 %v5042, %v5043
    %v5045 = vrot.slane %v5044, 2
    %v5046 = vadd.f32 %v5044, %v5045
    %v5047 = vrot.slane %v5046, 1
    %v5048 = vadd.f32 %v5046, %v5047
    %s5049 = vtos %v5048
    %s5050 = scalar_lea.smem [#allocation17], 0
    %5051 = sst [smem:[%s5050]] %s5049
    // Predicated region
    $region74: #{tpu_custom_call.1} parent=1 // pred_check
      _
    $region75: #{tpu_custom_call.1} parent=1 // pred_check_branch
      %5053 = sbr.rel (0) target = $region77
    $region76: #{tpu_custom_call.1} parent=1 // pred_region
      %5055 = vsyncadd [#allocation4], 0
      %s5057 = sshll.u32 %s9, 4
      %s5058 = int_to_ptr.hbm [resolvable:$true] %s5057
      %5060 = dma.smem_to_hbm [#allocation17], 16, %s5058, [#allocation4]
    $region77: #{tpu_custom_call.1} parent=1 // pred_fallthru
      _
    // Predicated region
    $region78: #{tpu_custom_call.1} parent=1 // pred_check
      _
    $region79: #{tpu_custom_call.1} parent=1 // pred_check_branch
      %5062 = sbr.rel (0) target = $region81
    $region80: #{tpu_custom_call.1} parent=1 // pred_region
      %5064 = dma.done [#allocation4], 16
    $region81: #{tpu_custom_call.1} parent=1 // pred_fallthru
      _
    %5065 = sfence
    %5066 = vsyncpa [#allocation3], 1
    %5067 = vsyncpa [#allocation6], 1
    %5068 = vsyncpa [#allocation9], 1
    %5069 = vsyncpa [#allocation12], 1
    %5070 = vsyncpa [#allocation15], 1
    %5071 = vsyncpa [#allocation4], 1

</llo_original>
